<compile_context>
chip_gen: v6e
topology: v6e:2x2x1
jax: 0.10.0
libtpu: 0.0.40
codegen_flags: <defaults>
</compile_context>

<pallas_src>
import functools
import math

import jax
import jax.numpy as jnp
import numpy as np
from jax.experimental import pallas as pl


# ----------------------------------------------------------------------------
# Fused StarTransformerLayer kernel
# ----------------------------------------------------------------------------
def _star_layer_kernel(
        x_ref,
        swq_ref, sbq_ref, swkv_ref, sbkv_ref, swo_ref, sbo_ref, slnw_ref, slnb_ref,
        rwq_ref, rbq_ref, rwkv_ref, rbkv_ref, rwo_ref, rbo_ref, rlnw_ref, rlnb_ref,
        cur_ref, cen_ref,
        *, batch, seq, hidden, num_heads, head_size, eps, num_iters):
    B, S, H = batch, seq, hidden
    inv_scale = 1.0 / math.sqrt(head_size)

    # ---- constant per-head mask matrices (hoisted: built once per call) -----
    # head_sum   (H, nh): column h is 1 on the lanes of head h
    #                     -> (Q*K) @ head_sum == per-head dot product.
    # head_bcast (nh, H): row h is 1 on the lanes of head h
    #                     -> probs @ head_bcast broadcasts a per-head scalar
    #                        across that head's head_size lanes.
    lane_i = jax.lax.broadcasted_iota(jnp.int32, (H, num_heads), 0)
    head_i = jax.lax.broadcasted_iota(jnp.int32, (H, num_heads), 1)
    lo_i = head_i * head_size
    head_sum = jnp.where((lane_i >= lo_i) & (lane_i < lo_i + head_size),
                         1.0, 0.0).astype(jnp.float32)
    head_j = jax.lax.broadcasted_iota(jnp.int32, (num_heads, H), 0)
    lane_j = jax.lax.broadcasted_iota(jnp.int32, (num_heads, H), 1)
    lo_j = head_j * head_size
    head_bcast = jnp.where((lane_j >= lo_j) & (lane_j < lo_j + head_size),
                           1.0, 0.0).astype(jnp.float32)

    sat_w = (swq_ref[...], sbq_ref[...], swkv_ref[...], sbkv_ref[...],
             swo_ref[...], sbo_ref[...], slnw_ref[...], slnb_ref[...])
    rel_w = (rwq_ref[...], rbq_ref[...], rwkv_ref[...], rbkv_ref[...],
             rwo_ref[...], rbo_ref[...], rlnw_ref[...], rlnb_ref[...])

    def attend(q, kv_flat, num_kv, w):
        """Fused MHA + residual + ReLU + TF-style LayerNorm.

        q:       (n, H)          raw queries.
        kv_flat: (num_kv * n, H) raw keys (== values), stream-major:
                 row l*n + i is stream l's key for query row i.
        """
        wq, bq, wkv, bkv, wo, bo, lnw, lnb = w
        n = q.shape[0]
        L = num_kv

        # Projections: single MXU matmul for Q, single batched matmul for K|V.
        Q = jnp.dot(q, wq, preferred_element_type=jnp.float32) + bq            # (n, H)
        KV = jnp.dot(kv_flat, wkv, preferred_element_type=jnp.float32) + bkv   # (L*n, 2H)
        K = KV[:, :H]
        V = KV[:, H:2 * H]

        # Per-head scaled dot products for every stream with one mask-matmul.
        q_rep = jnp.concatenate([Q] * L, axis=0)                                # (L*n, H)
        scores = jnp.dot(q_rep * K, head_sum,
                         preferred_element_type=jnp.float32) * inv_scale        # (L*n, nh)

        # Softmax over the L streams (short static unrolled reduction on VPU).
        s_l = [scores[l * n:(l + 1) * n, :] for l in range(L)]
        m = s_l[0]
        for l in range(1, L):
            m = jnp.maximum(m, s_l[l])
        e_l = [jnp.exp(s - m) for s in s_l]
        denom = e_l[0]
        for l in range(1, L):
            denom = denom + e_l[l]
        inv_d = pl.reciprocal(denom, approx=True)                               # (n, nh) on EUP
        probs = jnp.concatenate([e * inv_d for e in e_l], axis=0)               # (L*n, nh)

        # Broadcast per-head probs onto their lanes (mask-matmul), weight V and
        # accumulate the context over streams.
        p_lanes = jnp.dot(probs, head_bcast,
                          preferred_element_type=jnp.float32)                   # (L*n, H)
        pv = p_lanes * V
        ctx = pv[0:n, :]
        for l in range(1, L):
            ctx = ctx + pv[l * n:(l + 1) * n, :]                                # (n, H)

        # Output projection, residual (+ raw query), ReLU.
        out = jnp.dot(ctx, wo, preferred_element_type=jnp.float32) + bo         # (n, H)
        h = jnp.maximum(out + q, 0.0)
        # TF-style LayerNorm (eps inside the sqrt); rsqrt on the EUP.
        u = jnp.mean(h, axis=-1, keepdims=True)
        d = h - u
        var = jnp.mean(d * d, axis=-1, keepdims=True)
        return lnw * (d * jax.lax.rsqrt(var + eps)) + lnb

    x = x_ref[...].astype(jnp.float32)                                          # (B*S, H)
    current = x

    # center[b] = mean over the S sequence rows of batch b
    # (== F.avg_pool2d over the sequence dim).  Unrolled row adds (S is tiny).
    cen_pieces = []
    for b in range(B):
        acc = x[b * S:b * S + 1, :]
        for s in range(1, S):
            acc = acc + x[b * S + s:b * S + s + 1, :]
        cen_pieces.append(acc * (1.0 / S))
    center = jnp.concatenate(cen_pieces, axis=0)                                # (B, H)

    for _ in range(num_iters):              # fixed 2 iterations -> static unroll
        # -- satellite: every position attends over
        #    [before, current, after, original x, center] ----------------------
        before_p, after_p, cexp_p = [], [], []
        for b in range(B):
            base = b * S
            # buggy backward cycle_shift: left shift, last row := row 1
            before_p += [current[base + 1:base + S, :],
                         current[base + 1:base + 2, :]]
            # buggy forward cycle_shift: every row := row 0
            after_p.append(jnp.broadcast_to(current[base:base + 1, :], (S, H)))
            cexp_p.append(jnp.broadcast_to(center[b:b + 1, :], (S, H)))
        kv_sat = jnp.concatenate(
            before_p + [current] + after_p + [x] + cexp_p, axis=0)              # (5*B*S, H)
        current = attend(current, kv_sat, 5, sat_w)                             # (B*S, H)

        # -- relay: each batch's center attends over [center, current rows] ----
        rel_rows = [current[b * S + s:b * S + s + 1, :]
                    for s in range(S) for b in range(B)]
        kv_rel = jnp.concatenate([center] + rel_rows, axis=0)                   # ((S+1)*B, H)
        center = attend(center, kv_rel, S + 1, rel_w)                           # (B, H)

    cur_ref[...] = current.astype(cur_ref.dtype)
    cen_ref[...] = center.astype(cen_ref.dtype)


# ----------------------------------------------------------------------------
# Wrapper: one pallas_call, everything whole-array in VMEM (no grid, no tiling)
# ----------------------------------------------------------------------------
@functools.partial(jax.jit,
                   static_argnames=("num_heads", "head_size", "num_iters", "eps"))
def star_transformer_layer(hidden_state, sat_params, relay_params, *,
                           num_heads, head_size, num_iters=2, eps=1e-12):
    """hidden_state: (B, S, H).  Returns (current (B, S, H), center (B, H))."""
    B, S, H = hidden_state.shape
    assert num_heads * head_size == H, "residual add needs num_heads*head_size == hidden"
    x_flat = hidden_state.reshape(B * S, H)                 # layout plumbing only

    kernel = functools.partial(
        _star_layer_kernel, batch=B, seq=S, hidden=H, num_heads=num_heads,
        head_size=head_size, eps=eps, num_iters=num_iters)

    def plist(p):
        return (p["wq"], p["bq"], p["wkv"], p["bkv"],
                p["wo"], p["bo"], p["ln_w"], p["ln_b"])

    cur_flat, center = pl.pallas_call(
        kernel,
        out_shape=(jax.ShapeDtypeStruct((B * S, H), hidden_state.dtype),
                   jax.ShapeDtypeStruct((B, H), hidden_state.dtype)),
    )(x_flat, *plist(sat_params), *plist(relay_params))
    return cur_flat.reshape(B, S, H), center


# ----------------------------------------------------------------------------
# Pure-JAX reference of the full layer (for correctness check)
# ----------------------------------------------------------------------------
def _attention_ref(q, kv, p, *, num_heads, head_size, eps):
    """q: (n, H); kv: (n, L, H), keys == values."""
    n, H = q.shape
    L = kv.shape[1]
    wk, wv = p["wkv"][:, :H], p["wkv"][:, H:]
    bk, bv = p["bkv"][0, :H], p["bkv"][0, H:]
    Q = q @ p["wq"] + p["bq"][0]
    K = kv @ wk + bk
    V = kv @ wv + bv
    Qh = Q.reshape(n, num_heads, head_size)
    Kh = K.reshape(n, L, num_heads, head_size)
    Vh = V.reshape(n, L, num_heads, head_size)
    scores = jnp.einsum("nhd,nlhd->nhl", Qh, Kh) / math.sqrt(head_size)
    probs = jax.nn.softmax(scores, axis=-1)
    ctx = jnp.einsum("nhl,nlhd->nhd", probs, Vh).reshape(n, H)
    out = ctx @ p["wo"] + p["bo"][0]
    h = jnp.maximum(out + q, 0.0)
    u = h.mean(-1, keepdims=True)
    d = h - u
    var = (d * d).mean(-1, keepdims=True)
    return p["ln_w"][0] * (d / jnp.sqrt(var + eps)) + p["ln_b"][0]


def star_transformer_layer_ref(hidden_state, sat_params, relay_params, *,
                               num_heads, head_size, num_iters=2, eps=1e-12):
    B, S, H = hidden_state.shape
    current = hidden_state
    center = jnp.mean(current, axis=1)
    for _ in range(num_iters):
        before = jnp.concatenate([current[:, 1:, :], current[:, 1:2, :]], axis=1)
        after = jnp.broadcast_to(current[:, 0:1, :], current.shape)
        center_exp = jnp.broadcast_to(center[:, None, :], current.shape)
        kv = jnp.stack([before, current, after, hidden_state, center_exp], axis=2)
        current = _attention_ref(
            current.reshape(B * S, H), kv.reshape(B * S, 5, H), sat_params,
            num_heads=num_heads, head_size=head_size, eps=eps).reshape(B, S, H)
        center_concat = jnp.concatenate([center[:, None, :], current], axis=1)
        center = _attention_ref(center, center_concat, relay_params,
                                num_heads=num_heads, head_size=head_size, eps=eps)
    return current, center


# ----------------------------------------------------------------------------
# Deterministic parameter init (Wk|Wv pre-packed into one (H, 2H) matrix)
# ----------------------------------------------------------------------------
def init_params(key, hidden, num_heads, head_size):
    all_head = num_heads * head_size
    assert all_head == hidden
    ks = jax.random.split(key, 8)

    def xavier(k, shape):
        fan_in, fan_out = shape
        std = math.sqrt(2.0 / (fan_in + fan_out))
        return (std * jax.random.normal(k, shape)).astype(jnp.float32)

    def unif(k, shape, bound):
        return jax.random.uniform(k, shape, jnp.float32, -bound, bound)

    b = 1.0 / math.sqrt(hidden)
    wk = xavier(ks[1], (hidden, all_head))
    wv = xavier(ks[2], (hidden, all_head))
    bk = unif(ks[5], (1, all_head), b)
    bv = unif(ks[6], (1, all_head), b)
    return {
        "wq": xavier(ks[0], (hidden, all_head)),
        "bq": unif(ks[4], (1, all_head), b),
        "wkv": jnp.concatenate([wk, wv], axis=1),     # packed [Wk | Wv]
        "bkv": jnp.concatenate([bk, bv], axis=1),     # packed [bk | bv]
        "wo": xavier(ks[3], (hidden, all_head)),
        "bo": unif(ks[7], (1, all_head), b),
        "ln_w": jnp.ones((1, all_head), jnp.float32),
        "ln_b": jnp.zeros((1, all_head), jnp.float32),
    }


if __name__ == "__main__":
    B, S = 2, 8
    NUM_HEADS, HEAD_SIZE = 4, 8
    HIDDEN = NUM_HEADS * HEAD_SIZE                      # 32

    key = jax.random.PRNGKey(0)
    k_x, k_sat, k_rel = jax.random.split(key, 3)
    x = jax.random.normal(k_x, (B, S, HIDDEN), jnp.float32)
    # At nn.Module __init__ time the relay attention is a deepcopy of the
    # satellite one (identical weights); distinct weights here exercise both
    # parameter paths and match arbitrary trained checkpoints.
    sat_params = init_params(k_sat, HIDDEN, NUM_HEADS, HEAD_SIZE)
    relay_params = init_params(k_rel, HIDDEN, NUM_HEADS, HEAD_SIZE)

    cur, center = star_transformer_layer(
        x, sat_params, relay_params, num_heads=NUM_HEADS, head_size=HEAD_SIZE)
    cur = jax.block_until_ready(cur)
    center = jax.block_until_ready(center)
    assert cur.shape == (B, S, HIDDEN) and center.shape == (B, HIDDEN)

    # Reference check (same math, plain JAX).  Tolerance accounts for the
    # approx (EUP) reciprocal/rsqrt and default-precision MXU f32 matmuls on
    # both sides; genuine structural bugs would produce O(0.1+) errors.
    cur_ref, cen_ref = star_transformer_layer_ref(
        x, sat_params, relay_params, num_heads=NUM_HEADS, head_size=HEAD_SIZE)
    np.testing.assert_allclose(np.asarray(cur), np.asarray(cur_ref),
                               rtol=1e-2, atol=1e-2)
    np.testing.assert_allclose(np.asarray(center), np.asarray(cen_ref),
                               rtol=1e-2, atol=1e-2)

    print("KERNEL_OK")
</pallas_src>

<mosaic_0001>
module attributes {stable_mosaic.version = 11 : i64} {
  func.func @_star_layer_kernel(%arg0: memref<16x32xf32, #tpu.memory_space<vmem>>, %arg1: memref<32x32xf32, #tpu.memory_space<vmem>>, %arg2: memref<1x32xf32, #tpu.memory_space<vmem>>, %arg3: memref<32x64xf32, #tpu.memory_space<vmem>>, %arg4: memref<1x64xf32, #tpu.memory_space<vmem>>, %arg5: memref<32x32xf32, #tpu.memory_space<vmem>>, %arg6: memref<1x32xf32, #tpu.memory_space<vmem>>, %arg7: memref<1x32xf32, #tpu.memory_space<vmem>>, %arg8: memref<1x32xf32, #tpu.memory_space<vmem>>, %arg9: memref<32x32xf32, #tpu.memory_space<vmem>>, %arg10: memref<1x32xf32, #tpu.memory_space<vmem>>, %arg11: memref<32x64xf32, #tpu.memory_space<vmem>>, %arg12: memref<1x64xf32, #tpu.memory_space<vmem>>, %arg13: memref<32x32xf32, #tpu.memory_space<vmem>>, %arg14: memref<1x32xf32, #tpu.memory_space<vmem>>, %arg15: memref<1x32xf32, #tpu.memory_space<vmem>>, %arg16: memref<1x32xf32, #tpu.memory_space<vmem>>, %arg17: memref<16x32xf32, #tpu.memory_space<vmem>>, %arg18: memref<2x32xf32, #tpu.memory_space<vmem>>) attributes {dimension_semantics = [], scalar_prefetch = 0 : i64, scratch_operands = 0 : i64, tpu.core_type = #tpu.core_type<tc>} {
    %0 = tpu.iota {dimensions = array<i32: 0>} : vector<32x4xi32>
    %1 = tpu.iota {dimensions = array<i32: 1>} : vector<32x4xi32>
    %c8_i32 = arith.constant 8 : i32
    %2 = vector.broadcast %c8_i32 : i32 to vector<32x4xi32>
    %3 = arith.muli %1, %2 : vector<32x4xi32>
    %4 = arith.cmpi sge, %0, %3 : vector<32x4xi32>
    %c8_i32_0 = arith.constant 8 : i32
    %5 = vector.broadcast %c8_i32_0 : i32 to vector<32x4xi32>
    %6 = arith.addi %3, %5 : vector<32x4xi32>
    %7 = arith.cmpi slt, %0, %6 : vector<32x4xi32>
    %8 = arith.andi %4, %7 : vector<32x4xi1>
    %cst = arith.constant 1.000000e+00 : f32
    %cst_1 = arith.constant 0.000000e+00 : f32
    %9 = vector.broadcast %cst : f32 to vector<32x4xf32>
    %10 = vector.broadcast %cst_1 : f32 to vector<32x4xf32>
    %11 = arith.select %8, %9, %10 : vector<32x4xi1>, vector<32x4xf32>
    %12 = tpu.iota {dimensions = array<i32: 0>} : vector<4x32xi32>
    %13 = tpu.iota {dimensions = array<i32: 1>} : vector<4x32xi32>
    %c8_i32_2 = arith.constant 8 : i32
    %14 = vector.broadcast %c8_i32_2 : i32 to vector<4x32xi32>
    %15 = arith.muli %12, %14 : vector<4x32xi32>
    %16 = arith.cmpi sge, %13, %15 : vector<4x32xi32>
    %c8_i32_3 = arith.constant 8 : i32
    %17 = vector.broadcast %c8_i32_3 : i32 to vector<4x32xi32>
    %18 = arith.addi %15, %17 : vector<4x32xi32>
    %19 = arith.cmpi slt, %13, %18 : vector<4x32xi32>
    %20 = arith.andi %16, %19 : vector<4x32xi1>
    %cst_4 = arith.constant 1.000000e+00 : f32
    %cst_5 = arith.constant 0.000000e+00 : f32
    %21 = vector.broadcast %cst_4 : f32 to vector<4x32xf32>
    %22 = vector.broadcast %cst_5 : f32 to vector<4x32xf32>
    %23 = arith.select %20, %21, %22 : vector<4x32xi1>, vector<4x32xf32>
    %c0 = arith.constant 0 : index
    %c0_6 = arith.constant 0 : index
    %24 = vector.load %arg1[%c0, %c0_6] : memref<32x32xf32, #tpu.memory_space<vmem>>, vector<32x32xf32>
    %c0_7 = arith.constant 0 : index
    %c0_8 = arith.constant 0 : index
    %25 = vector.load %arg2[%c0_7, %c0_8] : memref<1x32xf32, #tpu.memory_space<vmem>>, vector<1x32xf32>
    %c0_9 = arith.constant 0 : index
    %c0_10 = arith.constant 0 : index
    %26 = vector.load %arg3[%c0_9, %c0_10] : memref<32x64xf32, #tpu.memory_space<vmem>>, vector<32x64xf32>
    %c0_11 = arith.constant 0 : index
    %c0_12 = arith.constant 0 : index
    %27 = vector.load %arg4[%c0_11, %c0_12] : memref<1x64xf32, #tpu.memory_space<vmem>>, vector<1x64xf32>
    %c0_13 = arith.constant 0 : index
    %c0_14 = arith.constant 0 : index
    %28 = vector.load %arg5[%c0_13, %c0_14] : memref<32x32xf32, #tpu.memory_space<vmem>>, vector<32x32xf32>
    %c0_15 = arith.constant 0 : index
    %c0_16 = arith.constant 0 : index
    %29 = vector.load %arg6[%c0_15, %c0_16] : memref<1x32xf32, #tpu.memory_space<vmem>>, vector<1x32xf32>
    %c0_17 = arith.constant 0 : index
    %c0_18 = arith.constant 0 : index
    %30 = vector.load %arg7[%c0_17, %c0_18] : memref<1x32xf32, #tpu.memory_space<vmem>>, vector<1x32xf32>
    %c0_19 = arith.constant 0 : index
    %c0_20 = arith.constant 0 : index
    %31 = vector.load %arg8[%c0_19, %c0_20] : memref<1x32xf32, #tpu.memory_space<vmem>>, vector<1x32xf32>
    %c0_21 = arith.constant 0 : index
    %c0_22 = arith.constant 0 : index
    %32 = vector.load %arg9[%c0_21, %c0_22] : memref<32x32xf32, #tpu.memory_space<vmem>>, vector<32x32xf32>
    %c0_23 = arith.constant 0 : index
    %c0_24 = arith.constant 0 : index
    %33 = vector.load %arg10[%c0_23, %c0_24] : memref<1x32xf32, #tpu.memory_space<vmem>>, vector<1x32xf32>
    %c0_25 = arith.constant 0 : index
    %c0_26 = arith.constant 0 : index
    %34 = vector.load %arg11[%c0_25, %c0_26] : memref<32x64xf32, #tpu.memory_space<vmem>>, vector<32x64xf32>
    %c0_27 = arith.constant 0 : index
    %c0_28 = arith.constant 0 : index
    %35 = vector.load %arg12[%c0_27, %c0_28] : memref<1x64xf32, #tpu.memory_space<vmem>>, vector<1x64xf32>
    %c0_29 = arith.constant 0 : index
    %c0_30 = arith.constant 0 : index
    %36 = vector.load %arg13[%c0_29, %c0_30] : memref<32x32xf32, #tpu.memory_space<vmem>>, vector<32x32xf32>
    %c0_31 = arith.constant 0 : index
    %c0_32 = arith.constant 0 : index
    %37 = vector.load %arg14[%c0_31, %c0_32] : memref<1x32xf32, #tpu.memory_space<vmem>>, vector<1x32xf32>
    %c0_33 = arith.constant 0 : index
    %c0_34 = arith.constant 0 : index
    %38 = vector.load %arg15[%c0_33, %c0_34] : memref<1x32xf32, #tpu.memory_space<vmem>>, vector<1x32xf32>
    %c0_35 = arith.constant 0 : index
    %c0_36 = arith.constant 0 : index
    %39 = vector.load %arg16[%c0_35, %c0_36] : memref<1x32xf32, #tpu.memory_space<vmem>>, vector<1x32xf32>
    %c0_37 = arith.constant 0 : index
    %c0_38 = arith.constant 0 : index
    %40 = vector.load %arg0[%c0_37, %c0_38] : memref<16x32xf32, #tpu.memory_space<vmem>>, vector<16x32xf32>
    %41 = vector.extract_strided_slice %40 {offsets = [0, 0], sizes = [1, 32], strides = [1, 1]} : vector<16x32xf32> to vector<1x32xf32>
    %42 = vector.extract_strided_slice %40 {offsets = [1, 0], sizes = [1, 32], strides = [1, 1]} : vector<16x32xf32> to vector<1x32xf32>
    %43 = arith.addf %41, %42 : vector<1x32xf32>
    %44 = vector.extract_strided_slice %40 {offsets = [2, 0], sizes = [1, 32], strides = [1, 1]} : vector<16x32xf32> to vector<1x32xf32>
    %45 = arith.addf %43, %44 : vector<1x32xf32>
    %46 = vector.extract_strided_slice %40 {offsets = [3, 0], sizes = [1, 32], strides = [1, 1]} : vector<16x32xf32> to vector<1x32xf32>
    %47 = arith.addf %45, %46 : vector<1x32xf32>
    %48 = vector.extract_strided_slice %40 {offsets = [4, 0], sizes = [1, 32], strides = [1, 1]} : vector<16x32xf32> to vector<1x32xf32>
    %49 = arith.addf %47, %48 : vector<1x32xf32>
    %50 = vector.extract_strided_slice %40 {offsets = [5, 0], sizes = [1, 32], strides = [1, 1]} : vector<16x32xf32> to vector<1x32xf32>
    %51 = arith.addf %49, %50 : vector<1x32xf32>
    %52 = vector.extract_strided_slice %40 {offsets = [6, 0], sizes = [1, 32], strides = [1, 1]} : vector<16x32xf32> to vector<1x32xf32>
    %53 = arith.addf %51, %52 : vector<1x32xf32>
    %54 = vector.extract_strided_slice %40 {offsets = [7, 0], sizes = [1, 32], strides = [1, 1]} : vector<16x32xf32> to vector<1x32xf32>
    %55 = arith.addf %53, %54 : vector<1x32xf32>
    %cst_39 = arith.constant 1.250000e-01 : f32
    %56 = vector.broadcast %cst_39 : f32 to vector<1x32xf32>
    %57 = arith.mulf %55, %56 : vector<1x32xf32>
    %58 = vector.extract_strided_slice %40 {offsets = [8, 0], sizes = [1, 32], strides = [1, 1]} : vector<16x32xf32> to vector<1x32xf32>
    %59 = vector.extract_strided_slice %40 {offsets = [9, 0], sizes = [1, 32], strides = [1, 1]} : vector<16x32xf32> to vector<1x32xf32>
    %60 = arith.addf %58, %59 : vector<1x32xf32>
    %61 = vector.extract_strided_slice %40 {offsets = [10, 0], sizes = [1, 32], strides = [1, 1]} : vector<16x32xf32> to vector<1x32xf32>
    %62 = arith.addf %60, %61 : vector<1x32xf32>
    %63 = vector.extract_strided_slice %40 {offsets = [11, 0], sizes = [1, 32], strides = [1, 1]} : vector<16x32xf32> to vector<1x32xf32>
    %64 = arith.addf %62, %63 : vector<1x32xf32>
    %65 = vector.extract_strided_slice %40 {offsets = [12, 0], sizes = [1, 32], strides = [1, 1]} : vector<16x32xf32> to vector<1x32xf32>
    %66 = arith.addf %64, %65 : vector<1x32xf32>
    %67 = vector.extract_strided_slice %40 {offsets = [13, 0], sizes = [1, 32], strides = [1, 1]} : vector<16x32xf32> to vector<1x32xf32>
    %68 = arith.addf %66, %67 : vector<1x32xf32>
    %69 = vector.extract_strided_slice %40 {offsets = [14, 0], sizes = [1, 32], strides = [1, 1]} : vector<16x32xf32> to vector<1x32xf32>
    %70 = arith.addf %68, %69 : vector<1x32xf32>
    %71 = vector.extract_strided_slice %40 {offsets = [15, 0], sizes = [1, 32], strides = [1, 1]} : vector<16x32xf32> to vector<1x32xf32>
    %72 = arith.addf %70, %71 : vector<1x32xf32>
    %cst_40 = arith.constant 1.250000e-01 : f32
    %73 = vector.broadcast %cst_40 : f32 to vector<1x32xf32>
    %74 = arith.mulf %72, %73 : vector<1x32xf32>
    %75 = tpu.concatenate %57, %74 in 0 : vector<1x32xf32>, vector<1x32xf32> -> vector<2x32xf32>
    %76 = vector.extract_strided_slice %40 {offsets = [1, 0], sizes = [7, 32], strides = [1, 1]} : vector<16x32xf32> to vector<7x32xf32>
    %77 = vector.extract_strided_slice %40 {offsets = [1, 0], sizes = [1, 32], strides = [1, 1]} : vector<16x32xf32> to vector<1x32xf32>
    %78 = vector.extract_strided_slice %40 {offsets = [0, 0], sizes = [1, 32], strides = [1, 1]} : vector<16x32xf32> to vector<1x32xf32>
    %79 = vector.shape_cast %78 : vector<1x32xf32> to vector<1x32xf32>
    %80 = vector.broadcast %79 : vector<1x32xf32> to vector<8x32xf32>
    %81 = vector.extract_strided_slice %75 {offsets = [0, 0], sizes = [1, 32], strides = [1, 1]} : vector<2x32xf32> to vector<1x32xf32>
    %82 = vector.shape_cast %81 : vector<1x32xf32> to vector<1x32xf32>
    %83 = vector.broadcast %82 : vector<1x32xf32> to vector<8x32xf32>
    %84 = vector.extract_strided_slice %40 {offsets = [9, 0], sizes = [7, 32], strides = [1, 1]} : vector<16x32xf32> to vector<7x32xf32>
    %85 = vector.extract_strided_slice %40 {offsets = [9, 0], sizes = [1, 32], strides = [1, 1]} : vector<16x32xf32> to vector<1x32xf32>
    %86 = vector.extract_strided_slice %40 {offsets = [8, 0], sizes = [1, 32], strides = [1, 1]} : vector<16x32xf32> to vector<1x32xf32>
    %87 = vector.shape_cast %86 : vector<1x32xf32> to vector<1x32xf32>
    %88 = vector.broadcast %87 : vector<1x32xf32> to vector<8x32xf32>
    %89 = vector.extract_strided_slice %75 {offsets = [1, 0], sizes = [1, 32], strides = [1, 1]} : vector<2x32xf32> to vector<1x32xf32>
    %90 = vector.shape_cast %89 : vector<1x32xf32> to vector<1x32xf32>
    %91 = vector.broadcast %90 : vector<1x32xf32> to vector<8x32xf32>
    %92 = tpu.concatenate %76, %77, %84, %85, %40, %80, %88, %40, %83, %91 in 0 : vector<7x32xf32>, vector<1x32xf32>, vector<7x32xf32>, vector<1x32xf32>, vector<16x32xf32>, vector<8x32xf32>, vector<8x32xf32>, vector<16x32xf32>, vector<8x32xf32>, vector<8x32xf32> -> vector<80x32xf32>
    %cst_41 = arith.constant dense<0.000000e+00> : vector<16x32xf32>
    %93 = tpu.matmul %40, %24, %cst_41 {dimension_numbers = #tpu.dot_dimension_numbers<[1], [0], [0], [1], [0, 0, 1, 1], [], []>} : vector<16x32xf32>, vector<32x32xf32>, vector<16x32xf32> -> vector<16x32xf32>
    %94 = vector.broadcast %25 : vector<1x32xf32> to vector<16x32xf32>
    %95 = arith.addf %93, %94 : vector<16x32xf32>
    %cst_42 = arith.constant dense<0.000000e+00> : vector<80x64xf32>
    %96 = tpu.matmul %92, %26, %cst_42 {dimension_numbers = #tpu.dot_dimension_numbers<[1], [0], [0], [1], [0, 0, 1, 1], [], []>} : vector<80x32xf32>, vector<32x64xf32>, vector<80x64xf32> -> vector<80x64xf32>
    %97 = vector.broadcast %27 : vector<1x64xf32> to vector<80x64xf32>
    %98 = arith.addf %96, %97 : vector<80x64xf32>
    %99 = vector.extract_strided_slice %98 {offsets = [0, 0], sizes = [80, 32], strides = [1, 1]} : vector<80x64xf32> to vector<80x32xf32>
    %100 = vector.extract_strided_slice %98 {offsets = [0, 32], sizes = [80, 32], strides = [1, 1]} : vector<80x64xf32> to vector<80x32xf32>
    %101 = tpu.concatenate %95, %95, %95, %95, %95 in 0 : vector<16x32xf32>, vector<16x32xf32>, vector<16x32xf32>, vector<16x32xf32>, vector<16x32xf32> -> vector<80x32xf32>
    %102 = arith.mulf %101, %99 : vector<80x32xf32>
    %cst_43 = arith.constant dense<0.000000e+00> : vector<80x4xf32>
    %103 = tpu.matmul %102, %11, %cst_43 {dimension_numbers = #tpu.dot_dimension_numbers<[1], [0], [0], [1], [0, 0, 1, 1], [], []>} : vector<80x32xf32>, vector<32x4xf32>, vector<80x4xf32> -> vector<80x4xf32>
    %cst_44 = arith.constant 0.353553385 : f32
    %104 = vector.broadcast %cst_44 : f32 to vector<80x4xf32>
    %105 = arith.mulf %103, %104 : vector<80x4xf32>
    %106 = vector.extract_strided_slice %105 {offsets = [0, 0], sizes = [16, 4], strides = [1, 1]} : vector<80x4xf32> to vector<16x4xf32>
    %107 = vector.extract_strided_slice %105 {offsets = [16, 0], sizes = [16, 4], strides = [1, 1]} : vector<80x4xf32> to vector<16x4xf32>
    %108 = vector.extract_strided_slice %105 {offsets = [32, 0], sizes = [16, 4], strides = [1, 1]} : vector<80x4xf32> to vector<16x4xf32>
    %109 = vector.extract_strided_slice %105 {offsets = [48, 0], sizes = [16, 4], strides = [1, 1]} : vector<80x4xf32> to vector<16x4xf32>
    %110 = vector.extract_strided_slice %105 {offsets = [64, 0], sizes = [16, 4], strides = [1, 1]} : vector<80x4xf32> to vector<16x4xf32>
    %111 = arith.maximumf %106, %107 : vector<16x4xf32>
    %112 = arith.maximumf %111, %108 : vector<16x4xf32>
    %113 = arith.maximumf %112, %109 : vector<16x4xf32>
    %114 = arith.maximumf %113, %110 : vector<16x4xf32>
    %115 = arith.subf %106, %114 : vector<16x4xf32>
    %116 = math.exp %115 : vector<16x4xf32>
    %117 = arith.subf %107, %114 : vector<16x4xf32>
    %118 = math.exp %117 : vector<16x4xf32>
    %119 = arith.subf %108, %114 : vector<16x4xf32>
    %120 = math.exp %119 : vector<16x4xf32>
    %121 = arith.subf %109, %114 : vector<16x4xf32>
    %122 = math.exp %121 : vector<16x4xf32>
    %123 = arith.subf %110, %114 : vector<16x4xf32>
    %124 = math.exp %123 : vector<16x4xf32>
    %125 = arith.addf %116, %118 : vector<16x4xf32>
    %126 = arith.addf %125, %120 : vector<16x4xf32>
    %127 = arith.addf %126, %122 : vector<16x4xf32>
    %128 = arith.addf %127, %124 : vector<16x4xf32>
    %129 = tpu.reciprocal %128 {approx = true} : vector<16x4xf32> -> vector<16x4xf32>
    %130 = arith.mulf %116, %129 : vector<16x4xf32>
    %131 = arith.mulf %118, %129 : vector<16x4xf32>
    %132 = arith.mulf %120, %129 : vector<16x4xf32>
    %133 = arith.mulf %122, %129 : vector<16x4xf32>
    %134 = arith.mulf %124, %129 : vector<16x4xf32>
    %135 = tpu.concatenate %130, %131, %132, %133, %134 in 0 : vector<16x4xf32>, vector<16x4xf32>, vector<16x4xf32>, vector<16x4xf32>, vector<16x4xf32> -> vector<80x4xf32>
    %cst_45 = arith.constant dense<0.000000e+00> : vector<80x32xf32>
    %136 = tpu.matmul %135, %23, %cst_45 {dimension_numbers = #tpu.dot_dimension_numbers<[1], [0], [0], [1], [0, 0, 1, 1], [], []>} : vector<80x4xf32>, vector<4x32xf32>, vector<80x32xf32> -> vector<80x32xf32>
    %137 = arith.mulf %136, %100 : vector<80x32xf32>
    %138 = vector.extract_strided_slice %137 {offsets = [0, 0], sizes = [16, 32], strides = [1, 1]} : vector<80x32xf32> to vector<16x32xf32>
    %139 = vector.extract_strided_slice %137 {offsets = [16, 0], sizes = [16, 32], strides = [1, 1]} : vector<80x32xf32> to vector<16x32xf32>
    %140 = arith.addf %138, %139 : vector<16x32xf32>
    %141 = vector.extract_strided_slice %137 {offsets = [32, 0], sizes = [16, 32], strides = [1, 1]} : vector<80x32xf32> to vector<16x32xf32>
    %142 = arith.addf %140, %141 : vector<16x32xf32>
    %143 = vector.extract_strided_slice %137 {offsets = [48, 0], sizes = [16, 32], strides = [1, 1]} : vector<80x32xf32> to vector<16x32xf32>
    %144 = arith.addf %142, %143 : vector<16x32xf32>
    %145 = vector.extract_strided_slice %137 {offsets = [64, 0], sizes = [16, 32], strides = [1, 1]} : vector<80x32xf32> to vector<16x32xf32>
    %146 = arith.addf %144, %145 : vector<16x32xf32>
    %cst_46 = arith.constant dense<0.000000e+00> : vector<16x32xf32>
    %147 = tpu.matmul %146, %28, %cst_46 {dimension_numbers = #tpu.dot_dimension_numbers<[1], [0], [0], [1], [0, 0, 1, 1], [], []>} : vector<16x32xf32>, vector<32x32xf32>, vector<16x32xf32> -> vector<16x32xf32>
    %148 = vector.broadcast %29 : vector<1x32xf32> to vector<16x32xf32>
    %149 = arith.addf %147, %148 : vector<16x32xf32>
    %150 = arith.addf %149, %40 : vector<16x32xf32>
    %cst_47 = arith.constant 0.000000e+00 : f32
    %151 = vector.broadcast %cst_47 : f32 to vector<16x32xf32>
    %152 = arith.maximumf %150, %151 : vector<16x32xf32>
    %cst_48 = arith.constant dense<0.000000e+00> : vector<16xf32>
    %153 = vector.multi_reduction <add>, %152, %cst_48 [1] : vector<16x32xf32> to vector<16xf32>
    %154 = vector.shape_cast %153 : vector<16xf32> to vector<16x1xf32>
    %cst_49 = arith.constant 3.200000e+01 : f32
    %155 = vector.broadcast %cst_49 : f32 to vector<16x1xf32>
    %156 = arith.divf %154, %155 : vector<16x1xf32>
    %157 = vector.broadcast %156 : vector<16x1xf32> to vector<16x32xf32>
    %158 = arith.subf %152, %157 : vector<16x32xf32>
    %159 = arith.mulf %158, %158 : vector<16x32xf32>
    %cst_50 = arith.constant dense<0.000000e+00> : vector<16xf32>
    %160 = vector.multi_reduction <add>, %159, %cst_50 [1] : vector<16x32xf32> to vector<16xf32>
    %161 = vector.shape_cast %160 : vector<16xf32> to vector<16x1xf32>
    %cst_51 = arith.constant 3.200000e+01 : f32
    %162 = vector.broadcast %cst_51 : f32 to vector<16x1xf32>
    %163 = arith.divf %161, %162 : vector<16x1xf32>
    %cst_52 = arith.constant 9.99999996E-13 : f32
    %164 = vector.broadcast %cst_52 : f32 to vector<16x1xf32>
    %165 = arith.addf %163, %164 : vector<16x1xf32>
    %166 = math.rsqrt %165 : vector<16x1xf32>
    %167 = vector.broadcast %166 : vector<16x1xf32> to vector<16x32xf32>
    %168 = arith.mulf %158, %167 : vector<16x32xf32>
    %169 = vector.broadcast %30 : vector<1x32xf32> to vector<16x32xf32>
    %170 = arith.mulf %169, %168 : vector<16x32xf32>
    %171 = vector.broadcast %31 : vector<1x32xf32> to vector<16x32xf32>
    %172 = arith.addf %170, %171 : vector<16x32xf32>
    %173 = vector.extract_strided_slice %172 {offsets = [0, 0], sizes = [1, 32], strides = [1, 1]} : vector<16x32xf32> to vector<1x32xf32>
    %174 = vector.extract_strided_slice %172 {offsets = [8, 0], sizes = [1, 32], strides = [1, 1]} : vector<16x32xf32> to vector<1x32xf32>
    %175 = vector.extract_strided_slice %172 {offsets = [1, 0], sizes = [1, 32], strides = [1, 1]} : vector<16x32xf32> to vector<1x32xf32>
    %176 = vector.extract_strided_slice %172 {offsets = [9, 0], sizes = [1, 32], strides = [1, 1]} : vector<16x32xf32> to vector<1x32xf32>
    %177 = vector.extract_strided_slice %172 {offsets = [2, 0], sizes = [1, 32], strides = [1, 1]} : vector<16x32xf32> to vector<1x32xf32>
    %178 = vector.extract_strided_slice %172 {offsets = [10, 0], sizes = [1, 32], strides = [1, 1]} : vector<16x32xf32> to vector<1x32xf32>
    %179 = vector.extract_strided_slice %172 {offsets = [3, 0], sizes = [1, 32], strides = [1, 1]} : vector<16x32xf32> to vector<1x32xf32>
    %180 = vector.extract_strided_slice %172 {offsets = [11, 0], sizes = [1, 32], strides = [1, 1]} : vector<16x32xf32> to vector<1x32xf32>
    %181 = vector.extract_strided_slice %172 {offsets = [4, 0], sizes = [1, 32], strides = [1, 1]} : vector<16x32xf32> to vector<1x32xf32>
    %182 = vector.extract_strided_slice %172 {offsets = [12, 0], sizes = [1, 32], strides = [1, 1]} : vector<16x32xf32> to vector<1x32xf32>
    %183 = vector.extract_strided_slice %172 {offsets = [5, 0], sizes = [1, 32], strides = [1, 1]} : vector<16x32xf32> to vector<1x32xf32>
    %184 = vector.extract_strided_slice %172 {offsets = [13, 0], sizes = [1, 32], strides = [1, 1]} : vector<16x32xf32> to vector<1x32xf32>
    %185 = vector.extract_strided_slice %172 {offsets = [6, 0], sizes = [1, 32], strides = [1, 1]} : vector<16x32xf32> to vector<1x32xf32>
    %186 = vector.extract_strided_slice %172 {offsets = [14, 0], sizes = [1, 32], strides = [1, 1]} : vector<16x32xf32> to vector<1x32xf32>
    %187 = vector.extract_strided_slice %172 {offsets = [7, 0], sizes = [1, 32], strides = [1, 1]} : vector<16x32xf32> to vector<1x32xf32>
    %188 = vector.extract_strided_slice %172 {offsets = [15, 0], sizes = [1, 32], strides = [1, 1]} : vector<16x32xf32> to vector<1x32xf32>
    %189 = tpu.concatenate %75, %173, %174, %175, %176, %177, %178, %179, %180, %181, %182, %183, %184, %185, %186, %187 in 0 : vector<2x32xf32>, vector<1x32xf32>, vector<1x32xf32>, vector<1x32xf32>, vector<1x32xf32>, vector<1x32xf32>, vector<1x32xf32>, vector<1x32xf32>, vector<1x32xf32>, vector<1x32xf32>, vector<1x32xf32>, vector<1x32xf32>, vector<1x32xf32>, vector<1x32xf32>, vector<1x32xf32>, vector<1x32xf32> -> vector<17x32xf32>
    %190 = tpu.concatenate %189, %188 in 0 : vector<17x32xf32>, vector<1x32xf32> -> vector<18x32xf32>
    %cst_53 = arith.constant dense<0.000000e+00> : vector<2x32xf32>
    %191 = tpu.matmul %75, %32, %cst_53 {dimension_numbers = #tpu.dot_dimension_numbers<[1], [0], [0], [1], [0, 0, 1, 1], [], []>} : vector<2x32xf32>, vector<32x32xf32>, vector<2x32xf32> -> vector<2x32xf32>
    %192 = vector.broadcast %33 : vector<1x32xf32> to vector<2x32xf32>
    %193 = arith.addf %191, %192 : vector<2x32xf32>
    %cst_54 = arith.constant dense<0.000000e+00> : vector<18x64xf32>
    %194 = tpu.matmul %190, %34, %cst_54 {dimension_numbers = #tpu.dot_dimension_numbers<[1], [0], [0], [1], [0, 0, 1, 1], [], []>} : vector<18x32xf32>, vector<32x64xf32>, vector<18x64xf32> -> vector<18x64xf32>
    %195 = vector.broadcast %35 : vector<1x64xf32> to vector<18x64xf32>
    %196 = arith.addf %194, %195 : vector<18x64xf32>
    %197 = vector.extract_strided_slice %196 {offsets = [0, 0], sizes = [18, 32], strides = [1, 1]} : vector<18x64xf32> to vector<18x32xf32>
    %198 = vector.extract_strided_slice %196 {offsets = [0, 32], sizes = [18, 32], strides = [1, 1]} : vector<18x64xf32> to vector<18x32xf32>
    %199 = tpu.concatenate %193, %193, %193, %193, %193, %193, %193, %193, %193 in 0 : vector<2x32xf32>, vector<2x32xf32>, vector<2x32xf32>, vector<2x32xf32>, vector<2x32xf32>, vector<2x32xf32>, vector<2x32xf32>, vector<2x32xf32>, vector<2x32xf32> -> vector<18x32xf32>
    %200 = arith.mulf %199, %197 : vector<18x32xf32>
    %cst_55 = arith.constant dense<0.000000e+00> : vector<18x4xf32>
    %201 = tpu.matmul %200, %11, %cst_55 {dimension_numbers = #tpu.dot_dimension_numbers<[1], [0], [0], [1], [0, 0, 1, 1], [], []>} : vector<18x32xf32>, vector<32x4xf32>, vector<18x4xf32> -> vector<18x4xf32>
    %cst_56 = arith.constant 0.353553385 : f32
    %202 = vector.broadcast %cst_56 : f32 to vector<18x4xf32>
    %203 = arith.mulf %201, %202 : vector<18x4xf32>
    %204 = vector.extract_strided_slice %203 {offsets = [0, 0], sizes = [2, 4], strides = [1, 1]} : vector<18x4xf32> to vector<2x4xf32>
    %205 = vector.extract_strided_slice %203 {offsets = [2, 0], sizes = [2, 4], strides = [1, 1]} : vector<18x4xf32> to vector<2x4xf32>
    %206 = vector.extract_strided_slice %203 {offsets = [4, 0], sizes = [2, 4], strides = [1, 1]} : vector<18x4xf32> to vector<2x4xf32>
    %207 = vector.extract_strided_slice %203 {offsets = [6, 0], sizes = [2, 4], strides = [1, 1]} : vector<18x4xf32> to vector<2x4xf32>
    %208 = vector.extract_strided_slice %203 {offsets = [8, 0], sizes = [2, 4], strides = [1, 1]} : vector<18x4xf32> to vector<2x4xf32>
    %209 = vector.extract_strided_slice %203 {offsets = [10, 0], sizes = [2, 4], strides = [1, 1]} : vector<18x4xf32> to vector<2x4xf32>
    %210 = vector.extract_strided_slice %203 {offsets = [12, 0], sizes = [2, 4], strides = [1, 1]} : vector<18x4xf32> to vector<2x4xf32>
    %211 = vector.extract_strided_slice %203 {offsets = [14, 0], sizes = [2, 4], strides = [1, 1]} : vector<18x4xf32> to vector<2x4xf32>
    %212 = vector.extract_strided_slice %203 {offsets = [16, 0], sizes = [2, 4], strides = [1, 1]} : vector<18x4xf32> to vector<2x4xf32>
    %213 = arith.maximumf %204, %205 : vector<2x4xf32>
    %214 = arith.maximumf %213, %206 : vector<2x4xf32>
    %215 = arith.maximumf %214, %207 : vector<2x4xf32>
    %216 = arith.maximumf %215, %208 : vector<2x4xf32>
    %217 = arith.maximumf %216, %209 : vector<2x4xf32>
    %218 = arith.maximumf %217, %210 : vector<2x4xf32>
    %219 = arith.maximumf %218, %211 : vector<2x4xf32>
    %220 = arith.maximumf %219, %212 : vector<2x4xf32>
    %221 = arith.subf %204, %220 : vector<2x4xf32>
    %222 = math.exp %221 : vector<2x4xf32>
    %223 = arith.subf %205, %220 : vector<2x4xf32>
    %224 = math.exp %223 : vector<2x4xf32>
    %225 = arith.subf %206, %220 : vector<2x4xf32>
    %226 = math.exp %225 : vector<2x4xf32>
    %227 = arith.subf %207, %220 : vector<2x4xf32>
    %228 = math.exp %227 : vector<2x4xf32>
    %229 = arith.subf %208, %220 : vector<2x4xf32>
    %230 = math.exp %229 : vector<2x4xf32>
    %231 = arith.subf %209, %220 : vector<2x4xf32>
    %232 = math.exp %231 : vector<2x4xf32>
    %233 = arith.subf %210, %220 : vector<2x4xf32>
    %234 = math.exp %233 : vector<2x4xf32>
    %235 = arith.subf %211, %220 : vector<2x4xf32>
    %236 = math.exp %235 : vector<2x4xf32>
    %237 = arith.subf %212, %220 : vector<2x4xf32>
    %238 = math.exp %237 : vector<2x4xf32>
    %239 = arith.addf %222, %224 : vector<2x4xf32>
    %240 = arith.addf %239, %226 : vector<2x4xf32>
    %241 = arith.addf %240, %228 : vector<2x4xf32>
    %242 = arith.addf %241, %230 : vector<2x4xf32>
    %243 = arith.addf %242, %232 : vector<2x4xf32>
    %244 = arith.addf %243, %234 : vector<2x4xf32>
    %245 = arith.addf %244, %236 : vector<2x4xf32>
    %246 = arith.addf %245, %238 : vector<2x4xf32>
    %247 = tpu.reciprocal %246 {approx = true} : vector<2x4xf32> -> vector<2x4xf32>
    %248 = arith.mulf %222, %247 : vector<2x4xf32>
    %249 = arith.mulf %224, %247 : vector<2x4xf32>
    %250 = arith.mulf %226, %247 : vector<2x4xf32>
    %251 = arith.mulf %228, %247 : vector<2x4xf32>
    %252 = arith.mulf %230, %247 : vector<2x4xf32>
    %253 = arith.mulf %232, %247 : vector<2x4xf32>
    %254 = arith.mulf %234, %247 : vector<2x4xf32>
    %255 = arith.mulf %236, %247 : vector<2x4xf32>
    %256 = arith.mulf %238, %247 : vector<2x4xf32>
    %257 = tpu.concatenate %248, %249, %250, %251, %252, %253, %254, %255, %256 in 0 : vector<2x4xf32>, vector<2x4xf32>, vector<2x4xf32>, vector<2x4xf32>, vector<2x4xf32>, vector<2x4xf32>, vector<2x4xf32>, vector<2x4xf32>, vector<2x4xf32> -> vector<18x4xf32>
    %cst_57 = arith.constant dense<0.000000e+00> : vector<18x32xf32>
    %258 = tpu.matmul %257, %23, %cst_57 {dimension_numbers = #tpu.dot_dimension_numbers<[1], [0], [0], [1], [0, 0, 1, 1], [], []>} : vector<18x4xf32>, vector<4x32xf32>, vector<18x32xf32> -> vector<18x32xf32>
    %259 = arith.mulf %258, %198 : vector<18x32xf32>
    %260 = vector.extract_strided_slice %259 {offsets = [0, 0], sizes = [2, 32], strides = [1, 1]} : vector<18x32xf32> to vector<2x32xf32>
    %261 = vector.extract_strided_slice %259 {offsets = [2, 0], sizes = [2, 32], strides = [1, 1]} : vector<18x32xf32> to vector<2x32xf32>
    %262 = arith.addf %260, %261 : vector<2x32xf32>
    %263 = vector.extract_strided_slice %259 {offsets = [4, 0], sizes = [2, 32], strides = [1, 1]} : vector<18x32xf32> to vector<2x32xf32>
    %264 = arith.addf %262, %263 : vector<2x32xf32>
    %265 = vector.extract_strided_slice %259 {offsets = [6, 0], sizes = [2, 32], strides = [1, 1]} : vector<18x32xf32> to vector<2x32xf32>
    %266 = arith.addf %264, %265 : vector<2x32xf32>
    %267 = vector.extract_strided_slice %259 {offsets = [8, 0], sizes = [2, 32], strides = [1, 1]} : vector<18x32xf32> to vector<2x32xf32>
    %268 = arith.addf %266, %267 : vector<2x32xf32>
    %269 = vector.extract_strided_slice %259 {offsets = [10, 0], sizes = [2, 32], strides = [1, 1]} : vector<18x32xf32> to vector<2x32xf32>
    %270 = arith.addf %268, %269 : vector<2x32xf32>
    %271 = vector.extract_strided_slice %259 {offsets = [12, 0], sizes = [2, 32], strides = [1, 1]} : vector<18x32xf32> to vector<2x32xf32>
    %272 = arith.addf %270, %271 : vector<2x32xf32>
    %273 = vector.extract_strided_slice %259 {offsets = [14, 0], sizes = [2, 32], strides = [1, 1]} : vector<18x32xf32> to vector<2x32xf32>
    %274 = arith.addf %272, %273 : vector<2x32xf32>
    %275 = vector.extract_strided_slice %259 {offsets = [16, 0], sizes = [2, 32], strides = [1, 1]} : vector<18x32xf32> to vector<2x32xf32>
    %276 = arith.addf %274, %275 : vector<2x32xf32>
    %cst_58 = arith.constant dense<0.000000e+00> : vector<2x32xf32>
    %277 = tpu.matmul %276, %36, %cst_58 {dimension_numbers = #tpu.dot_dimension_numbers<[1], [0], [0], [1], [0, 0, 1, 1], [], []>} : vector<2x32xf32>, vector<32x32xf32>, vector<2x32xf32> -> vector<2x32xf32>
    %278 = vector.broadcast %37 : vector<1x32xf32> to vector<2x32xf32>
    %279 = arith.addf %277, %278 : vector<2x32xf32>
    %280 = arith.addf %279, %75 : vector<2x32xf32>
    %cst_59 = arith.constant 0.000000e+00 : f32
    %281 = vector.broadcast %cst_59 : f32 to vector<2x32xf32>
    %282 = arith.maximumf %280, %281 : vector<2x32xf32>
    %cst_60 = arith.constant dense<0.000000e+00> : vector<2xf32>
    %283 = vector.multi_reduction <add>, %282, %cst_60 [1] : vector<2x32xf32> to vector<2xf32>
    %284 = vector.shape_cast %283 : vector<2xf32> to vector<2x1xf32>
    %cst_61 = arith.constant 3.200000e+01 : f32
    %285 = vector.broadcast %cst_61 : f32 to vector<2x1xf32>
    %286 = arith.divf %284, %285 : vector<2x1xf32>
    %287 = vector.broadcast %286 : vector<2x1xf32> to vector<2x32xf32>
    %288 = arith.subf %282, %287 : vector<2x32xf32>
    %289 = arith.mulf %288, %288 : vector<2x32xf32>
    %cst_62 = arith.constant dense<0.000000e+00> : vector<2xf32>
    %290 = vector.multi_reduction <add>, %289, %cst_62 [1] : vector<2x32xf32> to vector<2xf32>
    %291 = vector.shape_cast %290 : vector<2xf32> to vector<2x1xf32>
    %cst_63 = arith.constant 3.200000e+01 : f32
    %292 = vector.broadcast %cst_63 : f32 to vector<2x1xf32>
    %293 = arith.divf %291, %292 : vector<2x1xf32>
    %cst_64 = arith.constant 9.99999996E-13 : f32
    %294 = vector.broadcast %cst_64 : f32 to vector<2x1xf32>
    %295 = arith.addf %293, %294 : vector<2x1xf32>
    %296 = math.rsqrt %295 : vector<2x1xf32>
    %297 = vector.broadcast %296 : vector<2x1xf32> to vector<2x32xf32>
    %298 = arith.mulf %288, %297 : vector<2x32xf32>
    %299 = vector.broadcast %38 : vector<1x32xf32> to vector<2x32xf32>
    %300 = arith.mulf %299, %298 : vector<2x32xf32>
    %301 = vector.broadcast %39 : vector<1x32xf32> to vector<2x32xf32>
    %302 = arith.addf %300, %301 : vector<2x32xf32>
    %303 = vector.extract_strided_slice %172 {offsets = [1, 0], sizes = [7, 32], strides = [1, 1]} : vector<16x32xf32> to vector<7x32xf32>
    %304 = vector.extract_strided_slice %172 {offsets = [1, 0], sizes = [1, 32], strides = [1, 1]} : vector<16x32xf32> to vector<1x32xf32>
    %305 = vector.extract_strided_slice %172 {offsets = [0, 0], sizes = [1, 32], strides = [1, 1]} : vector<16x32xf32> to vector<1x32xf32>
    %306 = vector.shape_cast %305 : vector<1x32xf32> to vector<1x32xf32>
    %307 = vector.broadcast %306 : vector<1x32xf32> to vector<8x32xf32>
    %308 = vector.extract_strided_slice %302 {offsets = [0, 0], sizes = [1, 32], strides = [1, 1]} : vector<2x32xf32> to vector<1x32xf32>
    %309 = vector.shape_cast %308 : vector<1x32xf32> to vector<1x32xf32>
    %310 = vector.broadcast %309 : vector<1x32xf32> to vector<8x32xf32>
    %311 = vector.extract_strided_slice %172 {offsets = [9, 0], sizes = [7, 32], strides = [1, 1]} : vector<16x32xf32> to vector<7x32xf32>
    %312 = vector.extract_strided_slice %172 {offsets = [9, 0], sizes = [1, 32], strides = [1, 1]} : vector<16x32xf32> to vector<1x32xf32>
    %313 = vector.extract_strided_slice %172 {offsets = [8, 0], sizes = [1, 32], strides = [1, 1]} : vector<16x32xf32> to vector<1x32xf32>
    %314 = vector.shape_cast %313 : vector<1x32xf32> to vector<1x32xf32>
    %315 = vector.broadcast %314 : vector<1x32xf32> to vector<8x32xf32>
    %316 = vector.extract_strided_slice %302 {offsets = [1, 0], sizes = [1, 32], strides = [1, 1]} : vector<2x32xf32> to vector<1x32xf32>
    %317 = vector.shape_cast %316 : vector<1x32xf32> to vector<1x32xf32>
    %318 = vector.broadcast %317 : vector<1x32xf32> to vector<8x32xf32>
    %319 = tpu.concatenate %303, %304, %311, %312, %172, %307, %315, %40, %310, %318 in 0 : vector<7x32xf32>, vector<1x32xf32>, vector<7x32xf32>, vector<1x32xf32>, vector<16x32xf32>, vector<8x32xf32>, vector<8x32xf32>, vector<16x32xf32>, vector<8x32xf32>, vector<8x32xf32> -> vector<80x32xf32>
    %cst_65 = arith.constant dense<0.000000e+00> : vector<16x32xf32>
    %320 = tpu.matmul %172, %24, %cst_65 {dimension_numbers = #tpu.dot_dimension_numbers<[1], [0], [0], [1], [0, 0, 1, 1], [], []>} : vector<16x32xf32>, vector<32x32xf32>, vector<16x32xf32> -> vector<16x32xf32>
    %321 = vector.broadcast %25 : vector<1x32xf32> to vector<16x32xf32>
    %322 = arith.addf %320, %321 : vector<16x32xf32>
    %cst_66 = arith.constant dense<0.000000e+00> : vector<80x64xf32>
    %323 = tpu.matmul %319, %26, %cst_66 {dimension_numbers = #tpu.dot_dimension_numbers<[1], [0], [0], [1], [0, 0, 1, 1], [], []>} : vector<80x32xf32>, vector<32x64xf32>, vector<80x64xf32> -> vector<80x64xf32>
    %324 = vector.broadcast %27 : vector<1x64xf32> to vector<80x64xf32>
    %325 = arith.addf %323, %324 : vector<80x64xf32>
    %326 = vector.extract_strided_slice %325 {offsets = [0, 0], sizes = [80, 32], strides = [1, 1]} : vector<80x64xf32> to vector<80x32xf32>
    %327 = vector.extract_strided_slice %325 {offsets = [0, 32], sizes = [80, 32], strides = [1, 1]} : vector<80x64xf32> to vector<80x32xf32>
    %328 = tpu.concatenate %322, %322, %322, %322, %322 in 0 : vector<16x32xf32>, vector<16x32xf32>, vector<16x32xf32>, vector<16x32xf32>, vector<16x32xf32> -> vector<80x32xf32>
    %329 = arith.mulf %328, %326 : vector<80x32xf32>
    %cst_67 = arith.constant dense<0.000000e+00> : vector<80x4xf32>
    %330 = tpu.matmul %329, %11, %cst_67 {dimension_numbers = #tpu.dot_dimension_numbers<[1], [0], [0], [1], [0, 0, 1, 1], [], []>} : vector<80x32xf32>, vector<32x4xf32>, vector<80x4xf32> -> vector<80x4xf32>
    %cst_68 = arith.constant 0.353553385 : f32
    %331 = vector.broadcast %cst_68 : f32 to vector<80x4xf32>
    %332 = arith.mulf %330, %331 : vector<80x4xf32>
    %333 = vector.extract_strided_slice %332 {offsets = [0, 0], sizes = [16, 4], strides = [1, 1]} : vector<80x4xf32> to vector<16x4xf32>
    %334 = vector.extract_strided_slice %332 {offsets = [16, 0], sizes = [16, 4], strides = [1, 1]} : vector<80x4xf32> to vector<16x4xf32>
    %335 = vector.extract_strided_slice %332 {offsets = [32, 0], sizes = [16, 4], strides = [1, 1]} : vector<80x4xf32> to vector<16x4xf32>
    %336 = vector.extract_strided_slice %332 {offsets = [48, 0], sizes = [16, 4], strides = [1, 1]} : vector<80x4xf32> to vector<16x4xf32>
    %337 = vector.extract_strided_slice %332 {offsets = [64, 0], sizes = [16, 4], strides = [1, 1]} : vector<80x4xf32> to vector<16x4xf32>
    %338 = arith.maximumf %333, %334 : vector<16x4xf32>
    %339 = arith.maximumf %338, %335 : vector<16x4xf32>
    %340 = arith.maximumf %339, %336 : vector<16x4xf32>
    %341 = arith.maximumf %340, %337 : vector<16x4xf32>
    %342 = arith.subf %333, %341 : vector<16x4xf32>
    %343 = math.exp %342 : vector<16x4xf32>
    %344 = arith.subf %334, %341 : vector<16x4xf32>
    %345 = math.exp %344 : vector<16x4xf32>
    %346 = arith.subf %335, %341 : vector<16x4xf32>
    %347 = math.exp %346 : vector<16x4xf32>
    %348 = arith.subf %336, %341 : vector<16x4xf32>
    %349 = math.exp %348 : vector<16x4xf32>
    %350 = arith.subf %337, %341 : vector<16x4xf32>
    %351 = math.exp %350 : vector<16x4xf32>
    %352 = arith.addf %343, %345 : vector<16x4xf32>
    %353 = arith.addf %352, %347 : vector<16x4xf32>
    %354 = arith.addf %353, %349 : vector<16x4xf32>
    %355 = arith.addf %354, %351 : vector<16x4xf32>
    %356 = tpu.reciprocal %355 {approx = true} : vector<16x4xf32> -> vector<16x4xf32>
    %357 = arith.mulf %343, %356 : vector<16x4xf32>
    %358 = arith.mulf %345, %356 : vector<16x4xf32>
    %359 = arith.mulf %347, %356 : vector<16x4xf32>
    %360 = arith.mulf %349, %356 : vector<16x4xf32>
    %361 = arith.mulf %351, %356 : vector<16x4xf32>
    %362 = tpu.concatenate %357, %358, %359, %360, %361 in 0 : vector<16x4xf32>, vector<16x4xf32>, vector<16x4xf32>, vector<16x4xf32>, vector<16x4xf32> -> vector<80x4xf32>
    %cst_69 = arith.constant dense<0.000000e+00> : vector<80x32xf32>
    %363 = tpu.matmul %362, %23, %cst_69 {dimension_numbers = #tpu.dot_dimension_numbers<[1], [0], [0], [1], [0, 0, 1, 1], [], []>} : vector<80x4xf32>, vector<4x32xf32>, vector<80x32xf32> -> vector<80x32xf32>
    %364 = arith.mulf %363, %327 : vector<80x32xf32>
    %365 = vector.extract_strided_slice %364 {offsets = [0, 0], sizes = [16, 32], strides = [1, 1]} : vector<80x32xf32> to vector<16x32xf32>
    %366 = vector.extract_strided_slice %364 {offsets = [16, 0], sizes = [16, 32], strides = [1, 1]} : vector<80x32xf32> to vector<16x32xf32>
    %367 = arith.addf %365, %366 : vector<16x32xf32>
    %368 = vector.extract_strided_slice %364 {offsets = [32, 0], sizes = [16, 32], strides = [1, 1]} : vector<80x32xf32> to vector<16x32xf32>
    %369 = arith.addf %367, %368 : vector<16x32xf32>
    %370 = vector.extract_strided_slice %364 {offsets = [48, 0], sizes = [16, 32], strides = [1, 1]} : vector<80x32xf32> to vector<16x32xf32>
    %371 = arith.addf %369, %370 : vector<16x32xf32>
    %372 = vector.extract_strided_slice %364 {offsets = [64, 0], sizes = [16, 32], strides = [1, 1]} : vector<80x32xf32> to vector<16x32xf32>
    %373 = arith.addf %371, %372 : vector<16x32xf32>
    %cst_70 = arith.constant dense<0.000000e+00> : vector<16x32xf32>
    %374 = tpu.matmul %373, %28, %cst_70 {dimension_numbers = #tpu.dot_dimension_numbers<[1], [0], [0], [1], [0, 0, 1, 1], [], []>} : vector<16x32xf32>, vector<32x32xf32>, vector<16x32xf32> -> vector<16x32xf32>
    %375 = vector.broadcast %29 : vector<1x32xf32> to vector<16x32xf32>
    %376 = arith.addf %374, %375 : vector<16x32xf32>
    %377 = arith.addf %376, %172 : vector<16x32xf32>
    %cst_71 = arith.constant 0.000000e+00 : f32
    %378 = vector.broadcast %cst_71 : f32 to vector<16x32xf32>
    %379 = arith.maximumf %377, %378 : vector<16x32xf32>
    %cst_72 = arith.constant dense<0.000000e+00> : vector<16xf32>
    %380 = vector.multi_reduction <add>, %379, %cst_72 [1] : vector<16x32xf32> to vector<16xf32>
    %381 = vector.shape_cast %380 : vector<16xf32> to vector<16x1xf32>
    %cst_73 = arith.constant 3.200000e+01 : f32
    %382 = vector.broadcast %cst_73 : f32 to vector<16x1xf32>
    %383 = arith.divf %381, %382 : vector<16x1xf32>
    %384 = vector.broadcast %383 : vector<16x1xf32> to vector<16x32xf32>
    %385 = arith.subf %379, %384 : vector<16x32xf32>
    %386 = arith.mulf %385, %385 : vector<16x32xf32>
    %cst_74 = arith.constant dense<0.000000e+00> : vector<16xf32>
    %387 = vector.multi_reduction <add>, %386, %cst_74 [1] : vector<16x32xf32> to vector<16xf32>
    %388 = vector.shape_cast %387 : vector<16xf32> to vector<16x1xf32>
    %cst_75 = arith.constant 3.200000e+01 : f32
    %389 = vector.broadcast %cst_75 : f32 to vector<16x1xf32>
    %390 = arith.divf %388, %389 : vector<16x1xf32>
    %cst_76 = arith.constant 9.99999996E-13 : f32
    %391 = vector.broadcast %cst_76 : f32 to vector<16x1xf32>
    %392 = arith.addf %390, %391 : vector<16x1xf32>
    %393 = math.rsqrt %392 : vector<16x1xf32>
    %394 = vector.broadcast %393 : vector<16x1xf32> to vector<16x32xf32>
    %395 = arith.mulf %385, %394 : vector<16x32xf32>
    %396 = vector.broadcast %30 : vector<1x32xf32> to vector<16x32xf32>
    %397 = arith.mulf %396, %395 : vector<16x32xf32>
    %398 = vector.broadcast %31 : vector<1x32xf32> to vector<16x32xf32>
    %399 = arith.addf %397, %398 : vector<16x32xf32>
    %400 = vector.extract_strided_slice %399 {offsets = [0, 0], sizes = [1, 32], strides = [1, 1]} : vector<16x32xf32> to vector<1x32xf32>
    %401 = vector.extract_strided_slice %399 {offsets = [8, 0], sizes = [1, 32], strides = [1, 1]} : vector<16x32xf32> to vector<1x32xf32>
    %402 = vector.extract_strided_slice %399 {offsets = [1, 0], sizes = [1, 32], strides = [1, 1]} : vector<16x32xf32> to vector<1x32xf32>
    %403 = vector.extract_strided_slice %399 {offsets = [9, 0], sizes = [1, 32], strides = [1, 1]} : vector<16x32xf32> to vector<1x32xf32>
    %404 = vector.extract_strided_slice %399 {offsets = [2, 0], sizes = [1, 32], strides = [1, 1]} : vector<16x32xf32> to vector<1x32xf32>
    %405 = vector.extract_strided_slice %399 {offsets = [10, 0], sizes = [1, 32], strides = [1, 1]} : vector<16x32xf32> to vector<1x32xf32>
    %406 = vector.extract_strided_slice %399 {offsets = [3, 0], sizes = [1, 32], strides = [1, 1]} : vector<16x32xf32> to vector<1x32xf32>
    %407 = vector.extract_strided_slice %399 {offsets = [11, 0], sizes = [1, 32], strides = [1, 1]} : vector<16x32xf32> to vector<1x32xf32>
    %408 = vector.extract_strided_slice %399 {offsets = [4, 0], sizes = [1, 32], strides = [1, 1]} : vector<16x32xf32> to vector<1x32xf32>
    %409 = vector.extract_strided_slice %399 {offsets = [12, 0], sizes = [1, 32], strides = [1, 1]} : vector<16x32xf32> to vector<1x32xf32>
    %410 = vector.extract_strided_slice %399 {offsets = [5, 0], sizes = [1, 32], strides = [1, 1]} : vector<16x32xf32> to vector<1x32xf32>
    %411 = vector.extract_strided_slice %399 {offsets = [13, 0], sizes = [1, 32], strides = [1, 1]} : vector<16x32xf32> to vector<1x32xf32>
    %412 = vector.extract_strided_slice %399 {offsets = [6, 0], sizes = [1, 32], strides = [1, 1]} : vector<16x32xf32> to vector<1x32xf32>
    %413 = vector.extract_strided_slice %399 {offsets = [14, 0], sizes = [1, 32], strides = [1, 1]} : vector<16x32xf32> to vector<1x32xf32>
    %414 = vector.extract_strided_slice %399 {offsets = [7, 0], sizes = [1, 32], strides = [1, 1]} : vector<16x32xf32> to vector<1x32xf32>
    %415 = vector.extract_strided_slice %399 {offsets = [15, 0], sizes = [1, 32], strides = [1, 1]} : vector<16x32xf32> to vector<1x32xf32>
    %416 = tpu.concatenate %302, %400, %401, %402, %403, %404, %405, %406, %407, %408, %409, %410, %411, %412, %413, %414 in 0 : vector<2x32xf32>, vector<1x32xf32>, vector<1x32xf32>, vector<1x32xf32>, vector<1x32xf32>, vector<1x32xf32>, vector<1x32xf32>, vector<1x32xf32>, vector<1x32xf32>, vector<1x32xf32>, vector<1x32xf32>, vector<1x32xf32>, vector<1x32xf32>, vector<1x32xf32>, vector<1x32xf32>, vector<1x32xf32> -> vector<17x32xf32>
    %417 = tpu.concatenate %416, %415 in 0 : vector<17x32xf32>, vector<1x32xf32> -> vector<18x32xf32>
    %cst_77 = arith.constant dense<0.000000e+00> : vector<2x32xf32>
    %418 = tpu.matmul %302, %32, %cst_77 {dimension_numbers = #tpu.dot_dimension_numbers<[1], [0], [0], [1], [0, 0, 1, 1], [], []>} : vector<2x32xf32>, vector<32x32xf32>, vector<2x32xf32> -> vector<2x32xf32>
    %419 = vector.broadcast %33 : vector<1x32xf32> to vector<2x32xf32>
    %420 = arith.addf %418, %419 : vector<2x32xf32>
    %cst_78 = arith.constant dense<0.000000e+00> : vector<18x64xf32>
    %421 = tpu.matmul %417, %34, %cst_78 {dimension_numbers = #tpu.dot_dimension_numbers<[1], [0], [0], [1], [0, 0, 1, 1], [], []>} : vector<18x32xf32>, vector<32x64xf32>, vector<18x64xf32> -> vector<18x64xf32>
    %422 = vector.broadcast %35 : vector<1x64xf32> to vector<18x64xf32>
    %423 = arith.addf %421, %422 : vector<18x64xf32>
    %424 = vector.extract_strided_slice %423 {offsets = [0, 0], sizes = [18, 32], strides = [1, 1]} : vector<18x64xf32> to vector<18x32xf32>
    %425 = vector.extract_strided_slice %423 {offsets = [0, 32], sizes = [18, 32], strides = [1, 1]} : vector<18x64xf32> to vector<18x32xf32>
    %426 = tpu.concatenate %420, %420, %420, %420, %420, %420, %420, %420, %420 in 0 : vector<2x32xf32>, vector<2x32xf32>, vector<2x32xf32>, vector<2x32xf32>, vector<2x32xf32>, vector<2x32xf32>, vector<2x32xf32>, vector<2x32xf32>, vector<2x32xf32> -> vector<18x32xf32>
    %427 = arith.mulf %426, %424 : vector<18x32xf32>
    %cst_79 = arith.constant dense<0.000000e+00> : vector<18x4xf32>
    %428 = tpu.matmul %427, %11, %cst_79 {dimension_numbers = #tpu.dot_dimension_numbers<[1], [0], [0], [1], [0, 0, 1, 1], [], []>} : vector<18x32xf32>, vector<32x4xf32>, vector<18x4xf32> -> vector<18x4xf32>
    %cst_80 = arith.constant 0.353553385 : f32
    %429 = vector.broadcast %cst_80 : f32 to vector<18x4xf32>
    %430 = arith.mulf %428, %429 : vector<18x4xf32>
    %431 = vector.extract_strided_slice %430 {offsets = [0, 0], sizes = [2, 4], strides = [1, 1]} : vector<18x4xf32> to vector<2x4xf32>
    %432 = vector.extract_strided_slice %430 {offsets = [2, 0], sizes = [2, 4], strides = [1, 1]} : vector<18x4xf32> to vector<2x4xf32>
    %433 = vector.extract_strided_slice %430 {offsets = [4, 0], sizes = [2, 4], strides = [1, 1]} : vector<18x4xf32> to vector<2x4xf32>
    %434 = vector.extract_strided_slice %430 {offsets = [6, 0], sizes = [2, 4], strides = [1, 1]} : vector<18x4xf32> to vector<2x4xf32>
    %435 = vector.extract_strided_slice %430 {offsets = [8, 0], sizes = [2, 4], strides = [1, 1]} : vector<18x4xf32> to vector<2x4xf32>
    %436 = vector.extract_strided_slice %430 {offsets = [10, 0], sizes = [2, 4], strides = [1, 1]} : vector<18x4xf32> to vector<2x4xf32>
    %437 = vector.extract_strided_slice %430 {offsets = [12, 0], sizes = [2, 4], strides = [1, 1]} : vector<18x4xf32> to vector<2x4xf32>
    %438 = vector.extract_strided_slice %430 {offsets = [14, 0], sizes = [2, 4], strides = [1, 1]} : vector<18x4xf32> to vector<2x4xf32>
    %439 = vector.extract_strided_slice %430 {offsets = [16, 0], sizes = [2, 4], strides = [1, 1]} : vector<18x4xf32> to vector<2x4xf32>
    %440 = arith.maximumf %431, %432 : vector<2x4xf32>
    %441 = arith.maximumf %440, %433 : vector<2x4xf32>
    %442 = arith.maximumf %441, %434 : vector<2x4xf32>
    %443 = arith.maximumf %442, %435 : vector<2x4xf32>
    %444 = arith.maximumf %443, %436 : vector<2x4xf32>
    %445 = arith.maximumf %444, %437 : vector<2x4xf32>
    %446 = arith.maximumf %445, %438 : vector<2x4xf32>
    %447 = arith.maximumf %446, %439 : vector<2x4xf32>
    %448 = arith.subf %431, %447 : vector<2x4xf32>
    %449 = math.exp %448 : vector<2x4xf32>
    %450 = arith.subf %432, %447 : vector<2x4xf32>
    %451 = math.exp %450 : vector<2x4xf32>
    %452 = arith.subf %433, %447 : vector<2x4xf32>
    %453 = math.exp %452 : vector<2x4xf32>
    %454 = arith.subf %434, %447 : vector<2x4xf32>
    %455 = math.exp %454 : vector<2x4xf32>
    %456 = arith.subf %435, %447 : vector<2x4xf32>
    %457 = math.exp %456 : vector<2x4xf32>
    %458 = arith.subf %436, %447 : vector<2x4xf32>
    %459 = math.exp %458 : vector<2x4xf32>
    %460 = arith.subf %437, %447 : vector<2x4xf32>
    %461 = math.exp %460 : vector<2x4xf32>
    %462 = arith.subf %438, %447 : vector<2x4xf32>
    %463 = math.exp %462 : vector<2x4xf32>
    %464 = arith.subf %439, %447 : vector<2x4xf32>
    %465 = math.exp %464 : vector<2x4xf32>
    %466 = arith.addf %449, %451 : vector<2x4xf32>
    %467 = arith.addf %466, %453 : vector<2x4xf32>
    %468 = arith.addf %467, %455 : vector<2x4xf32>
    %469 = arith.addf %468, %457 : vector<2x4xf32>
    %470 = arith.addf %469, %459 : vector<2x4xf32>
    %471 = arith.addf %470, %461 : vector<2x4xf32>
    %472 = arith.addf %471, %463 : vector<2x4xf32>
    %473 = arith.addf %472, %465 : vector<2x4xf32>
    %474 = tpu.reciprocal %473 {approx = true} : vector<2x4xf32> -> vector<2x4xf32>
    %475 = arith.mulf %449, %474 : vector<2x4xf32>
    %476 = arith.mulf %451, %474 : vector<2x4xf32>
    %477 = arith.mulf %453, %474 : vector<2x4xf32>
    %478 = arith.mulf %455, %474 : vector<2x4xf32>
    %479 = arith.mulf %457, %474 : vector<2x4xf32>
    %480 = arith.mulf %459, %474 : vector<2x4xf32>
    %481 = arith.mulf %461, %474 : vector<2x4xf32>
    %482 = arith.mulf %463, %474 : vector<2x4xf32>
    %483 = arith.mulf %465, %474 : vector<2x4xf32>
    %484 = tpu.concatenate %475, %476, %477, %478, %479, %480, %481, %482, %483 in 0 : vector<2x4xf32>, vector<2x4xf32>, vector<2x4xf32>, vector<2x4xf32>, vector<2x4xf32>, vector<2x4xf32>, vector<2x4xf32>, vector<2x4xf32>, vector<2x4xf32> -> vector<18x4xf32>
    %cst_81 = arith.constant dense<0.000000e+00> : vector<18x32xf32>
    %485 = tpu.matmul %484, %23, %cst_81 {dimension_numbers = #tpu.dot_dimension_numbers<[1], [0], [0], [1], [0, 0, 1, 1], [], []>} : vector<18x4xf32>, vector<4x32xf32>, vector<18x32xf32> -> vector<18x32xf32>
    %486 = arith.mulf %485, %425 : vector<18x32xf32>
    %487 = vector.extract_strided_slice %486 {offsets = [0, 0], sizes = [2, 32], strides = [1, 1]} : vector<18x32xf32> to vector<2x32xf32>
    %488 = vector.extract_strided_slice %486 {offsets = [2, 0], sizes = [2, 32], strides = [1, 1]} : vector<18x32xf32> to vector<2x32xf32>
    %489 = arith.addf %487, %488 : vector<2x32xf32>
    %490 = vector.extract_strided_slice %486 {offsets = [4, 0], sizes = [2, 32], strides = [1, 1]} : vector<18x32xf32> to vector<2x32xf32>
    %491 = arith.addf %489, %490 : vector<2x32xf32>
    %492 = vector.extract_strided_slice %486 {offsets = [6, 0], sizes = [2, 32], strides = [1, 1]} : vector<18x32xf32> to vector<2x32xf32>
    %493 = arith.addf %491, %492 : vector<2x32xf32>
    %494 = vector.extract_strided_slice %486 {offsets = [8, 0], sizes = [2, 32], strides = [1, 1]} : vector<18x32xf32> to vector<2x32xf32>
    %495 = arith.addf %493, %494 : vector<2x32xf32>
    %496 = vector.extract_strided_slice %486 {offsets = [10, 0], sizes = [2, 32], strides = [1, 1]} : vector<18x32xf32> to vector<2x32xf32>
    %497 = arith.addf %495, %496 : vector<2x32xf32>
    %498 = vector.extract_strided_slice %486 {offsets = [12, 0], sizes = [2, 32], strides = [1, 1]} : vector<18x32xf32> to vector<2x32xf32>
    %499 = arith.addf %497, %498 : vector<2x32xf32>
    %500 = vector.extract_strided_slice %486 {offsets = [14, 0], sizes = [2, 32], strides = [1, 1]} : vector<18x32xf32> to vector<2x32xf32>
    %501 = arith.addf %499, %500 : vector<2x32xf32>
    %502 = vector.extract_strided_slice %486 {offsets = [16, 0], sizes = [2, 32], strides = [1, 1]} : vector<18x32xf32> to vector<2x32xf32>
    %503 = arith.addf %501, %502 : vector<2x32xf32>
    %cst_82 = arith.constant dense<0.000000e+00> : vector<2x32xf32>
    %504 = tpu.matmul %503, %36, %cst_82 {dimension_numbers = #tpu.dot_dimension_numbers<[1], [0], [0], [1], [0, 0, 1, 1], [], []>} : vector<2x32xf32>, vector<32x32xf32>, vector<2x32xf32> -> vector<2x32xf32>
    %505 = vector.broadcast %37 : vector<1x32xf32> to vector<2x32xf32>
    %506 = arith.addf %504, %505 : vector<2x32xf32>
    %507 = arith.addf %506, %302 : vector<2x32xf32>
    %cst_83 = arith.constant 0.000000e+00 : f32
    %508 = vector.broadcast %cst_83 : f32 to vector<2x32xf32>
    %509 = arith.maximumf %507, %508 : vector<2x32xf32>
    %cst_84 = arith.constant dense<0.000000e+00> : vector<2xf32>
    %510 = vector.multi_reduction <add>, %509, %cst_84 [1] : vector<2x32xf32> to vector<2xf32>
    %511 = vector.shape_cast %510 : vector<2xf32> to vector<2x1xf32>
    %cst_85 = arith.constant 3.200000e+01 : f32
    %512 = vector.broadcast %cst_85 : f32 to vector<2x1xf32>
    %513 = arith.divf %511, %512 : vector<2x1xf32>
    %514 = vector.broadcast %513 : vector<2x1xf32> to vector<2x32xf32>
    %515 = arith.subf %509, %514 : vector<2x32xf32>
    %516 = arith.mulf %515, %515 : vector<2x32xf32>
    %cst_86 = arith.constant dense<0.000000e+00> : vector<2xf32>
    %517 = vector.multi_reduction <add>, %516, %cst_86 [1] : vector<2x32xf32> to vector<2xf32>
    %518 = vector.shape_cast %517 : vector<2xf32> to vector<2x1xf32>
    %cst_87 = arith.constant 3.200000e+01 : f32
    %519 = vector.broadcast %cst_87 : f32 to vector<2x1xf32>
    %520 = arith.divf %518, %519 : vector<2x1xf32>
    %cst_88 = arith.constant 9.99999996E-13 : f32
    %521 = vector.broadcast %cst_88 : f32 to vector<2x1xf32>
    %522 = arith.addf %520, %521 : vector<2x1xf32>
    %523 = math.rsqrt %522 : vector<2x1xf32>
    %524 = vector.broadcast %523 : vector<2x1xf32> to vector<2x32xf32>
    %525 = arith.mulf %515, %524 : vector<2x32xf32>
    %526 = vector.broadcast %38 : vector<1x32xf32> to vector<2x32xf32>
    %527 = arith.mulf %526, %525 : vector<2x32xf32>
    %528 = vector.broadcast %39 : vector<1x32xf32> to vector<2x32xf32>
    %529 = arith.addf %527, %528 : vector<2x32xf32>
    %c0_89 = arith.constant 0 : index
    %c0_90 = arith.constant 0 : index
    %530 = vector.load %arg17[%c0_89, %c0_90] : memref<16x32xf32, #tpu.memory_space<vmem>>, vector<16x32xf32>
    tpu.vector_store %arg17[%c0_89, %c0_90], %399 {strides = array<i32>} : memref<16x32xf32, #tpu.memory_space<vmem>>, vector<16x32xf32>,
    %c0_91 = arith.constant 0 : index
    %c0_92 = arith.constant 0 : index
    %531 = vector.load %arg18[%c0_91, %c0_92] : memref<2x32xf32, #tpu.memory_space<vmem>>, vector<2x32xf32>
    tpu.vector_store %arg18[%c0_91, %c0_92], %529 {strides = array<i32>} : memref<2x32xf32, #tpu.memory_space<vmem>>, vector<2x32xf32>,
    return
  }
}

</mosaic_0001>

<llo_original>
// kernel: star_transformer_layer.1
$region0: #{star_transformer_layer.1}
  #allocation0 [shape = 'u32[]', space=smem, size = 0x4, offset = 0x4, fixed_abs, tag = 'smem constant byte address 0x4 - core index']
  #allocation1 [shape = 'u32[144,128]{1,0:T(1,128)}', space=vmem, size = 0x12000, scoped, tag = 'internal scratch']
  %s0 = inlined_call_operand.hbm [shape: f32[16,32], index: 0, kind: input, shape index: {}]
  %s1 = inlined_call_operand.hbm [shape: f32[32,32], index: 1, kind: input, shape index: {}]
  %s2 = inlined_call_operand.vmem [shape: f32[1,32], index: 2, kind: input, shape index: {}]
  %s3 = inlined_call_operand.hbm [shape: f32[32,64], index: 3, kind: input, shape index: {}]
  %s4 = inlined_call_operand.vmem [shape: f32[1,64], index: 4, kind: input, shape index: {}]
  %s5 = inlined_call_operand.hbm [shape: f32[32,32], index: 5, kind: input, shape index: {}]
  %s6 = inlined_call_operand.vmem [shape: f32[1,32], index: 6, kind: input, shape index: {}]
  %s7 = inlined_call_operand.vmem [shape: f32[1,32], index: 7, kind: input, shape index: {}]
  %s8 = inlined_call_operand.vmem [shape: f32[1,32], index: 8, kind: input, shape index: {}]
  %s9 = inlined_call_operand.hbm [shape: f32[32,32], index: 9, kind: input, shape index: {}]
  %s10 = inlined_call_operand.vmem [shape: f32[1,32], index: 10, kind: input, shape index: {}]
  %s11 = inlined_call_operand.hbm [shape: f32[32,64], index: 11, kind: input, shape index: {}]
  %s12 = inlined_call_operand.vmem [shape: f32[1,64], index: 12, kind: input, shape index: {}]
  %s13 = inlined_call_operand.hbm [shape: f32[32,32], index: 13, kind: input, shape index: {}]
  %s14 = inlined_call_operand.vmem [shape: f32[1,32], index: 14, kind: input, shape index: {}]
  %s15 = inlined_call_operand.vmem [shape: f32[1,32], index: 15, kind: input, shape index: {}]
  %s16 = inlined_call_operand.vmem [shape: f32[1,32], index: 16, kind: input, shape index: {}]
  %s17 = inlined_call_operand.hbm [shape: f32[16,32], index: 17, kind: output, shape index: {0}]
  %s18 = inlined_call_operand.hbm [shape: f32[2,32], index: 18, kind: output, shape index: {1}]
  %19 = xla_tuple %s17, %s18
  %s20 = sld [smem:[#allocation0]]
  $region114: #{star_transformer_layer.1} parent=0
    _
  %s22 = ssub.s32 1, %s20
  %s23 = scalar_select 0, %s22, %s20
  $region1: #{star_transformer_layer.1} parent=0
    #allocation2 [shape = 'u8[8192]{0}', space=vmem, size = 0x2000, scoped, tag = 'input window, operand 0, single buffered']
    #allocation3 [shape = 's32[1]{0}', space=sflag, size = 0x4, scoped, tag = 'scoped memory for star_transformer_layer.1']
    #allocation4 [shape = 's32[1]{0}', space=sflag, size = 0x4, scoped, tag = 'scoped memory for star_transformer_layer.1']
    #allocation5 [shape = 'u8[16384]{0}', space=vmem, size = 0x4000, scoped, tag = 'input window, operand 1, single buffered']
    #allocation6 [shape = 's32[1]{0}', space=sflag, size = 0x4, scoped, tag = 'scoped memory for star_transformer_layer.1']
    #allocation7 [shape = 'u8[16384]{0}', space=vmem, size = 0x4000, scoped, tag = 'input window, operand 3, single buffered']
    #allocation8 [shape = 'u8[16384]{0}', space=vmem, size = 0x4000, scoped, tag = 'input window, operand 5, single buffered']
    #allocation9 [shape = 's32[1]{0}', space=sflag, size = 0x4, scoped, tag = 'scoped memory for star_transformer_layer.1']
    #allocation10 [shape = 'u8[16384]{0}', space=vmem, size = 0x4000, scoped, tag = 'input window, operand 9, single buffered']
    #allocation11 [shape = 'u8[16384]{0}', space=vmem, size = 0x4000, scoped, tag = 'input window, operand 11, single buffered']
    #allocation12 [shape = 's32[1]{0}', space=sflag, size = 0x4, scoped, tag = 'scoped memory for star_transformer_layer.1']
    #allocation13 [shape = 'u8[16384]{0}', space=vmem, size = 0x4000, scoped, tag = 'input window, operand 13, single buffered']
    #allocation14 [shape = 'u8[8192]{0}', space=vmem, size = 0x2000, scoped, tag = 'output window, operand 0, single buffered']
    #allocation15 [shape = 'u8[1024]{0}', space=vmem, size = 0x400, scoped, tag = 'output window, operand 1, single buffered']
    #allocation16 [shape = 's32[1]{0}', space=sflag, size = 0x4, scoped, tag = 'scoped memory for star_transformer_layer.1']
    %24 = vsyncpa [#allocation3], 0
    %25 = vsyncpa [#allocation6], 0
    %26 = vsyncpa [#allocation9], 0
    %27 = vsyncpa [#allocation12], 0
    %28 = vsyncpa [#allocation4], 0
    %29 = vsyncpa [#allocation16], 0
    // Predicated region
    $region2: #{star_transformer_layer.1} parent=1 // pred_check
      _
    $region3: #{star_transformer_layer.1} parent=1 // pred_check_branch
      %31 = sbr.rel (0) target = $region5
    $region4: #{star_transformer_layer.1} parent=1 // pred_region
      %s33 = ssub.s32 256, 256
      %34 = vsyncadd [#allocation3], %s33
      %s35 = sshll.u32 [#allocation2], 4
      %s36 = int_to_ptr.vmem [resolvable:$true] %s35
      %41 = dma.hbm_to_vmem [thread:$0]  %s0, 256, %s36, [#allocation3], 128, 128, 8
    $region5: #{star_transformer_layer.1} parent=1 // pred_fallthru
      _
    // Predicated region
    $region6: #{star_transformer_layer.1} parent=1 // pred_check
      _
    $region7: #{star_transformer_layer.1} parent=1 // pred_check_branch
      %43 = sbr.rel (0) target = $region9
    $region8: #{star_transformer_layer.1} parent=1 // pred_region
      %s45 = ssub.s32 512, 512
      %46 = vsyncadd [#allocation6], %s45
      %s47 = sshll.u32 [#allocation5], 4
      %s48 = int_to_ptr.vmem [resolvable:$true] %s47
      %53 = dma.hbm_to_vmem [thread:$0]  %s1, 512, %s48, [#allocation6], 128, 128, 8
    $region9: #{star_transformer_layer.1} parent=1 // pred_fallthru
      _
    // Predicated region
    $region10: #{star_transformer_layer.1} parent=1 // pred_check
      _
    $region11: #{star_transformer_layer.1} parent=1 // pred_check_branch
      %55 = sbr.rel (0) target = $region13
    $region12: #{star_transformer_layer.1} parent=1 // pred_region
      _
    $region13: #{star_transformer_layer.1} parent=1 // pred_fallthru
      _
    // Predicated region
    $region14: #{star_transformer_layer.1} parent=1 // pred_check
      _
    $region15: #{star_transformer_layer.1} parent=1 // pred_check_branch
      %57 = sbr.rel (0) target = $region17
    $region16: #{star_transformer_layer.1} parent=1 // pred_region
      %s59 = ssub.s32 512, 512
      %60 = vsyncadd [#allocation6], %s59
      %s61 = sshll.u32 [#allocation7], 4
      %s62 = int_to_ptr.vmem [resolvable:$true] %s61
      %67 = dma.hbm_to_vmem [thread:$0]  %s3, 512, %s62, [#allocation6], 128, 128, 8
    $region17: #{star_transformer_layer.1} parent=1 // pred_fallthru
      _
    // Predicated region
    $region18: #{star_transformer_layer.1} parent=1 // pred_check
      _
    $region19: #{star_transformer_layer.1} parent=1 // pred_check_branch
      %69 = sbr.rel (0) target = $region21
    $region20: #{star_transformer_layer.1} parent=1 // pred_region
      _
    $region21: #{star_transformer_layer.1} parent=1 // pred_fallthru
      _
    // Predicated region
    $region22: #{star_transformer_layer.1} parent=1 // pred_check
      _
    $region23: #{star_transformer_layer.1} parent=1 // pred_check_branch
      %71 = sbr.rel (0) target = $region25
    $region24: #{star_transformer_layer.1} parent=1 // pred_region
      %s73 = ssub.s32 512, 512
      %74 = vsyncadd [#allocation9], %s73
      %s75 = sshll.u32 [#allocation8], 4
      %s76 = int_to_ptr.vmem [resolvable:$true] %s75
      %81 = dma.hbm_to_vmem [thread:$0]  %s5, 512, %s76, [#allocation9], 128, 128, 8
    $region25: #{star_transformer_layer.1} parent=1 // pred_fallthru
      _
    // Predicated region
    $region26: #{star_transformer_layer.1} parent=1 // pred_check
      _
    $region27: #{star_transformer_layer.1} parent=1 // pred_check_branch
      %83 = sbr.rel (0) target = $region29
    $region28: #{star_transformer_layer.1} parent=1 // pred_region
      _
    $region29: #{star_transformer_layer.1} parent=1 // pred_fallthru
      _
    // Predicated region
    $region30: #{star_transformer_layer.1} parent=1 // pred_check
      _
    $region31: #{star_transformer_layer.1} parent=1 // pred_check_branch
      %85 = sbr.rel (0) target = $region33
    $region32: #{star_transformer_layer.1} parent=1 // pred_region
      _
    $region33: #{star_transformer_layer.1} parent=1 // pred_fallthru
      _
    // Predicated region
    $region34: #{star_transformer_layer.1} parent=1 // pred_check
      _
    $region35: #{star_transformer_layer.1} parent=1 // pred_check_branch
      %87 = sbr.rel (0) target = $region37
    $region36: #{star_transformer_layer.1} parent=1 // pred_region
      _
    $region37: #{star_transformer_layer.1} parent=1 // pred_fallthru
      _
    // Predicated region
    $region38: #{star_transformer_layer.1} parent=1 // pred_check
      _
    $region39: #{star_transformer_layer.1} parent=1 // pred_check_branch
      %89 = sbr.rel (0) target = $region41
    $region40: #{star_transformer_layer.1} parent=1 // pred_region
      %s91 = ssub.s32 512, 512
      %92 = vsyncadd [#allocation9], %s91
      %s93 = sshll.u32 [#allocation10], 4
      %s94 = int_to_ptr.vmem [resolvable:$true] %s93
      %99 = dma.hbm_to_vmem [thread:$0]  %s9, 512, %s94, [#allocation9], 128, 128, 8
    $region41: #{star_transformer_layer.1} parent=1 // pred_fallthru
      _
    // Predicated region
    $region42: #{star_transformer_layer.1} parent=1 // pred_check
      _
    $region43: #{star_transformer_layer.1} parent=1 // pred_check_branch
      %101 = sbr.rel (0) target = $region45
    $region44: #{star_transformer_layer.1} parent=1 // pred_region
      _
    $region45: #{star_transformer_layer.1} parent=1 // pred_fallthru
      _
    // Predicated region
    $region46: #{star_transformer_layer.1} parent=1 // pred_check
      _
    $region47: #{star_transformer_layer.1} parent=1 // pred_check_branch
      %103 = sbr.rel (0) target = $region49
    $region48: #{star_transformer_layer.1} parent=1 // pred_region
      %s105 = ssub.s32 512, 512
      %106 = vsyncadd [#allocation12], %s105
      %s107 = sshll.u32 [#allocation11], 4
      %s108 = int_to_ptr.vmem [resolvable:$true] %s107
      %113 = dma.hbm_to_vmem [thread:$0]  %s11, 512, %s108, [#allocation12], 128, 128, 8
    $region49: #{star_transformer_layer.1} parent=1 // pred_fallthru
      _
    // Predicated region
    $region50: #{star_transformer_layer.1} parent=1 // pred_check
      _
    $region51: #{star_transformer_layer.1} parent=1 // pred_check_branch
      %115 = sbr.rel (0) target = $region53
    $region52: #{star_transformer_layer.1} parent=1 // pred_region
      _
    $region53: #{star_transformer_layer.1} parent=1 // pred_fallthru
      _
    // Predicated region
    $region54: #{star_transformer_layer.1} parent=1 // pred_check
      _
    $region55: #{star_transformer_layer.1} parent=1 // pred_check_branch
      %117 = sbr.rel (0) target = $region57
    $region56: #{star_transformer_layer.1} parent=1 // pred_region
      %s119 = ssub.s32 512, 512
      %120 = vsyncadd [#allocation12], %s119
      %s121 = sshll.u32 [#allocation13], 4
      %s122 = int_to_ptr.vmem [resolvable:$true] %s121
      %127 = dma.hbm_to_vmem [thread:$0]  %s13, 512, %s122, [#allocation12], 128, 128, 8
    $region57: #{star_transformer_layer.1} parent=1 // pred_fallthru
      _
    // Predicated region
    $region58: #{star_transformer_layer.1} parent=1 // pred_check
      _
    $region59: #{star_transformer_layer.1} parent=1 // pred_check_branch
      %129 = sbr.rel (0) target = $region61
    $region60: #{star_transformer_layer.1} parent=1 // pred_region
      _
    $region61: #{star_transformer_layer.1} parent=1 // pred_fallthru
      _
    // Predicated region
    $region62: #{star_transformer_layer.1} parent=1 // pred_check
      _
    $region63: #{star_transformer_layer.1} parent=1 // pred_check_branch
      %131 = sbr.rel (0) target = $region65
    $region64: #{star_transformer_layer.1} parent=1 // pred_region
      _
    $region65: #{star_transformer_layer.1} parent=1 // pred_fallthru
      _
    // Predicated region
    $region66: #{star_transformer_layer.1} parent=1 // pred_check
      _
    $region67: #{star_transformer_layer.1} parent=1 // pred_check_branch
      %133 = sbr.rel (0) target = $region69
    $region68: #{star_transformer_layer.1} parent=1 // pred_region
      _
    $region69: #{star_transformer_layer.1} parent=1 // pred_fallthru
      _
    // Predicated region
    $region70: #{star_transformer_layer.1} parent=1 // pred_check
      _
    $region71: #{star_transformer_layer.1} parent=1 // pred_check_branch
      %135 = sbr.rel (0) target = $region73
    $region72: #{star_transformer_layer.1} parent=1 // pred_region
      %136 = dma.done [#allocation3], 256
    $region73: #{star_transformer_layer.1} parent=1 // pred_fallthru
      _
    // Predicated region
    $region74: #{star_transformer_layer.1} parent=1 // pred_check
      _
    $region75: #{star_transformer_layer.1} parent=1 // pred_check_branch
      %138 = sbr.rel (0) target = $region77
    $region76: #{star_transformer_layer.1} parent=1 // pred_region
      %139 = dma.done [#allocation6], 512
    $region77: #{star_transformer_layer.1} parent=1 // pred_fallthru
      _
    // Predicated region
    $region78: #{star_transformer_layer.1} parent=1 // pred_check
      _
    $region79: #{star_transformer_layer.1} parent=1 // pred_check_branch
      %141 = sbr.rel (0) target = $region81
    $region80: #{star_transformer_layer.1} parent=1 // pred_region
      %142 = dma.done [#allocation6], 512
    $region81: #{star_transformer_layer.1} parent=1 // pred_fallthru
      _
    // Predicated region
    $region82: #{star_transformer_layer.1} parent=1 // pred_check
      _
    $region83: #{star_transformer_layer.1} parent=1 // pred_check_branch
      %144 = sbr.rel (0) target = $region85
    $region84: #{star_transformer_layer.1} parent=1 // pred_region
      %145 = dma.done [#allocation9], 512
    $region85: #{star_transformer_layer.1} parent=1 // pred_fallthru
      _
    // Predicated region
    $region86: #{star_transformer_layer.1} parent=1 // pred_check
      _
    $region87: #{star_transformer_layer.1} parent=1 // pred_check_branch
      %147 = sbr.rel (0) target = $region89
    $region88: #{star_transformer_layer.1} parent=1 // pred_region
      %148 = dma.done [#allocation9], 512
    $region89: #{star_transformer_layer.1} parent=1 // pred_fallthru
      _
    // Predicated region
    $region90: #{star_transformer_layer.1} parent=1 // pred_check
      _
    $region91: #{star_transformer_layer.1} parent=1 // pred_check_branch
      %150 = sbr.rel (0) target = $region93
    $region92: #{star_transformer_layer.1} parent=1 // pred_region
      %151 = dma.done [#allocation12], 512
    $region93: #{star_transformer_layer.1} parent=1 // pred_fallthru
      _
    // Predicated region
    $region94: #{star_transformer_layer.1} parent=1 // pred_check
      _
    $region95: #{star_transformer_layer.1} parent=1 // pred_check_branch
      %153 = sbr.rel (0) target = $region97
    $region96: #{star_transformer_layer.1} parent=1 // pred_region
      %154 = dma.done [#allocation12], 512
    $region97: #{star_transformer_layer.1} parent=1 // pred_fallthru
      _
    %v155 = vlaneseq
    %v156 = vshrl.u32 %v155, 7
    %v157 = vadd.s32 %v156, 8
    %v158 = vadd.s32 %v156, 16
    %v159 = vadd.s32 %v156, 24
    %v160 = vlaneseq
    %v161 = vand.u32 %v160, 127
    %v162 = vmul.u32 %v161, 8
    %vm163 = vcmp.ge.s32.totalorder %v156, %v162
    %vm164 = vcmp.ge.s32.totalorder %v157, %v162
    %vm165 = vcmp.ge.s32.totalorder %v158, %v162
    %vm166 = vcmp.ge.s32.totalorder %v159, %v162
    %v167 = vadd.s32 %v162, 8
    %vm168 = vcmp.lt.s32.totalorder %v156, %v167
    %vm169 = vcmp.lt.s32.totalorder %v157, %v167
    %vm170 = vcmp.lt.s32.totalorder %v158, %v167
    %vm171 = vcmp.lt.s32.totalorder %v159, %v167
    %vm172 = vmand %vm163, %vm168
    %vm173 = vmand %vm164, %vm169
    %vm174 = vmand %vm165, %vm170
    %vm175 = vmand %vm166, %vm171
    %v176 = vsel %vm172, 1.0, 0.0
    %v177 = vsel %vm173, 1.0, 0.0
    %v178 = vsel %vm174, 1.0, 0.0
    %v179 = vsel %vm175, 1.0, 0.0
    %v180 = vmul.u32 %v156, 8
    %vm181 = vcmp.ge.s32.totalorder %v161, %v180
    %v182 = vadd.s32 %v180, 8
    %vm183 = vcmp.lt.s32.totalorder %v161, %v182
    %vm184 = vmand %vm181, %vm183
    %v185 = vsel %vm184, 1.0, 0.0
    %v186 = vld [vmem:[#allocation5] sm:$0xff]
    %v187 = vld [vmem:[#allocation5 + $0x8] sm:$0xff]
    %v188 = vld [vmem:[#allocation5 + $0x10] sm:$0xff]
    %v189 = vld [vmem:[#allocation5 + $0x18] sm:$0xff]
    %v190 = vld [vmem:[%s2] sm:$0x1]
    %v191 = vld [vmem:[#allocation7] sm:$0xff]
    %v192 = vld [vmem:[#allocation7 + $0x8] sm:$0xff]
    %v193 = vld [vmem:[#allocation7 + $0x10] sm:$0xff]
    %v194 = vld [vmem:[#allocation7 + $0x18] sm:$0xff]
    %v195 = vld [vmem:[%s4] sm:$0x1]
    %v196 = vld [vmem:[#allocation8] sm:$0xff]
    %v197 = vld [vmem:[#allocation8 + $0x8] sm:$0xff]
    %v198 = vld [vmem:[#allocation8 + $0x10] sm:$0xff]
    %v199 = vld [vmem:[#allocation8 + $0x18] sm:$0xff]
    %v200 = vld [vmem:[%s6] sm:$0x1]
    %v201 = vld [vmem:[%s7] sm:$0x1]
    %v202 = vld [vmem:[%s8] sm:$0x1]
    %v203 = vld [vmem:[#allocation10] sm:$0xff]
    %v204 = vld [vmem:[#allocation10 + $0x8] sm:$0xff]
    %v205 = vld [vmem:[#allocation10 + $0x10] sm:$0xff]
    %v206 = vld [vmem:[#allocation10 + $0x18] sm:$0xff]
    %v207 = vld [vmem:[%s10] sm:$0x1]
    %v208 = vld [vmem:[#allocation11] sm:$0xff]
    %v209 = vld [vmem:[#allocation11 + $0x8] sm:$0xff]
    %v210 = vld [vmem:[#allocation11 + $0x10] sm:$0xff]
    %v211 = vld [vmem:[#allocation11 + $0x18] sm:$0xff]
    %v212 = vld [vmem:[%s12] sm:$0x1]
    %v213 = vld [vmem:[#allocation13] sm:$0xff]
    %v214 = vld [vmem:[#allocation13 + $0x8] sm:$0xff]
    %v215 = vld [vmem:[#allocation13 + $0x10] sm:$0xff]
    %v216 = vld [vmem:[#allocation13 + $0x18] sm:$0xff]
    %v217 = vld [vmem:[%s14] sm:$0x1]
    %v218 = vld [vmem:[%s15] sm:$0x1]
    %v219 = vld [vmem:[%s16] sm:$0x1]
    %v220 = vld [vmem:[#allocation2] sm:$0xff]
    %v221 = vld [vmem:[#allocation2 + $0x8] sm:$0xff]
    %v223 = vrot.slane %v220, 1
    %v225 = vadd.f32 %v220, %v223
    %v226 = vrot.slane %v220, 2
    %v228 = vadd.f32 %v225, %v226
    %v229 = vrot.slane %v220, 3
    %v231 = vadd.f32 %v228, %v229
    %v232 = vrot.slane %v220, 4
    %v234 = vadd.f32 %v231, %v232
    %v235 = vrot.slane %v220, 5
    %v237 = vadd.f32 %v234, %v235
    %v238 = vrot.slane %v220, 6
    %v240 = vadd.f32 %v237, %v238
    %v241 = vrot.slane %v220, 7
    %v243 = vadd.f32 %v240, %v241
    %v244 = vmul.f32 %v243, 0.125
    %v246 = vrot.slane %v221, 1
    %v248 = vadd.f32 %v221, %v246
    %v249 = vrot.slane %v221, 2
    %v251 = vadd.f32 %v248, %v249
    %v252 = vrot.slane %v221, 3
    %v254 = vadd.f32 %v251, %v252
    %v255 = vrot.slane %v221, 4
    %v257 = vadd.f32 %v254, %v255
    %v258 = vrot.slane %v221, 5
    %v260 = vadd.f32 %v257, %v258
    %v261 = vrot.slane %v221, 6
    %v263 = vadd.f32 %v260, %v261
    %v264 = vrot.slane %v221, 7
    %v266 = vadd.f32 %v263, %v264
    %v267 = vmul.f32 %v266, 0.125
    %v269 = vrot.slane %v267, 7
    %vm271 = vcmask 1040384
    %v272 = vsel %vm271, %v244, %v269
    %v273 = vlaneseq
    %v274 = vshrl.u32 %v273, 7
    %v275 = vsub.s32 0, %v274
    %v276 = vrot.slane %v220, %v275
    %v277 = vlaneseq
    %v278 = vshrl.u32 %v277, 7
    %v279 = vsub.s32 0, %v278
    %v280 = vrot.slane %v272, %v279
    %v281 = vlaneseq
    %v282 = vshrl.u32 %v281, 7
    %v283 = vsub.s32 0, %v282
    %v284 = vrot.slane %v221, %v283
    %v285 = vlaneseq
    %v286 = vshrl.u32 %v285, 7
    %v287 = vsub.s32 1, %v286
    %v288 = vrot.slane %v272, %v287
    %vm289 = vcmask 1046528
    %v290 = vsel %vm289, %v223, %v226
    %v291 = vsel %vm289, %v246, %v249
    %v293 = vlaneseq
    %v294 = vshrl.u32 %v293, 7
    %v295 = vsub.s32 0, %v294
    %v296 = vrot.slane %v190, %v295
    %vm298 = vcmask 261120
    %v299 = vsel %vm298, %v220, 0
    %v301 = vsel %vm298, %v221, 0
    %303 = vmatprep.subr.mxu0 0.0
    %304 = vmatpush1.msra.mxu0 0.0
    %305 = vmatprep.subr.mxu0 0.0
    %306 = vmatpush1.msra.mxu0 0.0
    %307 = vmatprep.subr.mxu0 0.0
    %308 = vmatpush1.msra.mxu0 0.0
    %309 = vmatprep.subr.mxu0 0.0
    %310 = vmatpush1.msra.mxu0 0.0
    %311 = vmatprep.subr.mxu0 0.0
    %312 = vmatpush1.msra.mxu0 0.0
    %313 = vmatprep.subr.mxu0 0.0
    %314 = vmatpush1.msra.mxu0 0.0
    %315 = vmatprep.subr.mxu0 0.0
    %316 = vmatpush1.msra.mxu0 0.0
    %317 = vmatprep.subr.mxu0 0.0
    %318 = vmatpush1.msra.mxu0 0.0
    %319 = vmatprep.subr.mxu0 0.0
    %320 = vmatpush1.msra.mxu0 0.0
    %321 = vmatprep.subr.mxu0 0.0
    %322 = vmatpush1.msra.mxu0 0.0
    %323 = vmatprep.subr.mxu0 0.0
    %324 = vmatpush1.msra.mxu0 0.0
    %325 = vmatprep.subr.mxu0 0.0
    %326 = vmatpush1.msra.mxu0 0.0
    %327 = vmatprep.subr.mxu0 0.0
    %328 = vmatpush1.msra.mxu0 %v189
    %329 = vmatprep.subr.mxu0 0.0
    %330 = vmatpush1.msra.mxu0 %v188
    %331 = vmatprep.subr.mxu0 0.0
    %332 = vmatpush1.msra.mxu0 %v187
    %333 = vmatprep.subr.mxu0 0.0
    %334 = vmatpush1.msra.mxu0 %v186
    %335 = vmatprep.subr.mxu0 0.0
    %336 = vmatpush2.msra.mxu0 0.0
    %337 = vmatprep.subr.mxu0 0.0
    %338 = vmatpush2.msra.mxu0 0.0
    %339 = vmatprep.subr.mxu0 0.0
    %340 = vmatpush2.msra.mxu0 0.0
    %341 = vmatprep.subr.mxu0 0.0
    %342 = vmatpush2.msra.mxu0 0.0
    %343 = vmatprep.subr.mxu0 0.0
    %344 = vmatpush2.msra.mxu0 0.0
    %345 = vmatprep.subr.mxu0 0.0
    %346 = vmatpush2.msra.mxu0 0.0
    %347 = vmatprep.subr.mxu0 0.0
    %348 = vmatpush2.msra.mxu0 0.0
    %349 = vmatprep.subr.mxu0 0.0
    %350 = vmatpush2.msra.mxu0 0.0
    %351 = vmatprep.subr.mxu0 0.0
    %352 = vmatpush2.msra.mxu0 0.0
    %353 = vmatprep.subr.mxu0 0.0
    %354 = vmatpush2.msra.mxu0 0.0
    %355 = vmatprep.subr.mxu0 0.0
    %356 = vmatpush2.msra.mxu0 0.0
    %357 = vmatprep.subr.mxu0 0.0
    %358 = vmatpush2.msra.mxu0 0.0
    %359 = vmatprep.subr.mxu0 0.0
    %360 = vmatpush2.msra.mxu0 0.0
    %361 = vmatprep.subr.mxu0 0.0
    %362 = vmatpush2.msra.mxu0 0.0
    %363 = vmatprep.subr.mxu0 0.0
    %364 = vmatpush2.msra.mxu0 0.0
    %365 = vmatprep.subr.mxu0 0.0
    %366 = vmatpush2.msra.mxu0 0.0
    %367 = vmatprep.mubr.f32.mxu0 0.0
    %368 = vmatmul.mubr.f32.gmra.mxu0 %v299
    %v369 = vpop.f32.mrf.mxu0
    %v370 = vadd.f32 %v296, %v369
    %v371 = vpop.f32.mrf.mxu0
    %372 = vmatprep.mubr.f32.mxu0 0.0
    %373 = vmatmul.mubr.f32.gmra.mxu0 %v301
    %v374 = vpop.f32.mrf.mxu0
    %v375 = vadd.f32 %v296, %v374
    %v376 = vpop.f32.mrf.mxu0
    %377 = vdwg.mxu0
    %v379 = vlaneseq
    %v380 = vshrl.u32 %v379, 7
    %v381 = vsub.s32 0, %v380
    %v382 = vrot.slane %v195, %v381
    %v385 = vsel %vm298, %v290, 0
    %v388 = vsel %vm298, %v291, 0
    %v391 = vsel %vm298, %v276, 0
    %v394 = vsel %vm298, %v284, 0
    %v397 = vsel %vm298, %v280, 0
    %v400 = vsel %vm298, %v288, 0
    %402 = vmatprep.subr.mxu0 0.0
    %403 = vmatpush1.msra.mxu0 0.0
    %404 = vmatprep.subr.mxu0 0.0
    %405 = vmatpush1.msra.mxu0 0.0
    %406 = vmatprep.subr.mxu0 0.0
    %407 = vmatpush1.msra.mxu0 0.0
    %408 = vmatprep.subr.mxu0 0.0
    %409 = vmatpush1.msra.mxu0 0.0
    %410 = vmatprep.subr.mxu0 0.0
    %411 = vmatpush1.msra.mxu0 0.0
    %412 = vmatprep.subr.mxu0 0.0
    %413 = vmatpush1.msra.mxu0 0.0
    %414 = vmatprep.subr.mxu0 0.0
    %415 = vmatpush1.msra.mxu0 0.0
    %416 = vmatprep.subr.mxu0 0.0
    %417 = vmatpush1.msra.mxu0 0.0
    %418 = vmatprep.subr.mxu0 0.0
    %419 = vmatpush1.msra.mxu0 0.0
    %420 = vmatprep.subr.mxu0 0.0
    %421 = vmatpush1.msra.mxu0 0.0
    %422 = vmatprep.subr.mxu0 0.0
    %423 = vmatpush1.msra.mxu0 0.0
    %424 = vmatprep.subr.mxu0 0.0
    %425 = vmatpush1.msra.mxu0 0.0
    %426 = vmatprep.subr.mxu0 0.0
    %427 = vmatpush1.msra.mxu0 %v194
    %428 = vmatprep.subr.mxu0 0.0
    %429 = vmatpush1.msra.mxu0 %v193
    %430 = vmatprep.subr.mxu0 0.0
    %431 = vmatpush1.msra.mxu0 %v192
    %432 = vmatprep.subr.mxu0 0.0
    %433 = vmatpush1.msra.mxu0 %v191
    %434 = vmatprep.subr.mxu0 0.0
    %435 = vmatpush2.msra.mxu0 0.0
    %436 = vmatprep.subr.mxu0 0.0
    %437 = vmatpush2.msra.mxu0 0.0
    %438 = vmatprep.subr.mxu0 0.0
    %439 = vmatpush2.msra.mxu0 0.0
    %440 = vmatprep.subr.mxu0 0.0
    %441 = vmatpush2.msra.mxu0 0.0
    %442 = vmatprep.subr.mxu0 0.0
    %443 = vmatpush2.msra.mxu0 0.0
    %444 = vmatprep.subr.mxu0 0.0
    %445 = vmatpush2.msra.mxu0 0.0
    %446 = vmatprep.subr.mxu0 0.0
    %447 = vmatpush2.msra.mxu0 0.0
    %448 = vmatprep.subr.mxu0 0.0
    %449 = vmatpush2.msra.mxu0 0.0
    %450 = vmatprep.subr.mxu0 0.0
    %451 = vmatpush2.msra.mxu0 0.0
    %452 = vmatprep.subr.mxu0 0.0
    %453 = vmatpush2.msra.mxu0 0.0
    %454 = vmatprep.subr.mxu0 0.0
    %455 = vmatpush2.msra.mxu0 0.0
    %456 = vmatprep.subr.mxu0 0.0
    %457 = vmatpush2.msra.mxu0 0.0
    %458 = vmatprep.subr.mxu0 0.0
    %459 = vmatpush2.msra.mxu0 0.0
    %460 = vmatprep.subr.mxu0 0.0
    %461 = vmatpush2.msra.mxu0 0.0
    %462 = vmatprep.subr.mxu0 0.0
    %463 = vmatpush2.msra.mxu0 0.0
    %464 = vmatprep.subr.mxu0 0.0
    %465 = vmatpush2.msra.mxu0 0.0
    %466 = vmatprep.mubr.f32.mxu0 0.0
    %467 = vmatmul.mubr.f32.gmra.mxu0 %v385
    %v468 = vpop.f32.mrf.mxu0
    %v469 = vadd.f32 %v382, %v468
    %v470 = vpop.f32.mrf.mxu0
    %471 = vmatprep.mubr.f32.mxu0 0.0
    %472 = vmatmul.mubr.f32.gmra.mxu0 %v388
    %v473 = vpop.f32.mrf.mxu0
    %v474 = vadd.f32 %v382, %v473
    %v475 = vpop.f32.mrf.mxu0
    %476 = vmatprep.mubr.f32.mxu0 0.0
    %477 = vmatmul.mubr.f32.gmra.mxu0 %v299
    %v478 = vpop.f32.mrf.mxu0
    %v479 = vadd.f32 %v382, %v478
    %v480 = vpop.f32.mrf.mxu0
    %481 = vmatprep.mubr.f32.mxu0 0.0
    %482 = vmatmul.mubr.f32.gmra.mxu0 %v301
    %v483 = vpop.f32.mrf.mxu0
    %v484 = vadd.f32 %v382, %v483
    %v485 = vpop.f32.mrf.mxu0
    %486 = vmatprep.mubr.f32.mxu0 0.0
    %487 = vmatmul.mubr.f32.gmra.mxu0 %v391
    %v488 = vpop.f32.mrf.mxu0
    %v489 = vadd.f32 %v382, %v488
    %v490 = vpop.f32.mrf.mxu0
    %491 = vmatprep.mubr.f32.mxu0 0.0
    %492 = vmatmul.mubr.f32.gmra.mxu0 %v394
    %v493 = vpop.f32.mrf.mxu0
    %v494 = vadd.f32 %v382, %v493
    %v495 = vpop.f32.mrf.mxu0
    %496 = vmatprep.mubr.f32.mxu0 0.0
    %497 = vmatmul.mubr.f32.gmra.mxu0 %v299
    %v498 = vpop.f32.mrf.mxu0
    %v499 = vadd.f32 %v382, %v498
    %v500 = vpop.f32.mrf.mxu0
    %501 = vmatprep.mubr.f32.mxu0 0.0
    %502 = vmatmul.mubr.f32.gmra.mxu0 %v301
    %v503 = vpop.f32.mrf.mxu0
    %v504 = vadd.f32 %v382, %v503
    %v505 = vpop.f32.mrf.mxu0
    %506 = vmatprep.mubr.f32.mxu0 0.0
    %507 = vmatmul.mubr.f32.gmra.mxu0 %v397
    %v508 = vpop.f32.mrf.mxu0
    %v509 = vadd.f32 %v382, %v508
    %v510 = vpop.f32.mrf.mxu0
    %511 = vmatprep.mubr.f32.mxu0 0.0
    %512 = vmatmul.mubr.f32.gmra.mxu0 %v400
    %v513 = vpop.f32.mrf.mxu0
    %v514 = vadd.f32 %v382, %v513
    %v515 = vpop.f32.mrf.mxu0
    %516 = vdwg.mxu0
    %v517 = vmul.f32 %v370, %v469
    %v518 = vmul.f32 %v375, %v474
    %v519 = vmul.f32 %v370, %v479
    %v520 = vmul.f32 %v375, %v484
    %v521 = vmul.f32 %v370, %v489
    %v522 = vmul.f32 %v375, %v494
    %v523 = vmul.f32 %v370, %v499
    %v524 = vmul.f32 %v375, %v504
    %v525 = vmul.f32 %v370, %v509
    %v526 = vmul.f32 %v375, %v514
    %v528 = vsel %vm298, %v517, 0
    %v531 = vsel %vm298, %v518, 0
    %v534 = vsel %vm298, %v519, 0
    %v537 = vsel %vm298, %v520, 0
    %v540 = vsel %vm298, %v521, 0
    %v543 = vsel %vm298, %v522, 0
    %v546 = vsel %vm298, %v523, 0
    %v549 = vsel %vm298, %v524, 0
    %v552 = vsel %vm298, %v525, 0
    %v555 = vsel %vm298, %v526, 0
    %557 = vmatprep.subr.mxu0 0.0
    %558 = vmatpush1.msra.mxu0 0.0
    %559 = vmatprep.subr.mxu0 0.0
    %560 = vmatpush1.msra.mxu0 0.0
    %561 = vmatprep.subr.mxu0 0.0
    %562 = vmatpush1.msra.mxu0 0.0
    %563 = vmatprep.subr.mxu0 0.0
    %564 = vmatpush1.msra.mxu0 0.0
    %565 = vmatprep.subr.mxu0 0.0
    %566 = vmatpush1.msra.mxu0 0.0
    %567 = vmatprep.subr.mxu0 0.0
    %568 = vmatpush1.msra.mxu0 0.0
    %569 = vmatprep.subr.mxu0 0.0
    %570 = vmatpush1.msra.mxu0 0.0
    %571 = vmatprep.subr.mxu0 0.0
    %572 = vmatpush1.msra.mxu0 0.0
    %573 = vmatprep.subr.mxu0 0.0
    %574 = vmatpush1.msra.mxu0 0.0
    %575 = vmatprep.subr.mxu0 0.0
    %576 = vmatpush1.msra.mxu0 0.0
    %577 = vmatprep.subr.mxu0 0.0
    %578 = vmatpush1.msra.mxu0 0.0
    %579 = vmatprep.subr.mxu0 0.0
    %580 = vmatpush1.msra.mxu0 0.0
    %581 = vmatprep.subr.mxu0 0.0
    %582 = vmatpush1.msra.mxu0 %v179
    %583 = vmatprep.subr.mxu0 0.0
    %584 = vmatpush1.msra.mxu0 %v178
    %585 = vmatprep.subr.mxu0 0.0
    %586 = vmatpush1.msra.mxu0 %v177
    %587 = vmatprep.subr.mxu0 0.0
    %588 = vmatpush1.msra.mxu0 %v176
    %589 = vmatprep.subr.mxu0 0.0
    %590 = vmatpush2.msra.mxu0 0.0
    %591 = vmatprep.subr.mxu0 0.0
    %592 = vmatpush2.msra.mxu0 0.0
    %593 = vmatprep.subr.mxu0 0.0
    %594 = vmatpush2.msra.mxu0 0.0
    %595 = vmatprep.subr.mxu0 0.0
    %596 = vmatpush2.msra.mxu0 0.0
    %597 = vmatprep.subr.mxu0 0.0
    %598 = vmatpush2.msra.mxu0 0.0
    %599 = vmatprep.subr.mxu0 0.0
    %600 = vmatpush2.msra.mxu0 0.0
    %601 = vmatprep.subr.mxu0 0.0
    %602 = vmatpush2.msra.mxu0 0.0
    %603 = vmatprep.subr.mxu0 0.0
    %604 = vmatpush2.msra.mxu0 0.0
    %605 = vmatprep.subr.mxu0 0.0
    %606 = vmatpush2.msra.mxu0 0.0
    %607 = vmatprep.subr.mxu0 0.0
    %608 = vmatpush2.msra.mxu0 0.0
    %609 = vmatprep.subr.mxu0 0.0
    %610 = vmatpush2.msra.mxu0 0.0
    %611 = vmatprep.subr.mxu0 0.0
    %612 = vmatpush2.msra.mxu0 0.0
    %613 = vmatprep.subr.mxu0 0.0
    %614 = vmatpush2.msra.mxu0 0.0
    %615 = vmatprep.subr.mxu0 0.0
    %616 = vmatpush2.msra.mxu0 0.0
    %617 = vmatprep.subr.mxu0 0.0
    %618 = vmatpush2.msra.mxu0 0.0
    %619 = vmatprep.subr.mxu0 0.0
    %620 = vmatpush2.msra.mxu0 0.0
    %621 = vmatprep.mubr.f32.mxu0 0.0
    %622 = vmatmul.mubr.f32.gmra.mxu0 %v528
    %v623 = vpop.f32.mrf.mxu0
    %v624 = vadd.f32 0.0, %v623
    %v625 = vpop.f32.mrf.mxu0
    %626 = vmatprep.mubr.f32.mxu0 0.0
    %627 = vmatmul.mubr.f32.gmra.mxu0 %v531
    %v628 = vpop.f32.mrf.mxu0
    %v629 = vadd.f32 0.0, %v628
    %v630 = vpop.f32.mrf.mxu0
    %631 = vmatprep.mubr.f32.mxu0 0.0
    %632 = vmatmul.mubr.f32.gmra.mxu0 %v534
    %v633 = vpop.f32.mrf.mxu0
    %v634 = vadd.f32 0.0, %v633
    %v635 = vpop.f32.mrf.mxu0
    %636 = vmatprep.mubr.f32.mxu0 0.0
    %637 = vmatmul.mubr.f32.gmra.mxu0 %v537
    %v638 = vpop.f32.mrf.mxu0
    %v639 = vadd.f32 0.0, %v638
    %v640 = vpop.f32.mrf.mxu0
    %641 = vmatprep.mubr.f32.mxu0 0.0
    %642 = vmatmul.mubr.f32.gmra.mxu0 %v540
    %v643 = vpop.f32.mrf.mxu0
    %v644 = vadd.f32 0.0, %v643
    %v645 = vpop.f32.mrf.mxu0
    %646 = vmatprep.mubr.f32.mxu0 0.0
    %647 = vmatmul.mubr.f32.gmra.mxu0 %v543
    %v648 = vpop.f32.mrf.mxu0
    %v649 = vadd.f32 0.0, %v648
    %v650 = vpop.f32.mrf.mxu0
    %651 = vmatprep.mubr.f32.mxu0 0.0
    %652 = vmatmul.mubr.f32.gmra.mxu0 %v546
    %v653 = vpop.f32.mrf.mxu0
    %v654 = vadd.f32 0.0, %v653
    %v655 = vpop.f32.mrf.mxu0
    %656 = vmatprep.mubr.f32.mxu0 0.0
    %657 = vmatmul.mubr.f32.gmra.mxu0 %v549
    %v658 = vpop.f32.mrf.mxu0
    %v659 = vadd.f32 0.0, %v658
    %v660 = vpop.f32.mrf.mxu0
    %661 = vmatprep.mubr.f32.mxu0 0.0
    %662 = vmatmul.mubr.f32.gmra.mxu0 %v552
    %v663 = vpop.f32.mrf.mxu0
    %v664 = vadd.f32 0.0, %v663
    %v665 = vpop.f32.mrf.mxu0
    %666 = vmatprep.mubr.f32.mxu0 0.0
    %667 = vmatmul.mubr.f32.gmra.mxu0 %v555
    %v668 = vpop.f32.mrf.mxu0
    %v669 = vadd.f32 0.0, %v668
    %v670 = vpop.f32.mrf.mxu0
    %671 = vdwg.mxu0
    %v672 = vmul.f32 %v624, 0.35355338
    %v673 = vmul.f32 %v629, 0.35355338
    %v674 = vmul.f32 %v634, 0.35355338
    %v675 = vmul.f32 %v639, 0.35355338
    %v676 = vmul.f32 %v644, 0.35355338
    %v677 = vmul.f32 %v649, 0.35355338
    %v678 = vmul.f32 %v654, 0.35355338
    %v679 = vmul.f32 %v659, 0.35355338
    %v680 = vmul.f32 %v664, 0.35355338
    %v681 = vmul.f32 %v669, 0.35355338
    %v682 = vmax.f32 %v672, %v674
    %v683 = vmax.f32 %v673, %v675
    %v684 = vmax.f32 %v682, %v676
    %v685 = vmax.f32 %v683, %v677
    %v686 = vmax.f32 %v684, %v678
    %v687 = vmax.f32 %v685, %v679
    %v688 = vmax.f32 %v686, %v680
    %v689 = vmax.f32 %v687, %v681
    %v690 = vsub.f32 %v672, %v688
    %v691 = vsub.f32 %v673, %v689
    %v692 = vmul.f32 %v690, 1.442695
    %v693 = vpow.pop %v692
    %v694 = vmul.f32 %v691, 1.442695
    %v695 = vpow.pop %v694
    %v696 = vsub.f32 %v674, %v688
    %v697 = vsub.f32 %v675, %v689
    %v698 = vmul.f32 %v696, 1.442695
    %v699 = vpow.pop %v698
    %v700 = vmul.f32 %v697, 1.442695
    %v701 = vpow.pop %v700
    %v702 = vsub.f32 %v676, %v688
    %v703 = vsub.f32 %v677, %v689
    %v704 = vmul.f32 %v702, 1.442695
    %v705 = vpow.pop %v704
    %v706 = vmul.f32 %v703, 1.442695
    %v707 = vpow.pop %v706
    %v708 = vsub.f32 %v678, %v688
    %v709 = vsub.f32 %v679, %v689
    %v710 = vmul.f32 %v708, 1.442695
    %v711 = vpow.pop %v710
    %v712 = vmul.f32 %v709, 1.442695
    %v713 = vpow.pop %v712
    %v714 = vsub.f32 %v680, %v688
    %v715 = vsub.f32 %v681, %v689
    %v716 = vmul.f32 %v714, 1.442695
    %v717 = vpow.pop %v716
    %v718 = vmul.f32 %v715, 1.442695
    %v719 = vpow.pop %v718
    %v720 = vadd.f32 %v693, %v699
    %v721 = vadd.f32 %v695, %v701
    %v722 = vadd.f32 %v720, %v705
    %v723 = vadd.f32 %v721, %v707
    %v724 = vadd.f32 %v722, %v711
    %v725 = vadd.f32 %v723, %v713
    %v726 = vadd.f32 %v724, %v717
    %v727 = vadd.f32 %v725, %v719
    %v728 = vrcp.pop %v726
    %v729 = vrcp.pop %v727
    %v730 = vmul.f32 %v693, %v728
    %v731 = vmul.f32 %v695, %v729
    %v732 = vmul.f32 %v699, %v728
    %v733 = vmul.f32 %v701, %v729
    %v734 = vmul.f32 %v705, %v728
    %v735 = vmul.f32 %v707, %v729
    %v736 = vmul.f32 %v711, %v728
    %v737 = vmul.f32 %v713, %v729
    %v738 = vmul.f32 %v717, %v728
    %v739 = vmul.f32 %v719, %v729
    %vm740 = vcmask 31744
    %v742 = vsel %vm740, %v730, 0
    %v745 = vsel %vm740, %v731, 0
    %v748 = vsel %vm740, %v732, 0
    %v751 = vsel %vm740, %v733, 0
    %v754 = vsel %vm740, %v734, 0
    %v757 = vsel %vm740, %v735, 0
    %v760 = vsel %vm740, %v736, 0
    %v763 = vsel %vm740, %v737, 0
    %v766 = vsel %vm740, %v738, 0
    %v769 = vsel %vm740, %v739, 0
    %vm771 = vcmask 1043456
    %v773 = vsel %vm771, %v185, 0
    %775 = vmatprep.subr.mxu0 0.0
    %776 = vmatpush1.msra.mxu0 0.0
    %777 = vmatprep.subr.mxu0 0.0
    %778 = vmatpush1.msra.mxu0 0.0
    %779 = vmatprep.subr.mxu0 0.0
    %780 = vmatpush1.msra.mxu0 0.0
    %781 = vmatprep.subr.mxu0 0.0
    %782 = vmatpush1.msra.mxu0 0.0
    %783 = vmatprep.subr.mxu0 0.0
    %784 = vmatpush1.msra.mxu0 0.0
    %785 = vmatprep.subr.mxu0 0.0
    %786 = vmatpush1.msra.mxu0 0.0
    %787 = vmatprep.subr.mxu0 0.0
    %788 = vmatpush1.msra.mxu0 0.0
    %789 = vmatprep.subr.mxu0 0.0
    %790 = vmatpush1.msra.mxu0 0.0
    %791 = vmatprep.subr.mxu0 0.0
    %792 = vmatpush1.msra.mxu0 0.0
    %793 = vmatprep.subr.mxu0 0.0
    %794 = vmatpush1.msra.mxu0 0.0
    %795 = vmatprep.subr.mxu0 0.0
    %796 = vmatpush1.msra.mxu0 0.0
    %797 = vmatprep.subr.mxu0 0.0
    %798 = vmatpush1.msra.mxu0 0.0
    %799 = vmatprep.subr.mxu0 0.0
    %800 = vmatpush1.msra.mxu0 0.0
    %801 = vmatprep.subr.mxu0 0.0
    %802 = vmatpush1.msra.mxu0 0.0
    %803 = vmatprep.subr.mxu0 0.0
    %804 = vmatpush1.msra.mxu0 0.0
    %805 = vmatprep.subr.mxu0 0.0
    %806 = vmatpush1.msra.mxu0 %v773
    %807 = vmatprep.subr.mxu0 0.0
    %808 = vmatpush2.msra.mxu0 0.0
    %809 = vmatprep.subr.mxu0 0.0
    %810 = vmatpush2.msra.mxu0 0.0
    %811 = vmatprep.subr.mxu0 0.0
    %812 = vmatpush2.msra.mxu0 0.0
    %813 = vmatprep.subr.mxu0 0.0
    %814 = vmatpush2.msra.mxu0 0.0
    %815 = vmatprep.subr.mxu0 0.0
    %816 = vmatpush2.msra.mxu0 0.0
    %817 = vmatprep.subr.mxu0 0.0
    %818 = vmatpush2.msra.mxu0 0.0
    %819 = vmatprep.subr.mxu0 0.0
    %820 = vmatpush2.msra.mxu0 0.0
    %821 = vmatprep.subr.mxu0 0.0
    %822 = vmatpush2.msra.mxu0 0.0
    %823 = vmatprep.subr.mxu0 0.0
    %824 = vmatpush2.msra.mxu0 0.0
    %825 = vmatprep.subr.mxu0 0.0
    %826 = vmatpush2.msra.mxu0 0.0
    %827 = vmatprep.subr.mxu0 0.0
    %828 = vmatpush2.msra.mxu0 0.0
    %829 = vmatprep.subr.mxu0 0.0
    %830 = vmatpush2.msra.mxu0 0.0
    %831 = vmatprep.subr.mxu0 0.0
    %832 = vmatpush2.msra.mxu0 0.0
    %833 = vmatprep.subr.mxu0 0.0
    %834 = vmatpush2.msra.mxu0 0.0
    %835 = vmatprep.subr.mxu0 0.0
    %836 = vmatpush2.msra.mxu0 0.0
    %837 = vmatprep.subr.mxu0 0.0
    %838 = vmatpush2.msra.mxu0 0.0
    %839 = vmatprep.mubr.f32.mxu0 0.0
    %840 = vmatmul.mubr.f32.gmra.mxu0 %v742
    %v841 = vpop.f32.mrf.mxu0
    %v842 = vadd.f32 0.0, %v841
    %v843 = vpop.f32.mrf.mxu0
    %844 = vmatprep.mubr.f32.mxu0 0.0
    %845 = vmatmul.mubr.f32.gmra.mxu0 %v745
    %v846 = vpop.f32.mrf.mxu0
    %v847 = vadd.f32 0.0, %v846
    %v848 = vpop.f32.mrf.mxu0
    %849 = vmatprep.mubr.f32.mxu0 0.0
    %850 = vmatmul.mubr.f32.gmra.mxu0 %v748
    %v851 = vpop.f32.mrf.mxu0
    %v852 = vadd.f32 0.0, %v851
    %v853 = vpop.f32.mrf.mxu0
    %854 = vmatprep.mubr.f32.mxu0 0.0
    %855 = vmatmul.mubr.f32.gmra.mxu0 %v751
    %v856 = vpop.f32.mrf.mxu0
    %v857 = vadd.f32 0.0, %v856
    %v858 = vpop.f32.mrf.mxu0
    %859 = vmatprep.mubr.f32.mxu0 0.0
    %860 = vmatmul.mubr.f32.gmra.mxu0 %v754
    %v861 = vpop.f32.mrf.mxu0
    %v862 = vadd.f32 0.0, %v861
    %v863 = vpop.f32.mrf.mxu0
    %864 = vmatprep.mubr.f32.mxu0 0.0
    %865 = vmatmul.mubr.f32.gmra.mxu0 %v757
    %v866 = vpop.f32.mrf.mxu0
    %v867 = vadd.f32 0.0, %v866
    %v868 = vpop.f32.mrf.mxu0
    %869 = vmatprep.mubr.f32.mxu0 0.0
    %870 = vmatmul.mubr.f32.gmra.mxu0 %v760
    %v871 = vpop.f32.mrf.mxu0
    %v872 = vadd.f32 0.0, %v871
    %v873 = vpop.f32.mrf.mxu0
    %874 = vmatprep.mubr.f32.mxu0 0.0
    %875 = vmatmul.mubr.f32.gmra.mxu0 %v763
    %v876 = vpop.f32.mrf.mxu0
    %v877 = vadd.f32 0.0, %v876
    %v878 = vpop.f32.mrf.mxu0
    %879 = vmatprep.mubr.f32.mxu0 0.0
    %880 = vmatmul.mubr.f32.gmra.mxu0 %v766
    %v881 = vpop.f32.mrf.mxu0
    %v882 = vadd.f32 0.0, %v881
    %v883 = vpop.f32.mrf.mxu0
    %884 = vmatprep.mubr.f32.mxu0 0.0
    %885 = vmatmul.mubr.f32.gmra.mxu0 %v769
    %v886 = vpop.f32.mrf.mxu0
    %v887 = vadd.f32 0.0, %v886
    %v888 = vpop.f32.mrf.mxu0
    %889 = vdwg.mxu0
    %900 = vrot.lane.b32.xlu0 %v469, 96
    %v901 = vpop.permute.xlu0 %900
    %902 = vrot.lane.b32.xlu0 %v474, 96
    %v903 = vpop.permute.xlu0 %902
    %904 = vrot.lane.b32.xlu0 %v479, 96
    %v905 = vpop.permute.xlu0 %904
    %906 = vrot.lane.b32.xlu0 %v484, 96
    %v907 = vpop.permute.xlu0 %906
    %908 = vrot.lane.b32.xlu0 %v489, 96
    %v909 = vpop.permute.xlu0 %908
    %910 = vrot.lane.b32.xlu0 %v494, 96
    %v911 = vpop.permute.xlu0 %910
    %912 = vrot.lane.b32.xlu0 %v499, 96
    %v913 = vpop.permute.xlu0 %912
    %914 = vrot.lane.b32.xlu0 %v504, 96
    %v915 = vpop.permute.xlu0 %914
    %916 = vrot.lane.b32.xlu0 %v509, 96
    %v917 = vpop.permute.xlu0 %916
    %918 = vrot.lane.b32.xlu0 %v514, 96
    %v919 = vpop.permute.xlu0 %918
    %v930 = vmul.f32 %v842, %v901
    %v931 = vmul.f32 %v847, %v903
    %v932 = vmul.f32 %v852, %v905
    %v933 = vmul.f32 %v857, %v907
    %v934 = vmul.f32 %v862, %v909
    %v935 = vmul.f32 %v867, %v911
    %v936 = vmul.f32 %v872, %v913
    %v937 = vmul.f32 %v877, %v915
    %v938 = vmul.f32 %v882, %v917
    %v939 = vmul.f32 %v887, %v919
    %v940 = vadd.f32 %v930, %v932
    %v941 = vadd.f32 %v931, %v933
    %v942 = vadd.f32 %v940, %v934
    %v943 = vadd.f32 %v941, %v935
    %v944 = vadd.f32 %v942, %v936
    %v945 = vadd.f32 %v943, %v937
    %v946 = vadd.f32 %v944, %v938
    %v947 = vadd.f32 %v945, %v939
    %v949 = vlaneseq
    %v950 = vshrl.u32 %v949, 7
    %v951 = vsub.s32 0, %v950
    %v952 = vrot.slane %v200, %v951
    %v955 = vsel %vm298, %v946, 0
    %v958 = vsel %vm298, %v947, 0
    %960 = vmatprep.subr.mxu0 0.0
    %961 = vmatpush1.msra.mxu0 0.0
    %962 = vmatprep.subr.mxu0 0.0
    %963 = vmatpush1.msra.mxu0 0.0
    %964 = vmatprep.subr.mxu0 0.0
    %965 = vmatpush1.msra.mxu0 0.0
    %966 = vmatprep.subr.mxu0 0.0
    %967 = vmatpush1.msra.mxu0 0.0
    %968 = vmatprep.subr.mxu0 0.0
    %969 = vmatpush1.msra.mxu0 0.0
    %970 = vmatprep.subr.mxu0 0.0
    %971 = vmatpush1.msra.mxu0 0.0
    %972 = vmatprep.subr.mxu0 0.0
    %973 = vmatpush1.msra.mxu0 0.0
    %974 = vmatprep.subr.mxu0 0.0
    %975 = vmatpush1.msra.mxu0 0.0
    %976 = vmatprep.subr.mxu0 0.0
    %977 = vmatpush1.msra.mxu0 0.0
    %978 = vmatprep.subr.mxu0 0.0
    %979 = vmatpush1.msra.mxu0 0.0
    %980 = vmatprep.subr.mxu0 0.0
    %981 = vmatpush1.msra.mxu0 0.0
    %982 = vmatprep.subr.mxu0 0.0
    %983 = vmatpush1.msra.mxu0 0.0
    %984 = vmatprep.subr.mxu0 0.0
    %985 = vmatpush1.msra.mxu0 %v199
    %986 = vmatprep.subr.mxu0 0.0
    %987 = vmatpush1.msra.mxu0 %v198
    %988 = vmatprep.subr.mxu0 0.0
    %989 = vmatpush1.msra.mxu0 %v197
    %990 = vmatprep.subr.mxu0 0.0
    %991 = vmatpush1.msra.mxu0 %v196
    %992 = vmatprep.subr.mxu0 0.0
    %993 = vmatpush2.msra.mxu0 0.0
    %994 = vmatprep.subr.mxu0 0.0
    %995 = vmatpush2.msra.mxu0 0.0
    %996 = vmatprep.subr.mxu0 0.0
    %997 = vmatpush2.msra.mxu0 0.0
    %998 = vmatprep.subr.mxu0 0.0
    %999 = vmatpush2.msra.mxu0 0.0
    %1000 = vmatprep.subr.mxu0 0.0
    %1001 = vmatpush2.msra.mxu0 0.0
    %1002 = vmatprep.subr.mxu0 0.0
    %1003 = vmatpush2.msra.mxu0 0.0
    %1004 = vmatprep.subr.mxu0 0.0
    %1005 = vmatpush2.msra.mxu0 0.0
    %1006 = vmatprep.subr.mxu0 0.0
    %1007 = vmatpush2.msra.mxu0 0.0
    %1008 = vmatprep.subr.mxu0 0.0
    %1009 = vmatpush2.msra.mxu0 0.0
    %1010 = vmatprep.subr.mxu0 0.0
    %1011 = vmatpush2.msra.mxu0 0.0
    %1012 = vmatprep.subr.mxu0 0.0
    %1013 = vmatpush2.msra.mxu0 0.0
    %1014 = vmatprep.subr.mxu0 0.0
    %1015 = vmatpush2.msra.mxu0 0.0
    %1016 = vmatprep.subr.mxu0 0.0
    %1017 = vmatpush2.msra.mxu0 0.0
    %1018 = vmatprep.subr.mxu0 0.0
    %1019 = vmatpush2.msra.mxu0 0.0
    %1020 = vmatprep.subr.mxu0 0.0
    %1021 = vmatpush2.msra.mxu0 0.0
    %1022 = vmatprep.subr.mxu0 0.0
    %1023 = vmatpush2.msra.mxu0 0.0
    %1024 = vmatprep.mubr.f32.mxu0 0.0
    %1025 = vmatmul.mubr.f32.gmra.mxu0 %v955
    %v1026 = vpop.f32.mrf.mxu0
    %v1027 = vadd.f32 %v952, %v1026
    %v1028 = vpop.f32.mrf.mxu0
    %1029 = vmatprep.mubr.f32.mxu0 0.0
    %1030 = vmatmul.mubr.f32.gmra.mxu0 %v958
    %v1031 = vpop.f32.mrf.mxu0
    %v1032 = vadd.f32 %v952, %v1031
    %v1033 = vpop.f32.mrf.mxu0
    %1034 = vdwg.mxu0
    %v1035 = vadd.f32 %v1027, %v220
    %v1036 = vadd.f32 %v1032, %v221
    %v1037 = vmax.f32 %v1035, 0.0
    %v1038 = vmax.f32 %v1036, 0.0
    %v1039 = vsel %vm298, %v1037, 0.0
    %1040 = vadd.xlane.f32.xlu0 %v1039
    %v1041 = vpop.xlane.xlu0 %1040
    %v1042 = vsel %vm298, %v1038, 0.0
    %1043 = vadd.xlane.f32.xlu0 %v1042
    %v1044 = vpop.xlane.xlu0 %1043
    %v1045 = vrcp.pop 32.0
    %v1046 = vmul.f32 %v1041, %v1045
    %v1047 = vmul.f32 %v1044, %v1045
    %v1048 = vsub.f32 %v1037, %v1046
    %v1049 = vsub.f32 %v1038, %v1047
    %v1050 = vmul.f32 %v1048, %v1048
    %v1051 = vmul.f32 %v1049, %v1049
    %v1052 = vsel %vm298, %v1050, 0.0
    %1053 = vadd.xlane.f32.xlu0 %v1052
    %v1054 = vpop.xlane.xlu0 %1053
    %v1055 = vsel %vm298, %v1051, 0.0
    %1056 = vadd.xlane.f32.xlu0 %v1055
    %v1057 = vpop.xlane.xlu0 %1056
    %v1058 = vmul.f32 %v1054, %v1045
    %v1059 = vmul.f32 %v1057, %v1045
    %v1060 = vadd.f32 %v1058, 1e-12
    %v1061 = vadd.f32 %v1059, 1e-12
    %v1062 = vrsqrt.pop %v1060
    %v1063 = vrsqrt.pop %v1061
    %v1064 = vmul.f32 %v1048, %v1062
    %v1065 = vmul.f32 %v1049, %v1063
    %v1067 = vlaneseq
    %v1068 = vshrl.u32 %v1067, 7
    %v1069 = vsub.s32 0, %v1068
    %v1070 = vrot.slane %v201, %v1069
    %v1072 = vmul.f32 %v1070, %v1064
    %v1073 = vmul.f32 %v1070, %v1065
    %v1075 = vlaneseq
    %v1076 = vshrl.u32 %v1075, 7
    %v1077 = vsub.s32 0, %v1076
    %v1078 = vrot.slane %v202, %v1077
    %v1080 = vadd.f32 %v1072, %v1078
    %v1081 = vadd.f32 %v1073, %v1078
    %v1083 = vrot.slane %v1080, 6
    %v1086 = vrot.slane %v1081, 5
    %v1088 = vrot.slane %v1080, 5
    %v1090 = vrot.slane %v1081, 4
    %v1092 = vrot.slane %v1080, 4
    %v1094 = vrot.slane %v1081, 3
    %v1096 = vrot.slane %v1080, 3
    %v1098 = vrot.slane %v1081, 2
    %v1100 = vrot.slane %v1080, 2
    %v1102 = vrot.slane %v1081, 1
    %v1104 = vrot.slane %v1080, 1
    %v1106 = vrot.slane %v1081, 7
    %v1108 = vrot.slane %v1080, 7
    %vm1110 = vcmask 1041408
    %v1111 = vsel %vm1110, %v272, %v1083
    %vm1112 = vcmask 1042432
    %v1113 = vsel %vm1112, %v1111, %v1086
    %v1114 = vsel %vm771, %v1113, %v1088
    %vm1115 = vcmask 1044480
    %v1116 = vsel %vm1115, %v1114, %v1090
    %vm1117 = vcmask 1045504
    %v1118 = vsel %vm1117, %v1116, %v1092
    %v1119 = vsel %vm289, %v1118, %v1094
    %v1120 = vsel %vm271, %v1096, %v1098
    %v1121 = vsel %vm1110, %v1120, %v1100
    %v1122 = vsel %vm1112, %v1121, %v1102
    %v1123 = vsel %vm771, %v1122, %v1104
    %v1124 = vsel %vm1115, %v1123, %v1081
    %v1125 = vsel %vm1117, %v1124, %v1080
    %v1126 = vsel %vm289, %v1125, %v1106
    %v1127 = vrot.slane %v1081, 6
    %v1129 = vsel %vm271, %v1108, %v1127
    %v1131 = vlaneseq
    %v1132 = vshrl.u32 %v1131, 7
    %v1133 = vsub.s32 0, %v1132
    %v1134 = vrot.slane %v207, %v1133
    %v1137 = vsel %vm298, %v272, 0
    %1139 = vmatprep.subr.mxu0 0.0
    %1140 = vmatpush1.msra.mxu0 0.0
    %1141 = vmatprep.subr.mxu0 0.0
    %1142 = vmatpush1.msra.mxu0 0.0
    %1143 = vmatprep.subr.mxu0 0.0
    %1144 = vmatpush1.msra.mxu0 0.0
    %1145 = vmatprep.subr.mxu0 0.0
    %1146 = vmatpush1.msra.mxu0 0.0
    %1147 = vmatprep.subr.mxu0 0.0
    %1148 = vmatpush1.msra.mxu0 0.0
    %1149 = vmatprep.subr.mxu0 0.0
    %1150 = vmatpush1.msra.mxu0 0.0
    %1151 = vmatprep.subr.mxu0 0.0
    %1152 = vmatpush1.msra.mxu0 0.0
    %1153 = vmatprep.subr.mxu0 0.0
    %1154 = vmatpush1.msra.mxu0 0.0
    %1155 = vmatprep.subr.mxu0 0.0
    %1156 = vmatpush1.msra.mxu0 0.0
    %1157 = vmatprep.subr.mxu0 0.0
    %1158 = vmatpush1.msra.mxu0 0.0
    %1159 = vmatprep.subr.mxu0 0.0
    %1160 = vmatpush1.msra.mxu0 0.0
    %1161 = vmatprep.subr.mxu0 0.0
    %1162 = vmatpush1.msra.mxu0 0.0
    %1163 = vmatprep.subr.mxu0 0.0
    %1164 = vmatpush1.msra.mxu0 %v206
    %1165 = vmatprep.subr.mxu0 0.0
    %1166 = vmatpush1.msra.mxu0 %v205
    %1167 = vmatprep.subr.mxu0 0.0
    %1168 = vmatpush1.msra.mxu0 %v204
    %1169 = vmatprep.subr.mxu0 0.0
    %1170 = vmatpush1.msra.mxu0 %v203
    %1171 = vmatprep.subr.mxu0 0.0
    %1172 = vmatpush2.msra.mxu0 0.0
    %1173 = vmatprep.subr.mxu0 0.0
    %1174 = vmatpush2.msra.mxu0 0.0
    %1175 = vmatprep.subr.mxu0 0.0
    %1176 = vmatpush2.msra.mxu0 0.0
    %1177 = vmatprep.subr.mxu0 0.0
    %1178 = vmatpush2.msra.mxu0 0.0
    %1179 = vmatprep.subr.mxu0 0.0
    %1180 = vmatpush2.msra.mxu0 0.0
    %1181 = vmatprep.subr.mxu0 0.0
    %1182 = vmatpush2.msra.mxu0 0.0
    %1183 = vmatprep.subr.mxu0 0.0
    %1184 = vmatpush2.msra.mxu0 0.0
    %1185 = vmatprep.subr.mxu0 0.0
    %1186 = vmatpush2.msra.mxu0 0.0
    %1187 = vmatprep.subr.mxu0 0.0
    %1188 = vmatpush2.msra.mxu0 0.0
    %1189 = vmatprep.subr.mxu0 0.0
    %1190 = vmatpush2.msra.mxu0 0.0
    %1191 = vmatprep.subr.mxu0 0.0
    %1192 = vmatpush2.msra.mxu0 0.0
    %1193 = vmatprep.subr.mxu0 0.0
    %1194 = vmatpush2.msra.mxu0 0.0
    %1195 = vmatprep.subr.mxu0 0.0
    %1196 = vmatpush2.msra.mxu0 0.0
    %1197 = vmatprep.subr.mxu0 0.0
    %1198 = vmatpush2.msra.mxu0 0.0
    %1199 = vmatprep.subr.mxu0 0.0
    %1200 = vmatpush2.msra.mxu0 0.0
    %1201 = vmatprep.subr.mxu0 0.0
    %1202 = vmatpush2.msra.mxu0 0.0
    %1203 = vmatprep.mubr.f32.mxu0 0.0
    %1204 = vmatmul.mubr.f32.gmra.mxu0 %v1137
    %v1205 = vpop.f32.mrf.mxu0
    %v1206 = vadd.f32 %v1134, %v1205
    %v1207 = vpop.f32.mrf.mxu0
    %1208 = vdwg.mxu0
    %v1210 = vlaneseq
    %v1211 = vshrl.u32 %v1210, 7
    %v1212 = vsub.s32 0, %v1211
    %v1213 = vrot.slane %v212, %v1212
    %v1216 = vsel %vm298, %v1119, 0
    %v1219 = vsel %vm298, %v1126, 0
    %v1222 = vsel %vm298, %v1129, 0
    %1224 = vmatprep.subr.mxu0 0.0
    %1225 = vmatpush1.msra.mxu0 0.0
    %1226 = vmatprep.subr.mxu0 0.0
    %1227 = vmatpush1.msra.mxu0 0.0
    %1228 = vmatprep.subr.mxu0 0.0
    %1229 = vmatpush1.msra.mxu0 0.0
    %1230 = vmatprep.subr.mxu0 0.0
    %1231 = vmatpush1.msra.mxu0 0.0
    %1232 = vmatprep.subr.mxu0 0.0
    %1233 = vmatpush1.msra.mxu0 0.0
    %1234 = vmatprep.subr.mxu0 0.0
    %1235 = vmatpush1.msra.mxu0 0.0
    %1236 = vmatprep.subr.mxu0 0.0
    %1237 = vmatpush1.msra.mxu0 0.0
    %1238 = vmatprep.subr.mxu0 0.0
    %1239 = vmatpush1.msra.mxu0 0.0
    %1240 = vmatprep.subr.mxu0 0.0
    %1241 = vmatpush1.msra.mxu0 0.0
    %1242 = vmatprep.subr.mxu0 0.0
    %1243 = vmatpush1.msra.mxu0 0.0
    %1244 = vmatprep.subr.mxu0 0.0
    %1245 = vmatpush1.msra.mxu0 0.0
    %1246 = vmatprep.subr.mxu0 0.0
    %1247 = vmatpush1.msra.mxu0 0.0
    %1248 = vmatprep.subr.mxu0 0.0
    %1249 = vmatpush1.msra.mxu0 %v211
    %1250 = vmatprep.subr.mxu0 0.0
    %1251 = vmatpush1.msra.mxu0 %v210
    %1252 = vmatprep.subr.mxu0 0.0
    %1253 = vmatpush1.msra.mxu0 %v209
    %1254 = vmatprep.subr.mxu0 0.0
    %1255 = vmatpush1.msra.mxu0 %v208
    %1256 = vmatprep.subr.mxu0 0.0
    %1257 = vmatpush2.msra.mxu0 0.0
    %1258 = vmatprep.subr.mxu0 0.0
    %1259 = vmatpush2.msra.mxu0 0.0
    %1260 = vmatprep.subr.mxu0 0.0
    %1261 = vmatpush2.msra.mxu0 0.0
    %1262 = vmatprep.subr.mxu0 0.0
    %1263 = vmatpush2.msra.mxu0 0.0
    %1264 = vmatprep.subr.mxu0 0.0
    %1265 = vmatpush2.msra.mxu0 0.0
    %1266 = vmatprep.subr.mxu0 0.0
    %1267 = vmatpush2.msra.mxu0 0.0
    %1268 = vmatprep.subr.mxu0 0.0
    %1269 = vmatpush2.msra.mxu0 0.0
    %1270 = vmatprep.subr.mxu0 0.0
    %1271 = vmatpush2.msra.mxu0 0.0
    %1272 = vmatprep.subr.mxu0 0.0
    %1273 = vmatpush2.msra.mxu0 0.0
    %1274 = vmatprep.subr.mxu0 0.0
    %1275 = vmatpush2.msra.mxu0 0.0
    %1276 = vmatprep.subr.mxu0 0.0
    %1277 = vmatpush2.msra.mxu0 0.0
    %1278 = vmatprep.subr.mxu0 0.0
    %1279 = vmatpush2.msra.mxu0 0.0
    %1280 = vmatprep.subr.mxu0 0.0
    %1281 = vmatpush2.msra.mxu0 0.0
    %1282 = vmatprep.subr.mxu0 0.0
    %1283 = vmatpush2.msra.mxu0 0.0
    %1284 = vmatprep.subr.mxu0 0.0
    %1285 = vmatpush2.msra.mxu0 0.0
    %1286 = vmatprep.subr.mxu0 0.0
    %1287 = vmatpush2.msra.mxu0 0.0
    %1288 = vmatprep.mubr.f32.mxu0 0.0
    %1289 = vmatmul.mubr.f32.gmra.mxu0 %v1216
    %v1290 = vpop.f32.mrf.mxu0
    %v1291 = vadd.f32 %v1213, %v1290
    %v1292 = vpop.f32.mrf.mxu0
    %1293 = vmatprep.mubr.f32.mxu0 0.0
    %1294 = vmatmul.mubr.f32.gmra.mxu0 %v1219
    %v1295 = vpop.f32.mrf.mxu0
    %v1296 = vadd.f32 %v1213, %v1295
    %v1297 = vpop.f32.mrf.mxu0
    %1298 = vmatprep.mubr.f32.mxu0 0.0
    %1299 = vmatmul.mubr.f32.gmra.mxu0 %v1222
    %v1300 = vpop.f32.mrf.mxu0
    %v1301 = vadd.f32 %v1213, %v1300
    %v1302 = vpop.f32.mrf.mxu0
    %1303 = vdwg.mxu0
    %v1305 = vrot.slane %v1206, 6
    %v1307 = vrot.slane %v1206, 4
    %v1309 = vrot.slane %v1206, 2
    %v1311 = vsel %vm1110, %v1206, %v1305
    %v1312 = vsel %vm771, %v1311, %v1307
    %v1313 = vsel %vm1117, %v1312, %v1309
    %v1314 = vmul.f32 %v1313, %v1291
    %v1315 = vmul.f32 %v1313, %v1296
    %v1316 = vmul.f32 %v1206, %v1301
    %v1318 = vsel %vm298, %v1314, 0
    %v1321 = vsel %vm298, %v1315, 0
    %v1324 = vsel %vm298, %v1316, 0
    %1326 = vmatprep.subr.mxu0 0.0
    %1327 = vmatpush1.msra.mxu0 0.0
    %1328 = vmatprep.subr.mxu0 0.0
    %1329 = vmatpush1.msra.mxu0 0.0
    %1330 = vmatprep.subr.mxu0 0.0
    %1331 = vmatpush1.msra.mxu0 0.0
    %1332 = vmatprep.subr.mxu0 0.0
    %1333 = vmatpush1.msra.mxu0 0.0
    %1334 = vmatprep.subr.mxu0 0.0
    %1335 = vmatpush1.msra.mxu0 0.0
    %1336 = vmatprep.subr.mxu0 0.0
    %1337 = vmatpush1.msra.mxu0 0.0
    %1338 = vmatprep.subr.mxu0 0.0
    %1339 = vmatpush1.msra.mxu0 0.0
    %1340 = vmatprep.subr.mxu0 0.0
    %1341 = vmatpush1.msra.mxu0 0.0
    %1342 = vmatprep.subr.mxu0 0.0
    %1343 = vmatpush1.msra.mxu0 0.0
    %1344 = vmatprep.subr.mxu0 0.0
    %1345 = vmatpush1.msra.mxu0 0.0
    %1346 = vmatprep.subr.mxu0 0.0
    %1347 = vmatpush1.msra.mxu0 0.0
    %1348 = vmatprep.subr.mxu0 0.0
    %1349 = vmatpush1.msra.mxu0 0.0
    %1350 = vmatprep.subr.mxu0 0.0
    %1351 = vmatpush1.msra.mxu0 %v179
    %1352 = vmatprep.subr.mxu0 0.0
    %1353 = vmatpush1.msra.mxu0 %v178
    %1354 = vmatprep.subr.mxu0 0.0
    %1355 = vmatpush1.msra.mxu0 %v177
    %1356 = vmatprep.subr.mxu0 0.0
    %1357 = vmatpush1.msra.mxu0 %v176
    %1358 = vmatprep.subr.mxu0 0.0
    %1359 = vmatpush2.msra.mxu0 0.0
    %1360 = vmatprep.subr.mxu0 0.0
    %1361 = vmatpush2.msra.mxu0 0.0
    %1362 = vmatprep.subr.mxu0 0.0
    %1363 = vmatpush2.msra.mxu0 0.0
    %1364 = vmatprep.subr.mxu0 0.0
    %1365 = vmatpush2.msra.mxu0 0.0
    %1366 = vmatprep.subr.mxu0 0.0
    %1367 = vmatpush2.msra.mxu0 0.0
    %1368 = vmatprep.subr.mxu0 0.0
    %1369 = vmatpush2.msra.mxu0 0.0
    %1370 = vmatprep.subr.mxu0 0.0
    %1371 = vmatpush2.msra.mxu0 0.0
    %1372 = vmatprep.subr.mxu0 0.0
    %1373 = vmatpush2.msra.mxu0 0.0
    %1374 = vmatprep.subr.mxu0 0.0
    %1375 = vmatpush2.msra.mxu0 0.0
    %1376 = vmatprep.subr.mxu0 0.0
    %1377 = vmatpush2.msra.mxu0 0.0
    %1378 = vmatprep.subr.mxu0 0.0
    %1379 = vmatpush2.msra.mxu0 0.0
    %1380 = vmatprep.subr.mxu0 0.0
    %1381 = vmatpush2.msra.mxu0 0.0
    %1382 = vmatprep.subr.mxu0 0.0
    %1383 = vmatpush2.msra.mxu0 0.0
    %1384 = vmatprep.subr.mxu0 0.0
    %1385 = vmatpush2.msra.mxu0 0.0
    %1386 = vmatprep.subr.mxu0 0.0
    %1387 = vmatpush2.msra.mxu0 0.0
    %1388 = vmatprep.subr.mxu0 0.0
    %1389 = vmatpush2.msra.mxu0 0.0
    %1390 = vmatprep.mubr.f32.mxu0 0.0
    %1391 = vmatmul.mubr.f32.gmra.mxu0 %v1318
    %v1392 = vpop.f32.mrf.mxu0
    %v1393 = vadd.f32 0.0, %v1392
    %v1394 = vpop.f32.mrf.mxu0
    %1395 = vmatprep.mubr.f32.mxu0 0.0
    %1396 = vmatmul.mubr.f32.gmra.mxu0 %v1321
    %v1397 = vpop.f32.mrf.mxu0
    %v1398 = vadd.f32 0.0, %v1397
    %v1399 = vpop.f32.mrf.mxu0
    %1400 = vmatprep.mubr.f32.mxu0 0.0
    %1401 = vmatmul.mubr.f32.gmra.mxu0 %v1324
    %v1402 = vpop.f32.mrf.mxu0
    %v1403 = vadd.f32 0.0, %v1402
    %v1404 = vpop.f32.mrf.mxu0
    %1405 = vdwg.mxu0
    %v1406 = vmul.f32 %v1393, 0.35355338
    %v1407 = vmul.f32 %v1398, 0.35355338
    %v1408 = vmul.f32 %v1403, 0.35355338
    %v1410 = vrot.slane %v1406, 2
    %v1412 = vmax.f32 %v1406, %v1410
    %v1413 = vrot.slane %v1406, 4
    %v1415 = vmax.f32 %v1412, %v1413
    %v1416 = vrot.slane %v1406, 6
    %v1418 = vmax.f32 %v1415, %v1416
    %v1419 = vmax.f32 %v1418, %v1407
    %v1421 = vrot.slane %v1407, 2
    %v1423 = vmax.f32 %v1419, %v1421
    %v1424 = vrot.slane %v1407, 4
    %v1426 = vmax.f32 %v1423, %v1424
    %v1427 = vrot.slane %v1407, 6
    %v1429 = vmax.f32 %v1426, %v1427
    %v1430 = vmax.f32 %v1429, %v1408
    %v1431 = vsub.f32 %v1406, %v1430
    %v1432 = vmul.f32 %v1431, 1.442695
    %v1433 = vpow.pop %v1432
    %v1435 = vrot.slane %v1430, 6
    %v1437 = vsub.f32 %v1406, %v1435
    %v1438 = vmul.f32 %v1437, 1.442695
    %v1439 = vpow.pop %v1438
    %v1440 = vrot.slane %v1430, 4
    %v1442 = vsub.f32 %v1406, %v1440
    %v1443 = vmul.f32 %v1442, 1.442695
    %v1444 = vpow.pop %v1443
    %v1445 = vrot.slane %v1430, 2
    %v1447 = vsub.f32 %v1406, %v1445
    %v1448 = vmul.f32 %v1447, 1.442695
    %v1449 = vpow.pop %v1448
    %v1450 = vsub.f32 %v1407, %v1430
    %v1451 = vmul.f32 %v1450, 1.442695
    %v1452 = vpow.pop %v1451
    %v1453 = vsub.f32 %v1407, %v1435
    %v1454 = vmul.f32 %v1453, 1.442695
    %v1455 = vpow.pop %v1454
    %v1456 = vsub.f32 %v1407, %v1440
    %v1457 = vmul.f32 %v1456, 1.442695
    %v1458 = vpow.pop %v1457
    %v1459 = vsub.f32 %v1407, %v1445
    %v1460 = vmul.f32 %v1459, 1.442695
    %v1461 = vpow.pop %v1460
    %v1462 = vsub.f32 %v1408, %v1430
    %v1463 = vmul.f32 %v1462, 1.442695
    %v1464 = vpow.pop %v1463
    %v1466 = vrot.slane %v1439, 2
    %v1468 = vadd.f32 %v1433, %v1466
    %v1470 = vrot.slane %v1444, 4
    %v1472 = vadd.f32 %v1468, %v1470
    %v1474 = vrot.slane %v1449, 6
    %v1476 = vadd.f32 %v1472, %v1474
    %v1477 = vadd.f32 %v1476, %v1452
    %v1479 = vrot.slane %v1455, 2
    %v1481 = vadd.f32 %v1477, %v1479
    %v1483 = vrot.slane %v1458, 4
    %v1485 = vadd.f32 %v1481, %v1483
    %v1487 = vrot.slane %v1461, 6
    %v1489 = vadd.f32 %v1485, %v1487
    %v1490 = vadd.f32 %v1489, %v1464
    %v1491 = vrcp.pop %v1490
    %v1492 = vmul.f32 %v1433, %v1491
    %v1494 = vrot.slane %v1491, 6
    %v1496 = vmul.f32 %v1439, %v1494
    %v1497 = vrot.slane %v1491, 4
    %v1499 = vmul.f32 %v1444, %v1497
    %v1500 = vrot.slane %v1491, 2
    %v1502 = vmul.f32 %v1449, %v1500
    %v1503 = vmul.f32 %v1452, %v1491
    %v1504 = vmul.f32 %v1455, %v1494
    %v1505 = vmul.f32 %v1458, %v1497
    %v1506 = vmul.f32 %v1461, %v1500
    %v1507 = vmul.f32 %v1464, %v1491
    %v1508 = vsel %vm1110, %v1492, %v1496
    %v1509 = vsel %vm771, %v1508, %v1499
    %v1510 = vsel %vm1117, %v1509, %v1502
    %v1511 = vsel %vm1110, %v1503, %v1504
    %v1512 = vsel %vm771, %v1511, %v1505
    %v1513 = vsel %vm1117, %v1512, %v1506
    %v1515 = vsel %vm740, %v1510, 0
    %v1518 = vsel %vm740, %v1513, 0
    %v1521 = vsel %vm740, %v1507, 0
    %1523 = vmatprep.subr.mxu0 0.0
    %1524 = vmatpush1.msra.mxu0 0.0
    %1525 = vmatprep.subr.mxu0 0.0
    %1526 = vmatpush1.msra.mxu0 0.0
    %1527 = vmatprep.subr.mxu0 0.0
    %1528 = vmatpush1.msra.mxu0 0.0
    %1529 = vmatprep.subr.mxu0 0.0
    %1530 = vmatpush1.msra.mxu0 0.0
    %1531 = vmatprep.subr.mxu0 0.0
    %1532 = vmatpush1.msra.mxu0 0.0
    %1533 = vmatprep.subr.mxu0 0.0
    %1534 = vmatpush1.msra.mxu0 0.0
    %1535 = vmatprep.subr.mxu0 0.0
    %1536 = vmatpush1.msra.mxu0 0.0
    %1537 = vmatprep.subr.mxu0 0.0
    %1538 = vmatpush1.msra.mxu0 0.0
    %1539 = vmatprep.subr.mxu0 0.0
    %1540 = vmatpush1.msra.mxu0 0.0
    %1541 = vmatprep.subr.mxu0 0.0
    %1542 = vmatpush1.msra.mxu0 0.0
    %1543 = vmatprep.subr.mxu0 0.0
    %1544 = vmatpush1.msra.mxu0 0.0
    %1545 = vmatprep.subr.mxu0 0.0
    %1546 = vmatpush1.msra.mxu0 0.0
    %1547 = vmatprep.subr.mxu0 0.0
    %1548 = vmatpush1.msra.mxu0 0.0
    %1549 = vmatprep.subr.mxu0 0.0
    %1550 = vmatpush1.msra.mxu0 0.0
    %1551 = vmatprep.subr.mxu0 0.0
    %1552 = vmatpush1.msra.mxu0 0.0
    %1553 = vmatprep.subr.mxu0 0.0
    %1554 = vmatpush1.msra.mxu0 %v773
    %1555 = vmatprep.subr.mxu0 0.0
    %1556 = vmatpush2.msra.mxu0 0.0
    %1557 = vmatprep.subr.mxu0 0.0
    %1558 = vmatpush2.msra.mxu0 0.0
    %1559 = vmatprep.subr.mxu0 0.0
    %1560 = vmatpush2.msra.mxu0 0.0
    %1561 = vmatprep.subr.mxu0 0.0
    %1562 = vmatpush2.msra.mxu0 0.0
    %1563 = vmatprep.subr.mxu0 0.0
    %1564 = vmatpush2.msra.mxu0 0.0
    %1565 = vmatprep.subr.mxu0 0.0
    %1566 = vmatpush2.msra.mxu0 0.0
    %1567 = vmatprep.subr.mxu0 0.0
    %1568 = vmatpush2.msra.mxu0 0.0
    %1569 = vmatprep.subr.mxu0 0.0
    %1570 = vmatpush2.msra.mxu0 0.0
    %1571 = vmatprep.subr.mxu0 0.0
    %1572 = vmatpush2.msra.mxu0 0.0
    %1573 = vmatprep.subr.mxu0 0.0
    %1574 = vmatpush2.msra.mxu0 0.0
    %1575 = vmatprep.subr.mxu0 0.0
    %1576 = vmatpush2.msra.mxu0 0.0
    %1577 = vmatprep.subr.mxu0 0.0
    %1578 = vmatpush2.msra.mxu0 0.0
    %1579 = vmatprep.subr.mxu0 0.0
    %1580 = vmatpush2.msra.mxu0 0.0
    %1581 = vmatprep.subr.mxu0 0.0
    %1582 = vmatpush2.msra.mxu0 0.0
    %1583 = vmatprep.subr.mxu0 0.0
    %1584 = vmatpush2.msra.mxu0 0.0
    %1585 = vmatprep.subr.mxu0 0.0
    %1586 = vmatpush2.msra.mxu0 0.0
    %1587 = vmatprep.mubr.f32.mxu0 0.0
    %1588 = vmatmul.mubr.f32.gmra.mxu0 %v1515
    %v1589 = vpop.f32.mrf.mxu0
    %v1590 = vadd.f32 0.0, %v1589
    %v1591 = vpop.f32.mrf.mxu0
    %1592 = vmatprep.mubr.f32.mxu0 0.0
    %1593 = vmatmul.mubr.f32.gmra.mxu0 %v1518
    %v1594 = vpop.f32.mrf.mxu0
    %v1595 = vadd.f32 0.0, %v1594
    %v1596 = vpop.f32.mrf.mxu0
    %1597 = vmatprep.mubr.f32.mxu0 0.0
    %1598 = vmatmul.mubr.f32.gmra.mxu0 %v1521
    %v1599 = vpop.f32.mrf.mxu0
    %v1600 = vadd.f32 0.0, %v1599
    %v1601 = vpop.f32.mrf.mxu0
    %1602 = vdwg.mxu0
    %1606 = vrot.lane.b32.xlu0 %v1291, 96
    %v1607 = vpop.permute.xlu0 %1606
    %1608 = vrot.lane.b32.xlu0 %v1296, 96
    %v1609 = vpop.permute.xlu0 %1608
    %1610 = vrot.lane.b32.xlu0 %v1301, 96
    %v1611 = vpop.permute.xlu0 %1610
    %v1615 = vmul.f32 %v1590, %v1607
    %v1616 = vmul.f32 %v1595, %v1609
    %v1617 = vmul.f32 %v1600, %v1611
    %v1619 = vrot.slane %v1615, 2
    %v1621 = vadd.f32 %v1615, %v1619
    %v1622 = vrot.slane %v1615, 4
    %v1624 = vadd.f32 %v1621, %v1622
    %v1625 = vrot.slane %v1615, 6
    %v1627 = vadd.f32 %v1624, %v1625
    %v1628 = vadd.f32 %v1627, %v1616
    %v1630 = vrot.slane %v1616, 2
    %v1632 = vadd.f32 %v1628, %v1630
    %v1633 = vrot.slane %v1616, 4
    %v1635 = vadd.f32 %v1632, %v1633
    %v1636 = vrot.slane %v1616, 6
    %v1638 = vadd.f32 %v1635, %v1636
    %v1639 = vadd.f32 %v1638, %v1617
    %v1641 = vlaneseq
    %v1642 = vshrl.u32 %v1641, 7
    %v1643 = vsub.s32 0, %v1642
    %v1644 = vrot.slane %v217, %v1643
    %v1647 = vsel %vm298, %v1639, 0
    %1649 = vmatprep.subr.mxu0 0.0
    %1650 = vmatpush1.msra.mxu0 0.0
    %1651 = vmatprep.subr.mxu0 0.0
    %1652 = vmatpush1.msra.mxu0 0.0
    %1653 = vmatprep.subr.mxu0 0.0
    %1654 = vmatpush1.msra.mxu0 0.0
    %1655 = vmatprep.subr.mxu0 0.0
    %1656 = vmatpush1.msra.mxu0 0.0
    %1657 = vmatprep.subr.mxu0 0.0
    %1658 = vmatpush1.msra.mxu0 0.0
    %1659 = vmatprep.subr.mxu0 0.0
    %1660 = vmatpush1.msra.mxu0 0.0
    %1661 = vmatprep.subr.mxu0 0.0
    %1662 = vmatpush1.msra.mxu0 0.0
    %1663 = vmatprep.subr.mxu0 0.0
    %1664 = vmatpush1.msra.mxu0 0.0
    %1665 = vmatprep.subr.mxu0 0.0
    %1666 = vmatpush1.msra.mxu0 0.0
    %1667 = vmatprep.subr.mxu0 0.0
    %1668 = vmatpush1.msra.mxu0 0.0
    %1669 = vmatprep.subr.mxu0 0.0
    %1670 = vmatpush1.msra.mxu0 0.0
    %1671 = vmatprep.subr.mxu0 0.0
    %1672 = vmatpush1.msra.mxu0 0.0
    %1673 = vmatprep.subr.mxu0 0.0
    %1674 = vmatpush1.msra.mxu0 %v216
    %1675 = vmatprep.subr.mxu0 0.0
    %1676 = vmatpush1.msra.mxu0 %v215
    %1677 = vmatprep.subr.mxu0 0.0
    %1678 = vmatpush1.msra.mxu0 %v214
    %1679 = vmatprep.subr.mxu0 0.0
    %1680 = vmatpush1.msra.mxu0 %v213
    %1681 = vmatprep.subr.mxu0 0.0
    %1682 = vmatpush2.msra.mxu0 0.0
    %1683 = vmatprep.subr.mxu0 0.0
    %1684 = vmatpush2.msra.mxu0 0.0
    %1685 = vmatprep.subr.mxu0 0.0
    %1686 = vmatpush2.msra.mxu0 0.0
    %1687 = vmatprep.subr.mxu0 0.0
    %1688 = vmatpush2.msra.mxu0 0.0
    %1689 = vmatprep.subr.mxu0 0.0
    %1690 = vmatpush2.msra.mxu0 0.0
    %1691 = vmatprep.subr.mxu0 0.0
    %1692 = vmatpush2.msra.mxu0 0.0
    %1693 = vmatprep.subr.mxu0 0.0
    %1694 = vmatpush2.msra.mxu0 0.0
    %1695 = vmatprep.subr.mxu0 0.0
    %1696 = vmatpush2.msra.mxu0 0.0
    %1697 = vmatprep.subr.mxu0 0.0
    %1698 = vmatpush2.msra.mxu0 0.0
    %1699 = vmatprep.subr.mxu0 0.0
    %1700 = vmatpush2.msra.mxu0 0.0
    %1701 = vmatprep.subr.mxu0 0.0
    %1702 = vmatpush2.msra.mxu0 0.0
    %1703 = vmatprep.subr.mxu0 0.0
    %1704 = vmatpush2.msra.mxu0 0.0
    %1705 = vmatprep.subr.mxu0 0.0
    %1706 = vmatpush2.msra.mxu0 0.0
    %1707 = vmatprep.subr.mxu0 0.0
    %1708 = vmatpush2.msra.mxu0 0.0
    %1709 = vmatprep.subr.mxu0 0.0
    %1710 = vmatpush2.msra.mxu0 0.0
    %1711 = vmatprep.subr.mxu0 0.0
    %1712 = vmatpush2.msra.mxu0 0.0
    %1713 = vmatprep.mubr.f32.mxu0 0.0
    %1714 = vmatmul.mubr.f32.gmra.mxu0 %v1647
    %v1715 = vpop.f32.mrf.mxu0
    %v1716 = vadd.f32 %v1644, %v1715
    %v1717 = vpop.f32.mrf.mxu0
    %1718 = vdwg.mxu0
    %v1719 = vadd.f32 %v1716, %v272
    %v1720 = vmax.f32 %v1719, 0.0
    %vm1721 = vcmask 254976
    %v1722 = vsel %vm1721, %v1720, 0.0
    %1723 = vadd.xlane.f32.xlu0 %v1722
    %v1724 = vpop.xlane.xlu0 %1723
    %v1725 = vmul.f32 %v1724, %v1045
    %v1726 = vsub.f32 %v1720, %v1725
    %v1727 = vmul.f32 %v1726, %v1726
    %v1728 = vsel %vm1721, %v1727, 0.0
    %1729 = vadd.xlane.f32.xlu0 %v1728
    %v1730 = vpop.xlane.xlu0 %1729
    %v1731 = vmul.f32 %v1730, %v1045
    %v1732 = vadd.f32 %v1731, 1e-12
    %v1733 = vrsqrt.pop %v1732
    %v1734 = vmul.f32 %v1726, %v1733
    %v1736 = vlaneseq
    %v1737 = vshrl.u32 %v1736, 7
    %v1738 = vsub.s32 0, %v1737
    %v1739 = vrot.slane %v218, %v1738
    %v1741 = vmul.f32 %v1739, %v1734
    %v1743 = vlaneseq
    %v1744 = vshrl.u32 %v1743, 7
    %v1745 = vsub.s32 0, %v1744
    %v1746 = vrot.slane %v219, %v1745
    %v1748 = vadd.f32 %v1741, %v1746
    %v1749 = vlaneseq
    %v1750 = vshrl.u32 %v1749, 7
    %v1751 = vsub.s32 0, %v1750
    %v1752 = vrot.slane %v1080, %v1751
    %v1753 = vlaneseq
    %v1754 = vshrl.u32 %v1753, 7
    %v1755 = vsub.s32 0, %v1754
    %v1756 = vrot.slane %v1748, %v1755
    %v1757 = vlaneseq
    %v1758 = vshrl.u32 %v1757, 7
    %v1759 = vsub.s32 0, %v1758
    %v1760 = vrot.slane %v1081, %v1759
    %v1761 = vlaneseq
    %v1762 = vshrl.u32 %v1761, 7
    %v1763 = vsub.s32 1, %v1762
    %v1764 = vrot.slane %v1748, %v1763
    %v1765 = vsel %vm289, %v1104, %v1100
    %v1766 = vsel %vm289, %v1102, %v1098
    %v1767 = vsel %vm298, %v1080, 0
    %v1769 = vsel %vm298, %v1081, 0
    %1771 = vmatprep.subr.mxu0 0.0
    %1772 = vmatpush1.msra.mxu0 0.0
    %1773 = vmatprep.subr.mxu0 0.0
    %1774 = vmatpush1.msra.mxu0 0.0
    %1775 = vmatprep.subr.mxu0 0.0
    %1776 = vmatpush1.msra.mxu0 0.0
    %1777 = vmatprep.subr.mxu0 0.0
    %1778 = vmatpush1.msra.mxu0 0.0
    %1779 = vmatprep.subr.mxu0 0.0
    %1780 = vmatpush1.msra.mxu0 0.0
    %1781 = vmatprep.subr.mxu0 0.0
    %1782 = vmatpush1.msra.mxu0 0.0
    %1783 = vmatprep.subr.mxu0 0.0
    %1784 = vmatpush1.msra.mxu0 0.0
    %1785 = vmatprep.subr.mxu0 0.0
    %1786 = vmatpush1.msra.mxu0 0.0
    %1787 = vmatprep.subr.mxu0 0.0
    %1788 = vmatpush1.msra.mxu0 0.0
    %1789 = vmatprep.subr.mxu0 0.0
    %1790 = vmatpush1.msra.mxu0 0.0
    %1791 = vmatprep.subr.mxu0 0.0
    %1792 = vmatpush1.msra.mxu0 0.0
    %1793 = vmatprep.subr.mxu0 0.0
    %1794 = vmatpush1.msra.mxu0 0.0
    %1795 = vmatprep.subr.mxu0 0.0
    %1796 = vmatpush1.msra.mxu0 %v189
    %1797 = vmatprep.subr.mxu0 0.0
    %1798 = vmatpush1.msra.mxu0 %v188
    %1799 = vmatprep.subr.mxu0 0.0
    %1800 = vmatpush1.msra.mxu0 %v187
    %1801 = vmatprep.subr.mxu0 0.0
    %1802 = vmatpush1.msra.mxu0 %v186
    %1803 = vmatprep.subr.mxu0 0.0
    %1804 = vmatpush2.msra.mxu0 0.0
    %1805 = vmatprep.subr.mxu0 0.0
    %1806 = vmatpush2.msra.mxu0 0.0
    %1807 = vmatprep.subr.mxu0 0.0
    %1808 = vmatpush2.msra.mxu0 0.0
    %1809 = vmatprep.subr.mxu0 0.0
    %1810 = vmatpush2.msra.mxu0 0.0
    %1811 = vmatprep.subr.mxu0 0.0
    %1812 = vmatpush2.msra.mxu0 0.0
    %1813 = vmatprep.subr.mxu0 0.0
    %1814 = vmatpush2.msra.mxu0 0.0
    %1815 = vmatprep.subr.mxu0 0.0
    %1816 = vmatpush2.msra.mxu0 0.0
    %1817 = vmatprep.subr.mxu0 0.0
    %1818 = vmatpush2.msra.mxu0 0.0
    %1819 = vmatprep.subr.mxu0 0.0
    %1820 = vmatpush2.msra.mxu0 0.0
    %1821 = vmatprep.subr.mxu0 0.0
    %1822 = vmatpush2.msra.mxu0 0.0
    %1823 = vmatprep.subr.mxu0 0.0
    %1824 = vmatpush2.msra.mxu0 0.0
    %1825 = vmatprep.subr.mxu0 0.0
    %1826 = vmatpush2.msra.mxu0 0.0
    %1827 = vmatprep.subr.mxu0 0.0
    %1828 = vmatpush2.msra.mxu0 0.0
    %1829 = vmatprep.subr.mxu0 0.0
    %1830 = vmatpush2.msra.mxu0 0.0
    %1831 = vmatprep.subr.mxu0 0.0
    %1832 = vmatpush2.msra.mxu0 0.0
    %1833 = vmatprep.subr.mxu0 0.0
    %1834 = vmatpush2.msra.mxu0 0.0
    %1835 = vmatprep.mubr.f32.mxu0 0.0
    %1836 = vmatmul.mubr.f32.gmra.mxu0 %v1767
    %v1837 = vpop.f32.mrf.mxu0
    %v1838 = vadd.f32 %v296, %v1837
    %v1839 = vpop.f32.mrf.mxu0
    %1840 = vmatprep.mubr.f32.mxu0 0.0
    %1841 = vmatmul.mubr.f32.gmra.mxu0 %v1769
    %v1842 = vpop.f32.mrf.mxu0
    %v1843 = vadd.f32 %v296, %v1842
    %v1844 = vpop.f32.mrf.mxu0
    %1845 = vdwg.mxu0
    %v1847 = vsel %vm298, %v1765, 0
    %v1850 = vsel %vm298, %v1766, 0
    %v1853 = vsel %vm298, %v1752, 0
    %v1856 = vsel %vm298, %v1760, 0
    %v1859 = vsel %vm298, %v1756, 0
    %v1862 = vsel %vm298, %v1764, 0
    %1864 = vmatprep.subr.mxu0 0.0
    %1865 = vmatpush1.msra.mxu0 0.0
    %1866 = vmatprep.subr.mxu0 0.0
    %1867 = vmatpush1.msra.mxu0 0.0
    %1868 = vmatprep.subr.mxu0 0.0
    %1869 = vmatpush1.msra.mxu0 0.0
    %1870 = vmatprep.subr.mxu0 0.0
    %1871 = vmatpush1.msra.mxu0 0.0
    %1872 = vmatprep.subr.mxu0 0.0
    %1873 = vmatpush1.msra.mxu0 0.0
    %1874 = vmatprep.subr.mxu0 0.0
    %1875 = vmatpush1.msra.mxu0 0.0
    %1876 = vmatprep.subr.mxu0 0.0
    %1877 = vmatpush1.msra.mxu0 0.0
    %1878 = vmatprep.subr.mxu0 0.0
    %1879 = vmatpush1.msra.mxu0 0.0
    %1880 = vmatprep.subr.mxu0 0.0
    %1881 = vmatpush1.msra.mxu0 0.0
    %1882 = vmatprep.subr.mxu0 0.0
    %1883 = vmatpush1.msra.mxu0 0.0
    %1884 = vmatprep.subr.mxu0 0.0
    %1885 = vmatpush1.msra.mxu0 0.0
    %1886 = vmatprep.subr.mxu0 0.0
    %1887 = vmatpush1.msra.mxu0 0.0
    %1888 = vmatprep.subr.mxu0 0.0
    %1889 = vmatpush1.msra.mxu0 %v194
    %1890 = vmatprep.subr.mxu0 0.0
    %1891 = vmatpush1.msra.mxu0 %v193
    %1892 = vmatprep.subr.mxu0 0.0
    %1893 = vmatpush1.msra.mxu0 %v192
    %1894 = vmatprep.subr.mxu0 0.0
    %1895 = vmatpush1.msra.mxu0 %v191
    %1896 = vmatprep.subr.mxu0 0.0
    %1897 = vmatpush2.msra.mxu0 0.0
    %1898 = vmatprep.subr.mxu0 0.0
    %1899 = vmatpush2.msra.mxu0 0.0
    %1900 = vmatprep.subr.mxu0 0.0
    %1901 = vmatpush2.msra.mxu0 0.0
    %1902 = vmatprep.subr.mxu0 0.0
    %1903 = vmatpush2.msra.mxu0 0.0
    %1904 = vmatprep.subr.mxu0 0.0
    %1905 = vmatpush2.msra.mxu0 0.0
    %1906 = vmatprep.subr.mxu0 0.0
    %1907 = vmatpush2.msra.mxu0 0.0
    %1908 = vmatprep.subr.mxu0 0.0
    %1909 = vmatpush2.msra.mxu0 0.0
    %1910 = vmatprep.subr.mxu0 0.0
    %1911 = vmatpush2.msra.mxu0 0.0
    %1912 = vmatprep.subr.mxu0 0.0
    %1913 = vmatpush2.msra.mxu0 0.0
    %1914 = vmatprep.subr.mxu0 0.0
    %1915 = vmatpush2.msra.mxu0 0.0
    %1916 = vmatprep.subr.mxu0 0.0
    %1917 = vmatpush2.msra.mxu0 0.0
    %1918 = vmatprep.subr.mxu0 0.0
    %1919 = vmatpush2.msra.mxu0 0.0
    %1920 = vmatprep.subr.mxu0 0.0
    %1921 = vmatpush2.msra.mxu0 0.0
    %1922 = vmatprep.subr.mxu0 0.0
    %1923 = vmatpush2.msra.mxu0 0.0
    %1924 = vmatprep.subr.mxu0 0.0
    %1925 = vmatpush2.msra.mxu0 0.0
    %1926 = vmatprep.subr.mxu0 0.0
    %1927 = vmatpush2.msra.mxu0 0.0
    %1928 = vmatprep.mubr.f32.mxu0 0.0
    %1929 = vmatmul.mubr.f32.gmra.mxu0 %v1847
    %v1930 = vpop.f32.mrf.mxu0
    %v1931 = vadd.f32 %v382, %v1930
    %v1932 = vpop.f32.mrf.mxu0
    %1933 = vmatprep.mubr.f32.mxu0 0.0
    %1934 = vmatmul.mubr.f32.gmra.mxu0 %v1850
    %v1935 = vpop.f32.mrf.mxu0
    %v1936 = vadd.f32 %v382, %v1935
    %v1937 = vpop.f32.mrf.mxu0
    %1938 = vmatprep.mubr.f32.mxu0 0.0
    %1939 = vmatmul.mubr.f32.gmra.mxu0 %v1767
    %v1940 = vpop.f32.mrf.mxu0
    %v1941 = vadd.f32 %v382, %v1940
    %v1942 = vpop.f32.mrf.mxu0
    %1943 = vmatprep.mubr.f32.mxu0 0.0
    %1944 = vmatmul.mubr.f32.gmra.mxu0 %v1769
    %v1945 = vpop.f32.mrf.mxu0
    %v1946 = vadd.f32 %v382, %v1945
    %v1947 = vpop.f32.mrf.mxu0
    %1948 = vmatprep.mubr.f32.mxu0 0.0
    %1949 = vmatmul.mubr.f32.gmra.mxu0 %v1853
    %v1950 = vpop.f32.mrf.mxu0
    %v1951 = vadd.f32 %v382, %v1950
    %v1952 = vpop.f32.mrf.mxu0
    %1953 = vmatprep.mubr.f32.mxu0 0.0
    %1954 = vmatmul.mubr.f32.gmra.mxu0 %v1856
    %v1955 = vpop.f32.mrf.mxu0
    %v1956 = vadd.f32 %v382, %v1955
    %v1957 = vpop.f32.mrf.mxu0
    %1958 = vmatprep.mubr.f32.mxu0 0.0
    %1959 = vmatmul.mubr.f32.gmra.mxu0 %v299
    %v1960 = vpop.f32.mrf.mxu0
    %v1961 = vadd.f32 %v382, %v1960
    %v1962 = vpop.f32.mrf.mxu0
    %1963 = vmatprep.mubr.f32.mxu0 0.0
    %1964 = vmatmul.mubr.f32.gmra.mxu0 %v301
    %v1965 = vpop.f32.mrf.mxu0
    %v1966 = vadd.f32 %v382, %v1965
    %v1967 = vpop.f32.mrf.mxu0
    %1968 = vmatprep.mubr.f32.mxu0 0.0
    %1969 = vmatmul.mubr.f32.gmra.mxu0 %v1859
    %v1970 = vpop.f32.mrf.mxu0
    %v1971 = vadd.f32 %v382, %v1970
    %v1972 = vpop.f32.mrf.mxu0
    %1973 = vmatprep.mubr.f32.mxu0 0.0
    %1974 = vmatmul.mubr.f32.gmra.mxu0 %v1862
    %v1975 = vpop.f32.mrf.mxu0
    %v1976 = vadd.f32 %v382, %v1975
    %v1977 = vpop.f32.mrf.mxu0
    %1978 = vdwg.mxu0
    %v1979 = vmul.f32 %v1838, %v1931
    %v1980 = vmul.f32 %v1843, %v1936
    %v1981 = vmul.f32 %v1838, %v1941
    %v1982 = vmul.f32 %v1843, %v1946
    %v1983 = vmul.f32 %v1838, %v1951
    %v1984 = vmul.f32 %v1843, %v1956
    %v1985 = vmul.f32 %v1838, %v1961
    %v1986 = vmul.f32 %v1843, %v1966
    %v1987 = vmul.f32 %v1838, %v1971
    %v1988 = vmul.f32 %v1843, %v1976
    %v1990 = vsel %vm298, %v1979, 0
    %v1993 = vsel %vm298, %v1980, 0
    %v1996 = vsel %vm298, %v1981, 0
    %v1999 = vsel %vm298, %v1982, 0
    %v2002 = vsel %vm298, %v1983, 0
    %v2005 = vsel %vm298, %v1984, 0
    %v2008 = vsel %vm298, %v1985, 0
    %v2011 = vsel %vm298, %v1986, 0
    %v2014 = vsel %vm298, %v1987, 0
    %v2017 = vsel %vm298, %v1988, 0
    %2019 = vmatprep.subr.mxu0 0.0
    %2020 = vmatpush1.msra.mxu0 0.0
    %2021 = vmatprep.subr.mxu0 0.0
    %2022 = vmatpush1.msra.mxu0 0.0
    %2023 = vmatprep.subr.mxu0 0.0
    %2024 = vmatpush1.msra.mxu0 0.0
    %2025 = vmatprep.subr.mxu0 0.0
    %2026 = vmatpush1.msra.mxu0 0.0
    %2027 = vmatprep.subr.mxu0 0.0
    %2028 = vmatpush1.msra.mxu0 0.0
    %2029 = vmatprep.subr.mxu0 0.0
    %2030 = vmatpush1.msra.mxu0 0.0
    %2031 = vmatprep.subr.mxu0 0.0
    %2032 = vmatpush1.msra.mxu0 0.0
    %2033 = vmatprep.subr.mxu0 0.0
    %2034 = vmatpush1.msra.mxu0 0.0
    %2035 = vmatprep.subr.mxu0 0.0
    %2036 = vmatpush1.msra.mxu0 0.0
    %2037 = vmatprep.subr.mxu0 0.0
    %2038 = vmatpush1.msra.mxu0 0.0
    %2039 = vmatprep.subr.mxu0 0.0
    %2040 = vmatpush1.msra.mxu0 0.0
    %2041 = vmatprep.subr.mxu0 0.0
    %2042 = vmatpush1.msra.mxu0 0.0
    %2043 = vmatprep.subr.mxu0 0.0
    %2044 = vmatpush1.msra.mxu0 %v179
    %2045 = vmatprep.subr.mxu0 0.0
    %2046 = vmatpush1.msra.mxu0 %v178
    %2047 = vmatprep.subr.mxu0 0.0
    %2048 = vmatpush1.msra.mxu0 %v177
    %2049 = vmatprep.subr.mxu0 0.0
    %2050 = vmatpush1.msra.mxu0 %v176
    %2051 = vmatprep.subr.mxu0 0.0
    %2052 = vmatpush2.msra.mxu0 0.0
    %2053 = vmatprep.subr.mxu0 0.0
    %2054 = vmatpush2.msra.mxu0 0.0
    %2055 = vmatprep.subr.mxu0 0.0
    %2056 = vmatpush2.msra.mxu0 0.0
    %2057 = vmatprep.subr.mxu0 0.0
    %2058 = vmatpush2.msra.mxu0 0.0
    %2059 = vmatprep.subr.mxu0 0.0
    %2060 = vmatpush2.msra.mxu0 0.0
    %2061 = vmatprep.subr.mxu0 0.0
    %2062 = vmatpush2.msra.mxu0 0.0
    %2063 = vmatprep.subr.mxu0 0.0
    %2064 = vmatpush2.msra.mxu0 0.0
    %2065 = vmatprep.subr.mxu0 0.0
    %2066 = vmatpush2.msra.mxu0 0.0
    %2067 = vmatprep.subr.mxu0 0.0
    %2068 = vmatpush2.msra.mxu0 0.0
    %2069 = vmatprep.subr.mxu0 0.0
    %2070 = vmatpush2.msra.mxu0 0.0
    %2071 = vmatprep.subr.mxu0 0.0
    %2072 = vmatpush2.msra.mxu0 0.0
    %2073 = vmatprep.subr.mxu0 0.0
    %2074 = vmatpush2.msra.mxu0 0.0
    %2075 = vmatprep.subr.mxu0 0.0
    %2076 = vmatpush2.msra.mxu0 0.0
    %2077 = vmatprep.subr.mxu0 0.0
    %2078 = vmatpush2.msra.mxu0 0.0
    %2079 = vmatprep.subr.mxu0 0.0
    %2080 = vmatpush2.msra.mxu0 0.0
    %2081 = vmatprep.subr.mxu0 0.0
    %2082 = vmatpush2.msra.mxu0 0.0
    %2083 = vmatprep.mubr.f32.mxu0 0.0
    %2084 = vmatmul.mubr.f32.gmra.mxu0 %v1990
    %v2085 = vpop.f32.mrf.mxu0
    %v2086 = vadd.f32 0.0, %v2085
    %v2087 = vpop.f32.mrf.mxu0
    %2088 = vmatprep.mubr.f32.mxu0 0.0
    %2089 = vmatmul.mubr.f32.gmra.mxu0 %v1993
    %v2090 = vpop.f32.mrf.mxu0
    %v2091 = vadd.f32 0.0, %v2090
    %v2092 = vpop.f32.mrf.mxu0
    %2093 = vmatprep.mubr.f32.mxu0 0.0
    %2094 = vmatmul.mubr.f32.gmra.mxu0 %v1996
    %v2095 = vpop.f32.mrf.mxu0
    %v2096 = vadd.f32 0.0, %v2095
    %v2097 = vpop.f32.mrf.mxu0
    %2098 = vmatprep.mubr.f32.mxu0 0.0
    %2099 = vmatmul.mubr.f32.gmra.mxu0 %v1999
    %v2100 = vpop.f32.mrf.mxu0
    %v2101 = vadd.f32 0.0, %v2100
    %v2102 = vpop.f32.mrf.mxu0
    %2103 = vmatprep.mubr.f32.mxu0 0.0
    %2104 = vmatmul.mubr.f32.gmra.mxu0 %v2002
    %v2105 = vpop.f32.mrf.mxu0
    %v2106 = vadd.f32 0.0, %v2105
    %v2107 = vpop.f32.mrf.mxu0
    %2108 = vmatprep.mubr.f32.mxu0 0.0
    %2109 = vmatmul.mubr.f32.gmra.mxu0 %v2005
    %v2110 = vpop.f32.mrf.mxu0
    %v2111 = vadd.f32 0.0, %v2110
    %v2112 = vpop.f32.mrf.mxu0
    %2113 = vmatprep.mubr.f32.mxu0 0.0
    %2114 = vmatmul.mubr.f32.gmra.mxu0 %v2008
    %v2115 = vpop.f32.mrf.mxu0
    %v2116 = vadd.f32 0.0, %v2115
    %v2117 = vpop.f32.mrf.mxu0
    %2118 = vmatprep.mubr.f32.mxu0 0.0
    %2119 = vmatmul.mubr.f32.gmra.mxu0 %v2011
    %v2120 = vpop.f32.mrf.mxu0
    %v2121 = vadd.f32 0.0, %v2120
    %v2122 = vpop.f32.mrf.mxu0
    %2123 = vmatprep.mubr.f32.mxu0 0.0
    %2124 = vmatmul.mubr.f32.gmra.mxu0 %v2014
    %v2125 = vpop.f32.mrf.mxu0
    %v2126 = vadd.f32 0.0, %v2125
    %v2127 = vpop.f32.mrf.mxu0
    %2128 = vmatprep.mubr.f32.mxu0 0.0
    %2129 = vmatmul.mubr.f32.gmra.mxu0 %v2017
    %v2130 = vpop.f32.mrf.mxu0
    %v2131 = vadd.f32 0.0, %v2130
    %v2132 = vpop.f32.mrf.mxu0
    %2133 = vdwg.mxu0
    %v2134 = vmul.f32 %v2086, 0.35355338
    %v2135 = vmul.f32 %v2091, 0.35355338
    %v2136 = vmul.f32 %v2096, 0.35355338
    %v2137 = vmul.f32 %v2101, 0.35355338
    %v2138 = vmul.f32 %v2106, 0.35355338
    %v2139 = vmul.f32 %v2111, 0.35355338
    %v2140 = vmul.f32 %v2116, 0.35355338
    %v2141 = vmul.f32 %v2121, 0.35355338
    %v2142 = vmul.f32 %v2126, 0.35355338
    %v2143 = vmul.f32 %v2131, 0.35355338
    %v2144 = vmax.f32 %v2134, %v2136
    %v2145 = vmax.f32 %v2135, %v2137
    %v2146 = vmax.f32 %v2144, %v2138
    %v2147 = vmax.f32 %v2145, %v2139
    %v2148 = vmax.f32 %v2146, %v2140
    %v2149 = vmax.f32 %v2147, %v2141
    %v2150 = vmax.f32 %v2148, %v2142
    %v2151 = vmax.f32 %v2149, %v2143
    %v2152 = vsub.f32 %v2134, %v2150
    %v2153 = vsub.f32 %v2135, %v2151
    %v2154 = vmul.f32 %v2152, 1.442695
    %v2155 = vpow.pop %v2154
    %v2156 = vmul.f32 %v2153, 1.442695
    %v2157 = vpow.pop %v2156
    %v2158 = vsub.f32 %v2136, %v2150
    %v2159 = vsub.f32 %v2137, %v2151
    %v2160 = vmul.f32 %v2158, 1.442695
    %v2161 = vpow.pop %v2160
    %v2162 = vmul.f32 %v2159, 1.442695
    %v2163 = vpow.pop %v2162
    %v2164 = vsub.f32 %v2138, %v2150
    %v2165 = vsub.f32 %v2139, %v2151
    %v2166 = vmul.f32 %v2164, 1.442695
    %v2167 = vpow.pop %v2166
    %v2168 = vmul.f32 %v2165, 1.442695
    %v2169 = vpow.pop %v2168
    %v2170 = vsub.f32 %v2140, %v2150
    %v2171 = vsub.f32 %v2141, %v2151
    %v2172 = vmul.f32 %v2170, 1.442695
    %v2173 = vpow.pop %v2172
    %v2174 = vmul.f32 %v2171, 1.442695
    %v2175 = vpow.pop %v2174
    %v2176 = vsub.f32 %v2142, %v2150
    %v2177 = vsub.f32 %v2143, %v2151
    %v2178 = vmul.f32 %v2176, 1.442695
    %v2179 = vpow.pop %v2178
    %v2180 = vmul.f32 %v2177, 1.442695
    %v2181 = vpow.pop %v2180
    %v2182 = vadd.f32 %v2155, %v2161
    %v2183 = vadd.f32 %v2157, %v2163
    %v2184 = vadd.f32 %v2182, %v2167
    %v2185 = vadd.f32 %v2183, %v2169
    %v2186 = vadd.f32 %v2184, %v2173
    %v2187 = vadd.f32 %v2185, %v2175
    %v2188 = vadd.f32 %v2186, %v2179
    %v2189 = vadd.f32 %v2187, %v2181
    %v2190 = vrcp.pop %v2188
    %v2191 = vrcp.pop %v2189
    %v2192 = vmul.f32 %v2155, %v2190
    %v2193 = vmul.f32 %v2157, %v2191
    %v2194 = vmul.f32 %v2161, %v2190
    %v2195 = vmul.f32 %v2163, %v2191
    %v2196 = vmul.f32 %v2167, %v2190
    %v2197 = vmul.f32 %v2169, %v2191
    %v2198 = vmul.f32 %v2173, %v2190
    %v2199 = vmul.f32 %v2175, %v2191
    %v2200 = vmul.f32 %v2179, %v2190
    %v2201 = vmul.f32 %v2181, %v2191
    %v2203 = vsel %vm740, %v2192, 0
    %v2206 = vsel %vm740, %v2193, 0
    %v2209 = vsel %vm740, %v2194, 0
    %v2212 = vsel %vm740, %v2195, 0
    %v2215 = vsel %vm740, %v2196, 0
    %v2218 = vsel %vm740, %v2197, 0
    %v2221 = vsel %vm740, %v2198, 0
    %v2224 = vsel %vm740, %v2199, 0
    %v2227 = vsel %vm740, %v2200, 0
    %v2230 = vsel %vm740, %v2201, 0
    %2232 = vmatprep.subr.mxu0 0.0
    %2233 = vmatpush1.msra.mxu0 0.0
    %2234 = vmatprep.subr.mxu0 0.0
    %2235 = vmatpush1.msra.mxu0 0.0
    %2236 = vmatprep.subr.mxu0 0.0
    %2237 = vmatpush1.msra.mxu0 0.0
    %2238 = vmatprep.subr.mxu0 0.0
    %2239 = vmatpush1.msra.mxu0 0.0
    %2240 = vmatprep.subr.mxu0 0.0
    %2241 = vmatpush1.msra.mxu0 0.0
    %2242 = vmatprep.subr.mxu0 0.0
    %2243 = vmatpush1.msra.mxu0 0.0
    %2244 = vmatprep.subr.mxu0 0.0
    %2245 = vmatpush1.msra.mxu0 0.0
    %2246 = vmatprep.subr.mxu0 0.0
    %2247 = vmatpush1.msra.mxu0 0.0
    %2248 = vmatprep.subr.mxu0 0.0
    %2249 = vmatpush1.msra.mxu0 0.0
    %2250 = vmatprep.subr.mxu0 0.0
    %2251 = vmatpush1.msra.mxu0 0.0
    %2252 = vmatprep.subr.mxu0 0.0
    %2253 = vmatpush1.msra.mxu0 0.0
    %2254 = vmatprep.subr.mxu0 0.0
    %2255 = vmatpush1.msra.mxu0 0.0
    %2256 = vmatprep.subr.mxu0 0.0
    %2257 = vmatpush1.msra.mxu0 0.0
    %2258 = vmatprep.subr.mxu0 0.0
    %2259 = vmatpush1.msra.mxu0 0.0
    %2260 = vmatprep.subr.mxu0 0.0
    %2261 = vmatpush1.msra.mxu0 0.0
    %2262 = vmatprep.subr.mxu0 0.0
    %2263 = vmatpush1.msra.mxu0 %v773
    %2264 = vmatprep.subr.mxu0 0.0
    %2265 = vmatpush2.msra.mxu0 0.0
    %2266 = vmatprep.subr.mxu0 0.0
    %2267 = vmatpush2.msra.mxu0 0.0
    %2268 = vmatprep.subr.mxu0 0.0
    %2269 = vmatpush2.msra.mxu0 0.0
    %2270 = vmatprep.subr.mxu0 0.0
    %2271 = vmatpush2.msra.mxu0 0.0
    %2272 = vmatprep.subr.mxu0 0.0
    %2273 = vmatpush2.msra.mxu0 0.0
    %2274 = vmatprep.subr.mxu0 0.0
    %2275 = vmatpush2.msra.mxu0 0.0
    %2276 = vmatprep.subr.mxu0 0.0
    %2277 = vmatpush2.msra.mxu0 0.0
    %2278 = vmatprep.subr.mxu0 0.0
    %2279 = vmatpush2.msra.mxu0 0.0
    %2280 = vmatprep.subr.mxu0 0.0
    %2281 = vmatpush2.msra.mxu0 0.0
    %2282 = vmatprep.subr.mxu0 0.0
    %2283 = vmatpush2.msra.mxu0 0.0
    %2284 = vmatprep.subr.mxu0 0.0
    %2285 = vmatpush2.msra.mxu0 0.0
    %2286 = vmatprep.subr.mxu0 0.0
    %2287 = vmatpush2.msra.mxu0 0.0
    %2288 = vmatprep.subr.mxu0 0.0
    %2289 = vmatpush2.msra.mxu0 0.0
    %2290 = vmatprep.subr.mxu0 0.0
    %2291 = vmatpush2.msra.mxu0 0.0
    %2292 = vmatprep.subr.mxu0 0.0
    %2293 = vmatpush2.msra.mxu0 0.0
    %2294 = vmatprep.subr.mxu0 0.0
    %2295 = vmatpush2.msra.mxu0 0.0
    %2296 = vmatprep.mubr.f32.mxu0 0.0
    %2297 = vmatmul.mubr.f32.gmra.mxu0 %v2203
    %v2298 = vpop.f32.mrf.mxu0
    %v2299 = vadd.f32 0.0, %v2298
    %v2300 = vpop.f32.mrf.mxu0
    %2301 = vmatprep.mubr.f32.mxu0 0.0
    %2302 = vmatmul.mubr.f32.gmra.mxu0 %v2206
    %v2303 = vpop.f32.mrf.mxu0
    %v2304 = vadd.f32 0.0, %v2303
    %v2305 = vpop.f32.mrf.mxu0
    %2306 = vmatprep.mubr.f32.mxu0 0.0
    %2307 = vmatmul.mubr.f32.gmra.mxu0 %v2209
    %v2308 = vpop.f32.mrf.mxu0
    %v2309 = vadd.f32 0.0, %v2308
    %v2310 = vpop.f32.mrf.mxu0
    %2311 = vmatprep.mubr.f32.mxu0 0.0
    %2312 = vmatmul.mubr.f32.gmra.mxu0 %v2212
    %v2313 = vpop.f32.mrf.mxu0
    %v2314 = vadd.f32 0.0, %v2313
    %v2315 = vpop.f32.mrf.mxu0
    %2316 = vmatprep.mubr.f32.mxu0 0.0
    %2317 = vmatmul.mubr.f32.gmra.mxu0 %v2215
    %v2318 = vpop.f32.mrf.mxu0
    %v2319 = vadd.f32 0.0, %v2318
    %v2320 = vpop.f32.mrf.mxu0
    %2321 = vmatprep.mubr.f32.mxu0 0.0
    %2322 = vmatmul.mubr.f32.gmra.mxu0 %v2218
    %v2323 = vpop.f32.mrf.mxu0
    %v2324 = vadd.f32 0.0, %v2323
    %v2325 = vpop.f32.mrf.mxu0
    %2326 = vmatprep.mubr.f32.mxu0 0.0
    %2327 = vmatmul.mubr.f32.gmra.mxu0 %v2221
    %v2328 = vpop.f32.mrf.mxu0
    %v2329 = vadd.f32 0.0, %v2328
    %v2330 = vpop.f32.mrf.mxu0
    %2331 = vmatprep.mubr.f32.mxu0 0.0
    %2332 = vmatmul.mubr.f32.gmra.mxu0 %v2224
    %v2333 = vpop.f32.mrf.mxu0
    %v2334 = vadd.f32 0.0, %v2333
    %v2335 = vpop.f32.mrf.mxu0
    %2336 = vmatprep.mubr.f32.mxu0 0.0
    %2337 = vmatmul.mubr.f32.gmra.mxu0 %v2227
    %v2338 = vpop.f32.mrf.mxu0
    %v2339 = vadd.f32 0.0, %v2338
    %v2340 = vpop.f32.mrf.mxu0
    %2341 = vmatprep.mubr.f32.mxu0 0.0
    %2342 = vmatmul.mubr.f32.gmra.mxu0 %v2230
    %v2343 = vpop.f32.mrf.mxu0
    %v2344 = vadd.f32 0.0, %v2343
    %v2345 = vpop.f32.mrf.mxu0
    %2346 = vdwg.mxu0
    %2357 = vrot.lane.b32.xlu0 %v1931, 96
    %v2358 = vpop.permute.xlu0 %2357
    %2359 = vrot.lane.b32.xlu0 %v1936, 96
    %v2360 = vpop.permute.xlu0 %2359
    %2361 = vrot.lane.b32.xlu0 %v1941, 96
    %v2362 = vpop.permute.xlu0 %2361
    %2363 = vrot.lane.b32.xlu0 %v1946, 96
    %v2364 = vpop.permute.xlu0 %2363
    %2365 = vrot.lane.b32.xlu0 %v1951, 96
    %v2366 = vpop.permute.xlu0 %2365
    %2367 = vrot.lane.b32.xlu0 %v1956, 96
    %v2368 = vpop.permute.xlu0 %2367
    %2369 = vrot.lane.b32.xlu0 %v1961, 96
    %v2370 = vpop.permute.xlu0 %2369
    %2371 = vrot.lane.b32.xlu0 %v1966, 96
    %v2372 = vpop.permute.xlu0 %2371
    %2373 = vrot.lane.b32.xlu0 %v1971, 96
    %v2374 = vpop.permute.xlu0 %2373
    %2375 = vrot.lane.b32.xlu0 %v1976, 96
    %v2376 = vpop.permute.xlu0 %2375
    %v2387 = vmul.f32 %v2299, %v2358
    %v2388 = vmul.f32 %v2304, %v2360
    %v2389 = vmul.f32 %v2309, %v2362
    %v2390 = vmul.f32 %v2314, %v2364
    %v2391 = vmul.f32 %v2319, %v2366
    %v2392 = vmul.f32 %v2324, %v2368
    %v2393 = vmul.f32 %v2329, %v2370
    %v2394 = vmul.f32 %v2334, %v2372
    %v2395 = vmul.f32 %v2339, %v2374
    %v2396 = vmul.f32 %v2344, %v2376
    %v2397 = vadd.f32 %v2387, %v2389
    %v2398 = vadd.f32 %v2388, %v2390
    %v2399 = vadd.f32 %v2397, %v2391
    %v2400 = vadd.f32 %v2398, %v2392
    %v2401 = vadd.f32 %v2399, %v2393
    %v2402 = vadd.f32 %v2400, %v2394
    %v2403 = vadd.f32 %v2401, %v2395
    %v2404 = vadd.f32 %v2402, %v2396
    %v2406 = vsel %vm298, %v2403, 0
    %v2409 = vsel %vm298, %v2404, 0
    %2411 = vmatprep.subr.mxu0 0.0
    %2412 = vmatpush1.msra.mxu0 0.0
    %2413 = vmatprep.subr.mxu0 0.0
    %2414 = vmatpush1.msra.mxu0 0.0
    %2415 = vmatprep.subr.mxu0 0.0
    %2416 = vmatpush1.msra.mxu0 0.0
    %2417 = vmatprep.subr.mxu0 0.0
    %2418 = vmatpush1.msra.mxu0 0.0
    %2419 = vmatprep.subr.mxu0 0.0
    %2420 = vmatpush1.msra.mxu0 0.0
    %2421 = vmatprep.subr.mxu0 0.0
    %2422 = vmatpush1.msra.mxu0 0.0
    %2423 = vmatprep.subr.mxu0 0.0
    %2424 = vmatpush1.msra.mxu0 0.0
    %2425 = vmatprep.subr.mxu0 0.0
    %2426 = vmatpush1.msra.mxu0 0.0
    %2427 = vmatprep.subr.mxu0 0.0
    %2428 = vmatpush1.msra.mxu0 0.0
    %2429 = vmatprep.subr.mxu0 0.0
    %2430 = vmatpush1.msra.mxu0 0.0
    %2431 = vmatprep.subr.mxu0 0.0
    %2432 = vmatpush1.msra.mxu0 0.0
    %2433 = vmatprep.subr.mxu0 0.0
    %2434 = vmatpush1.msra.mxu0 0.0
    %2435 = vmatprep.subr.mxu0 0.0
    %2436 = vmatpush1.msra.mxu0 %v199
    %2437 = vmatprep.subr.mxu0 0.0
    %2438 = vmatpush1.msra.mxu0 %v198
    %2439 = vmatprep.subr.mxu0 0.0
    %2440 = vmatpush1.msra.mxu0 %v197
    %2441 = vmatprep.subr.mxu0 0.0
    %2442 = vmatpush1.msra.mxu0 %v196
    %2443 = vmatprep.subr.mxu0 0.0
    %2444 = vmatpush2.msra.mxu0 0.0
    %2445 = vmatprep.subr.mxu0 0.0
    %2446 = vmatpush2.msra.mxu0 0.0
    %2447 = vmatprep.subr.mxu0 0.0
    %2448 = vmatpush2.msra.mxu0 0.0
    %2449 = vmatprep.subr.mxu0 0.0
    %2450 = vmatpush2.msra.mxu0 0.0
    %2451 = vmatprep.subr.mxu0 0.0
    %2452 = vmatpush2.msra.mxu0 0.0
    %2453 = vmatprep.subr.mxu0 0.0
    %2454 = vmatpush2.msra.mxu0 0.0
    %2455 = vmatprep.subr.mxu0 0.0
    %2456 = vmatpush2.msra.mxu0 0.0
    %2457 = vmatprep.subr.mxu0 0.0
    %2458 = vmatpush2.msra.mxu0 0.0
    %2459 = vmatprep.subr.mxu0 0.0
    %2460 = vmatpush2.msra.mxu0 0.0
    %2461 = vmatprep.subr.mxu0 0.0
    %2462 = vmatpush2.msra.mxu0 0.0
    %2463 = vmatprep.subr.mxu0 0.0
    %2464 = vmatpush2.msra.mxu0 0.0
    %2465 = vmatprep.subr.mxu0 0.0
    %2466 = vmatpush2.msra.mxu0 0.0
    %2467 = vmatprep.subr.mxu0 0.0
    %2468 = vmatpush2.msra.mxu0 0.0
    %2469 = vmatprep.subr.mxu0 0.0
    %2470 = vmatpush2.msra.mxu0 0.0
    %2471 = vmatprep.subr.mxu0 0.0
    %2472 = vmatpush2.msra.mxu0 0.0
    %2473 = vmatprep.subr.mxu0 0.0
    %2474 = vmatpush2.msra.mxu0 0.0
    %2475 = vmatprep.mubr.f32.mxu0 0.0
    %2476 = vmatmul.mubr.f32.gmra.mxu0 %v2406
    %v2477 = vpop.f32.mrf.mxu0
    %v2478 = vadd.f32 %v952, %v2477
    %v2479 = vpop.f32.mrf.mxu0
    %2480 = vmatprep.mubr.f32.mxu0 0.0
    %2481 = vmatmul.mubr.f32.gmra.mxu0 %v2409
    %v2482 = vpop.f32.mrf.mxu0
    %v2483 = vadd.f32 %v952, %v2482
    %v2484 = vpop.f32.mrf.mxu0
    %2485 = vdwg.mxu0
    %v2486 = vadd.f32 %v2478, %v1080
    %v2487 = vadd.f32 %v2483, %v1081
    %v2488 = vmax.f32 %v2486, 0.0
    %v2489 = vmax.f32 %v2487, 0.0
    %v2490 = vsel %vm298, %v2488, 0.0
    %2491 = vadd.xlane.f32.xlu0 %v2490
    %v2492 = vpop.xlane.xlu0 %2491
    %v2493 = vsel %vm298, %v2489, 0.0
    %2494 = vadd.xlane.f32.xlu0 %v2493
    %v2495 = vpop.xlane.xlu0 %2494
    %v2496 = vmul.f32 %v2492, %v1045
    %v2497 = vmul.f32 %v2495, %v1045
    %v2498 = vsub.f32 %v2488, %v2496
    %v2499 = vsub.f32 %v2489, %v2497
    %v2500 = vmul.f32 %v2498, %v2498
    %v2501 = vmul.f32 %v2499, %v2499
    %v2502 = vsel %vm298, %v2500, 0.0
    %2503 = vadd.xlane.f32.xlu0 %v2502
    %v2504 = vpop.xlane.xlu0 %2503
    %v2505 = vsel %vm298, %v2501, 0.0
    %2506 = vadd.xlane.f32.xlu0 %v2505
    %v2507 = vpop.xlane.xlu0 %2506
    %v2508 = vmul.f32 %v2504, %v1045
    %v2509 = vmul.f32 %v2507, %v1045
    %v2510 = vadd.f32 %v2508, 1e-12
    %v2511 = vadd.f32 %v2509, 1e-12
    %v2512 = vrsqrt.pop %v2510
    %v2513 = vrsqrt.pop %v2511
    %v2514 = vmul.f32 %v2498, %v2512
    %v2515 = vmul.f32 %v2499, %v2513
    %v2516 = vmul.f32 %v1070, %v2514
    %v2517 = vmul.f32 %v1070, %v2515
    %v2518 = vadd.f32 %v2516, %v1078
    %v2519 = vadd.f32 %v2517, %v1078
    %v2521 = vrot.slane %v2518, 6
    %v2524 = vrot.slane %v2519, 5
    %v2526 = vrot.slane %v2518, 5
    %v2528 = vrot.slane %v2519, 4
    %v2530 = vrot.slane %v2518, 4
    %v2532 = vrot.slane %v2519, 3
    %v2534 = vrot.slane %v2518, 3
    %v2536 = vrot.slane %v2519, 2
    %v2538 = vrot.slane %v2518, 2
    %v2540 = vrot.slane %v2519, 1
    %v2542 = vrot.slane %v2518, 1
    %v2544 = vrot.slane %v2519, 7
    %v2546 = vrot.slane %v2518, 7
    %v2548 = vsel %vm1110, %v1748, %v2521
    %v2549 = vsel %vm1112, %v2548, %v2524
    %v2550 = vsel %vm771, %v2549, %v2526
    %v2551 = vsel %vm1115, %v2550, %v2528
    %v2552 = vsel %vm1117, %v2551, %v2530
    %v2553 = vsel %vm289, %v2552, %v2532
    %v2554 = vsel %vm271, %v2534, %v2536
    %v2555 = vsel %vm1110, %v2554, %v2538
    %v2556 = vsel %vm1112, %v2555, %v2540
    %v2557 = vsel %vm771, %v2556, %v2542
    %v2558 = vsel %vm1115, %v2557, %v2519
    %v2559 = vsel %vm1117, %v2558, %v2518
    %v2560 = vsel %vm289, %v2559, %v2544
    %v2561 = vrot.slane %v2519, 6
    %v2563 = vsel %vm271, %v2546, %v2561
    %v2565 = vsel %vm298, %v1748, 0
    %2567 = vmatprep.subr.mxu0 0.0
    %2568 = vmatpush1.msra.mxu0 0.0
    %2569 = vmatprep.subr.mxu0 0.0
    %2570 = vmatpush1.msra.mxu0 0.0
    %2571 = vmatprep.subr.mxu0 0.0
    %2572 = vmatpush1.msra.mxu0 0.0
    %2573 = vmatprep.subr.mxu0 0.0
    %2574 = vmatpush1.msra.mxu0 0.0
    %2575 = vmatprep.subr.mxu0 0.0
    %2576 = vmatpush1.msra.mxu0 0.0
    %2577 = vmatprep.subr.mxu0 0.0
    %2578 = vmatpush1.msra.mxu0 0.0
    %2579 = vmatprep.subr.mxu0 0.0
    %2580 = vmatpush1.msra.mxu0 0.0
    %2581 = vmatprep.subr.mxu0 0.0
    %2582 = vmatpush1.msra.mxu0 0.0
    %2583 = vmatprep.subr.mxu0 0.0
    %2584 = vmatpush1.msra.mxu0 0.0
    %2585 = vmatprep.subr.mxu0 0.0
    %2586 = vmatpush1.msra.mxu0 0.0
    %2587 = vmatprep.subr.mxu0 0.0
    %2588 = vmatpush1.msra.mxu0 0.0
    %2589 = vmatprep.subr.mxu0 0.0
    %2590 = vmatpush1.msra.mxu0 0.0
    %2591 = vmatprep.subr.mxu0 0.0
    %2592 = vmatpush1.msra.mxu0 %v206
    %2593 = vmatprep.subr.mxu0 0.0
    %2594 = vmatpush1.msra.mxu0 %v205
    %2595 = vmatprep.subr.mxu0 0.0
    %2596 = vmatpush1.msra.mxu0 %v204
    %2597 = vmatprep.subr.mxu0 0.0
    %2598 = vmatpush1.msra.mxu0 %v203
    %2599 = vmatprep.subr.mxu0 0.0
    %2600 = vmatpush2.msra.mxu0 0.0
    %2601 = vmatprep.subr.mxu0 0.0
    %2602 = vmatpush2.msra.mxu0 0.0
    %2603 = vmatprep.subr.mxu0 0.0
    %2604 = vmatpush2.msra.mxu0 0.0
    %2605 = vmatprep.subr.mxu0 0.0
    %2606 = vmatpush2.msra.mxu0 0.0
    %2607 = vmatprep.subr.mxu0 0.0
    %2608 = vmatpush2.msra.mxu0 0.0
    %2609 = vmatprep.subr.mxu0 0.0
    %2610 = vmatpush2.msra.mxu0 0.0
    %2611 = vmatprep.subr.mxu0 0.0
    %2612 = vmatpush2.msra.mxu0 0.0
    %2613 = vmatprep.subr.mxu0 0.0
    %2614 = vmatpush2.msra.mxu0 0.0
    %2615 = vmatprep.subr.mxu0 0.0
    %2616 = vmatpush2.msra.mxu0 0.0
    %2617 = vmatprep.subr.mxu0 0.0
    %2618 = vmatpush2.msra.mxu0 0.0
    %2619 = vmatprep.subr.mxu0 0.0
    %2620 = vmatpush2.msra.mxu0 0.0
    %2621 = vmatprep.subr.mxu0 0.0
    %2622 = vmatpush2.msra.mxu0 0.0
    %2623 = vmatprep.subr.mxu0 0.0
    %2624 = vmatpush2.msra.mxu0 0.0
    %2625 = vmatprep.subr.mxu0 0.0
    %2626 = vmatpush2.msra.mxu0 0.0
    %2627 = vmatprep.subr.mxu0 0.0
    %2628 = vmatpush2.msra.mxu0 0.0
    %2629 = vmatprep.subr.mxu0 0.0
    %2630 = vmatpush2.msra.mxu0 0.0
    %2631 = vmatprep.mubr.f32.mxu0 0.0
    %2632 = vmatmul.mubr.f32.gmra.mxu0 %v2565
    %v2633 = vpop.f32.mrf.mxu0
    %v2634 = vadd.f32 %v1134, %v2633
    %v2635 = vpop.f32.mrf.mxu0
    %2636 = vdwg.mxu0
    %v2638 = vsel %vm298, %v2553, 0
    %v2641 = vsel %vm298, %v2560, 0
    %v2644 = vsel %vm298, %v2563, 0
    %2646 = vmatprep.subr.mxu0 0.0
    %2647 = vmatpush1.msra.mxu0 0.0
    %2648 = vmatprep.subr.mxu0 0.0
    %2649 = vmatpush1.msra.mxu0 0.0
    %2650 = vmatprep.subr.mxu0 0.0
    %2651 = vmatpush1.msra.mxu0 0.0
    %2652 = vmatprep.subr.mxu0 0.0
    %2653 = vmatpush1.msra.mxu0 0.0
    %2654 = vmatprep.subr.mxu0 0.0
    %2655 = vmatpush1.msra.mxu0 0.0
    %2656 = vmatprep.subr.mxu0 0.0
    %2657 = vmatpush1.msra.mxu0 0.0
    %2658 = vmatprep.subr.mxu0 0.0
    %2659 = vmatpush1.msra.mxu0 0.0
    %2660 = vmatprep.subr.mxu0 0.0
    %2661 = vmatpush1.msra.mxu0 0.0
    %2662 = vmatprep.subr.mxu0 0.0
    %2663 = vmatpush1.msra.mxu0 0.0
    %2664 = vmatprep.subr.mxu0 0.0
    %2665 = vmatpush1.msra.mxu0 0.0
    %2666 = vmatprep.subr.mxu0 0.0
    %2667 = vmatpush1.msra.mxu0 0.0
    %2668 = vmatprep.subr.mxu0 0.0
    %2669 = vmatpush1.msra.mxu0 0.0
    %2670 = vmatprep.subr.mxu0 0.0
    %2671 = vmatpush1.msra.mxu0 %v211
    %2672 = vmatprep.subr.mxu0 0.0
    %2673 = vmatpush1.msra.mxu0 %v210
    %2674 = vmatprep.subr.mxu0 0.0
    %2675 = vmatpush1.msra.mxu0 %v209
    %2676 = vmatprep.subr.mxu0 0.0
    %2677 = vmatpush1.msra.mxu0 %v208
    %2678 = vmatprep.subr.mxu0 0.0
    %2679 = vmatpush2.msra.mxu0 0.0
    %2680 = vmatprep.subr.mxu0 0.0
    %2681 = vmatpush2.msra.mxu0 0.0
    %2682 = vmatprep.subr.mxu0 0.0
    %2683 = vmatpush2.msra.mxu0 0.0
    %2684 = vmatprep.subr.mxu0 0.0
    %2685 = vmatpush2.msra.mxu0 0.0
    %2686 = vmatprep.subr.mxu0 0.0
    %2687 = vmatpush2.msra.mxu0 0.0
    %2688 = vmatprep.subr.mxu0 0.0
    %2689 = vmatpush2.msra.mxu0 0.0
    %2690 = vmatprep.subr.mxu0 0.0
    %2691 = vmatpush2.msra.mxu0 0.0
    %2692 = vmatprep.subr.mxu0 0.0
    %2693 = vmatpush2.msra.mxu0 0.0
    %2694 = vmatprep.subr.mxu0 0.0
    %2695 = vmatpush2.msra.mxu0 0.0
    %2696 = vmatprep.subr.mxu0 0.0
    %2697 = vmatpush2.msra.mxu0 0.0
    %2698 = vmatprep.subr.mxu0 0.0
    %2699 = vmatpush2.msra.mxu0 0.0
    %2700 = vmatprep.subr.mxu0 0.0
    %2701 = vmatpush2.msra.mxu0 0.0
    %2702 = vmatprep.subr.mxu0 0.0
    %2703 = vmatpush2.msra.mxu0 0.0
    %2704 = vmatprep.subr.mxu0 0.0
    %2705 = vmatpush2.msra.mxu0 0.0
    %2706 = vmatprep.subr.mxu0 0.0
    %2707 = vmatpush2.msra.mxu0 0.0
    %2708 = vmatprep.subr.mxu0 0.0
    %2709 = vmatpush2.msra.mxu0 0.0
    %2710 = vmatprep.mubr.f32.mxu0 0.0
    %2711 = vmatmul.mubr.f32.gmra.mxu0 %v2638
    %v2712 = vpop.f32.mrf.mxu0
    %v2713 = vadd.f32 %v1213, %v2712
    %v2714 = vpop.f32.mrf.mxu0
    %2715 = vmatprep.mubr.f32.mxu0 0.0
    %2716 = vmatmul.mubr.f32.gmra.mxu0 %v2641
    %v2717 = vpop.f32.mrf.mxu0
    %v2718 = vadd.f32 %v1213, %v2717
    %v2719 = vpop.f32.mrf.mxu0
    %2720 = vmatprep.mubr.f32.mxu0 0.0
    %2721 = vmatmul.mubr.f32.gmra.mxu0 %v2644
    %v2722 = vpop.f32.mrf.mxu0
    %v2723 = vadd.f32 %v1213, %v2722
    %v2724 = vpop.f32.mrf.mxu0
    %2725 = vdwg.mxu0
    %v2727 = vrot.slane %v2634, 6
    %v2729 = vrot.slane %v2634, 4
    %v2731 = vrot.slane %v2634, 2
    %v2733 = vsel %vm1110, %v2634, %v2727
    %v2734 = vsel %vm771, %v2733, %v2729
    %v2735 = vsel %vm1117, %v2734, %v2731
    %v2736 = vmul.f32 %v2735, %v2713
    %v2737 = vmul.f32 %v2735, %v2718
    %v2738 = vmul.f32 %v2634, %v2723
    %v2740 = vsel %vm298, %v2736, 0
    %v2743 = vsel %vm298, %v2737, 0
    %v2746 = vsel %vm298, %v2738, 0
    %2748 = vmatprep.subr.mxu0 0.0
    %2749 = vmatpush1.msra.mxu0 0.0
    %2750 = vmatprep.subr.mxu0 0.0
    %2751 = vmatpush1.msra.mxu0 0.0
    %2752 = vmatprep.subr.mxu0 0.0
    %2753 = vmatpush1.msra.mxu0 0.0
    %2754 = vmatprep.subr.mxu0 0.0
    %2755 = vmatpush1.msra.mxu0 0.0
    %2756 = vmatprep.subr.mxu0 0.0
    %2757 = vmatpush1.msra.mxu0 0.0
    %2758 = vmatprep.subr.mxu0 0.0
    %2759 = vmatpush1.msra.mxu0 0.0
    %2760 = vmatprep.subr.mxu0 0.0
    %2761 = vmatpush1.msra.mxu0 0.0
    %2762 = vmatprep.subr.mxu0 0.0
    %2763 = vmatpush1.msra.mxu0 0.0
    %2764 = vmatprep.subr.mxu0 0.0
    %2765 = vmatpush1.msra.mxu0 0.0
    %2766 = vmatprep.subr.mxu0 0.0
    %2767 = vmatpush1.msra.mxu0 0.0
    %2768 = vmatprep.subr.mxu0 0.0
    %2769 = vmatpush1.msra.mxu0 0.0
    %2770 = vmatprep.subr.mxu0 0.0
    %2771 = vmatpush1.msra.mxu0 0.0
    %2772 = vmatprep.subr.mxu0 0.0
    %2773 = vmatpush1.msra.mxu0 %v179
    %2774 = vmatprep.subr.mxu0 0.0
    %2775 = vmatpush1.msra.mxu0 %v178
    %2776 = vmatprep.subr.mxu0 0.0
    %2777 = vmatpush1.msra.mxu0 %v177
    %2778 = vmatprep.subr.mxu0 0.0
    %2779 = vmatpush1.msra.mxu0 %v176
    %2780 = vmatprep.subr.mxu0 0.0
    %2781 = vmatpush2.msra.mxu0 0.0
    %2782 = vmatprep.subr.mxu0 0.0
    %2783 = vmatpush2.msra.mxu0 0.0
    %2784 = vmatprep.subr.mxu0 0.0
    %2785 = vmatpush2.msra.mxu0 0.0
    %2786 = vmatprep.subr.mxu0 0.0
    %2787 = vmatpush2.msra.mxu0 0.0
    %2788 = vmatprep.subr.mxu0 0.0
    %2789 = vmatpush2.msra.mxu0 0.0
    %2790 = vmatprep.subr.mxu0 0.0
    %2791 = vmatpush2.msra.mxu0 0.0
    %2792 = vmatprep.subr.mxu0 0.0
    %2793 = vmatpush2.msra.mxu0 0.0
    %2794 = vmatprep.subr.mxu0 0.0
    %2795 = vmatpush2.msra.mxu0 0.0
    %2796 = vmatprep.subr.mxu0 0.0
    %2797 = vmatpush2.msra.mxu0 0.0
    %2798 = vmatprep.subr.mxu0 0.0
    %2799 = vmatpush2.msra.mxu0 0.0
    %2800 = vmatprep.subr.mxu0 0.0
    %2801 = vmatpush2.msra.mxu0 0.0
    %2802 = vmatprep.subr.mxu0 0.0
    %2803 = vmatpush2.msra.mxu0 0.0
    %2804 = vmatprep.subr.mxu0 0.0
    %2805 = vmatpush2.msra.mxu0 0.0
    %2806 = vmatprep.subr.mxu0 0.0
    %2807 = vmatpush2.msra.mxu0 0.0
    %2808 = vmatprep.subr.mxu0 0.0
    %2809 = vmatpush2.msra.mxu0 0.0
    %2810 = vmatprep.subr.mxu0 0.0
    %2811 = vmatpush2.msra.mxu0 0.0
    %2812 = vmatprep.mubr.f32.mxu0 0.0
    %2813 = vmatmul.mubr.f32.gmra.mxu0 %v2740
    %v2814 = vpop.f32.mrf.mxu0
    %v2815 = vadd.f32 0.0, %v2814
    %v2816 = vpop.f32.mrf.mxu0
    %2817 = vmatprep.mubr.f32.mxu0 0.0
    %2818 = vmatmul.mubr.f32.gmra.mxu0 %v2743
    %v2819 = vpop.f32.mrf.mxu0
    %v2820 = vadd.f32 0.0, %v2819
    %v2821 = vpop.f32.mrf.mxu0
    %2822 = vmatprep.mubr.f32.mxu0 0.0
    %2823 = vmatmul.mubr.f32.gmra.mxu0 %v2746
    %v2824 = vpop.f32.mrf.mxu0
    %v2825 = vadd.f32 0.0, %v2824
    %v2826 = vpop.f32.mrf.mxu0
    %2827 = vdwg.mxu0
    %v2828 = vmul.f32 %v2815, 0.35355338
    %v2829 = vmul.f32 %v2820, 0.35355338
    %v2830 = vmul.f32 %v2825, 0.35355338
    %v2832 = vrot.slane %v2828, 2
    %v2834 = vmax.f32 %v2828, %v2832
    %v2835 = vrot.slane %v2828, 4
    %v2837 = vmax.f32 %v2834, %v2835
    %v2838 = vrot.slane %v2828, 6
    %v2840 = vmax.f32 %v2837, %v2838
    %v2841 = vmax.f32 %v2840, %v2829
    %v2843 = vrot.slane %v2829, 2
    %v2845 = vmax.f32 %v2841, %v2843
    %v2846 = vrot.slane %v2829, 4
    %v2848 = vmax.f32 %v2845, %v2846
    %v2849 = vrot.slane %v2829, 6
    %v2851 = vmax.f32 %v2848, %v2849
    %v2852 = vmax.f32 %v2851, %v2830
    %v2853 = vsub.f32 %v2828, %v2852
    %v2854 = vmul.f32 %v2853, 1.442695
    %v2855 = vpow.pop %v2854
    %v2857 = vrot.slane %v2852, 6
    %v2859 = vsub.f32 %v2828, %v2857
    %v2860 = vmul.f32 %v2859, 1.442695
    %v2861 = vpow.pop %v2860
    %v2862 = vrot.slane %v2852, 4
    %v2864 = vsub.f32 %v2828, %v2862
    %v2865 = vmul.f32 %v2864, 1.442695
    %v2866 = vpow.pop %v2865
    %v2867 = vrot.slane %v2852, 2
    %v2869 = vsub.f32 %v2828, %v2867
    %v2870 = vmul.f32 %v2869, 1.442695
    %v2871 = vpow.pop %v2870
    %v2872 = vsub.f32 %v2829, %v2852
    %v2873 = vmul.f32 %v2872, 1.442695
    %v2874 = vpow.pop %v2873
    %v2875 = vsub.f32 %v2829, %v2857
    %v2876 = vmul.f32 %v2875, 1.442695
    %v2877 = vpow.pop %v2876
    %v2878 = vsub.f32 %v2829, %v2862
    %v2879 = vmul.f32 %v2878, 1.442695
    %v2880 = vpow.pop %v2879
    %v2881 = vsub.f32 %v2829, %v2867
    %v2882 = vmul.f32 %v2881, 1.442695
    %v2883 = vpow.pop %v2882
    %v2884 = vsub.f32 %v2830, %v2852
    %v2885 = vmul.f32 %v2884, 1.442695
    %v2886 = vpow.pop %v2885
    %v2888 = vrot.slane %v2861, 2
    %v2890 = vadd.f32 %v2855, %v2888
    %v2892 = vrot.slane %v2866, 4
    %v2894 = vadd.f32 %v2890, %v2892
    %v2896 = vrot.slane %v2871, 6
    %v2898 = vadd.f32 %v2894, %v2896
    %v2899 = vadd.f32 %v2898, %v2874
    %v2901 = vrot.slane %v2877, 2
    %v2903 = vadd.f32 %v2899, %v2901
    %v2905 = vrot.slane %v2880, 4
    %v2907 = vadd.f32 %v2903, %v2905
    %v2909 = vrot.slane %v2883, 6
    %v2911 = vadd.f32 %v2907, %v2909
    %v2912 = vadd.f32 %v2911, %v2886
    %v2913 = vrcp.pop %v2912
    %v2914 = vmul.f32 %v2855, %v2913
    %v2916 = vrot.slane %v2913, 6
    %v2918 = vmul.f32 %v2861, %v2916
    %v2919 = vrot.slane %v2913, 4
    %v2921 = vmul.f32 %v2866, %v2919
    %v2922 = vrot.slane %v2913, 2
    %v2924 = vmul.f32 %v2871, %v2922
    %v2925 = vmul.f32 %v2874, %v2913
    %v2926 = vmul.f32 %v2877, %v2916
    %v2927 = vmul.f32 %v2880, %v2919
    %v2928 = vmul.f32 %v2883, %v2922
    %v2929 = vmul.f32 %v2886, %v2913
    %v2930 = vsel %vm1110, %v2914, %v2918
    %v2931 = vsel %vm771, %v2930, %v2921
    %v2932 = vsel %vm1117, %v2931, %v2924
    %v2933 = vsel %vm1110, %v2925, %v2926
    %v2934 = vsel %vm771, %v2933, %v2927
    %v2935 = vsel %vm1117, %v2934, %v2928
    %v2937 = vsel %vm740, %v2932, 0
    %v2940 = vsel %vm740, %v2935, 0
    %v2943 = vsel %vm740, %v2929, 0
    %2945 = vmatprep.subr.mxu0 0.0
    %2946 = vmatpush1.msra.mxu0 0.0
    %2947 = vmatprep.subr.mxu0 0.0
    %2948 = vmatpush1.msra.mxu0 0.0
    %2949 = vmatprep.subr.mxu0 0.0
    %2950 = vmatpush1.msra.mxu0 0.0
    %2951 = vmatprep.subr.mxu0 0.0
    %2952 = vmatpush1.msra.mxu0 0.0
    %2953 = vmatprep.subr.mxu0 0.0
    %2954 = vmatpush1.msra.mxu0 0.0
    %2955 = vmatprep.subr.mxu0 0.0
    %2956 = vmatpush1.msra.mxu0 0.0
    %2957 = vmatprep.subr.mxu0 0.0
    %2958 = vmatpush1.msra.mxu0 0.0
    %2959 = vmatprep.subr.mxu0 0.0
    %2960 = vmatpush1.msra.mxu0 0.0
    %2961 = vmatprep.subr.mxu0 0.0
    %2962 = vmatpush1.msra.mxu0 0.0
    %2963 = vmatprep.subr.mxu0 0.0
    %2964 = vmatpush1.msra.mxu0 0.0
    %2965 = vmatprep.subr.mxu0 0.0
    %2966 = vmatpush1.msra.mxu0 0.0
    %2967 = vmatprep.subr.mxu0 0.0
    %2968 = vmatpush1.msra.mxu0 0.0
    %2969 = vmatprep.subr.mxu0 0.0
    %2970 = vmatpush1.msra.mxu0 0.0
    %2971 = vmatprep.subr.mxu0 0.0
    %2972 = vmatpush1.msra.mxu0 0.0
    %2973 = vmatprep.subr.mxu0 0.0
    %2974 = vmatpush1.msra.mxu0 0.0
    %2975 = vmatprep.subr.mxu0 0.0
    %2976 = vmatpush1.msra.mxu0 %v773
    %2977 = vmatprep.subr.mxu0 0.0
    %2978 = vmatpush2.msra.mxu0 0.0
    %2979 = vmatprep.subr.mxu0 0.0
    %2980 = vmatpush2.msra.mxu0 0.0
    %2981 = vmatprep.subr.mxu0 0.0
    %2982 = vmatpush2.msra.mxu0 0.0
    %2983 = vmatprep.subr.mxu0 0.0
    %2984 = vmatpush2.msra.mxu0 0.0
    %2985 = vmatprep.subr.mxu0 0.0
    %2986 = vmatpush2.msra.mxu0 0.0
    %2987 = vmatprep.subr.mxu0 0.0
    %2988 = vmatpush2.msra.mxu0 0.0
    %2989 = vmatprep.subr.mxu0 0.0
    %2990 = vmatpush2.msra.mxu0 0.0
    %2991 = vmatprep.subr.mxu0 0.0
    %2992 = vmatpush2.msra.mxu0 0.0
    %2993 = vmatprep.subr.mxu0 0.0
    %2994 = vmatpush2.msra.mxu0 0.0
    %2995 = vmatprep.subr.mxu0 0.0
    %2996 = vmatpush2.msra.mxu0 0.0
    %2997 = vmatprep.subr.mxu0 0.0
    %2998 = vmatpush2.msra.mxu0 0.0
    %2999 = vmatprep.subr.mxu0 0.0
    %3000 = vmatpush2.msra.mxu0 0.0
    %3001 = vmatprep.subr.mxu0 0.0
    %3002 = vmatpush2.msra.mxu0 0.0
    %3003 = vmatprep.subr.mxu0 0.0
    %3004 = vmatpush2.msra.mxu0 0.0
    %3005 = vmatprep.subr.mxu0 0.0
    %3006 = vmatpush2.msra.mxu0 0.0
    %3007 = vmatprep.subr.mxu0 0.0
    %3008 = vmatpush2.msra.mxu0 0.0
    %3009 = vmatprep.mubr.f32.mxu0 0.0
    %3010 = vmatmul.mubr.f32.gmra.mxu0 %v2937
    %v3011 = vpop.f32.mrf.mxu0
    %v3012 = vadd.f32 0.0, %v3011
    %v3013 = vpop.f32.mrf.mxu0
    %3014 = vmatprep.mubr.f32.mxu0 0.0
    %3015 = vmatmul.mubr.f32.gmra.mxu0 %v2940
    %v3016 = vpop.f32.mrf.mxu0
    %v3017 = vadd.f32 0.0, %v3016
    %v3018 = vpop.f32.mrf.mxu0
    %3019 = vmatprep.mubr.f32.mxu0 0.0
    %3020 = vmatmul.mubr.f32.gmra.mxu0 %v2943
    %v3021 = vpop.f32.mrf.mxu0
    %v3022 = vadd.f32 0.0, %v3021
    %v3023 = vpop.f32.mrf.mxu0
    %3024 = vdwg.mxu0
    %3028 = vrot.lane.b32.xlu0 %v2713, 96
    %v3029 = vpop.permute.xlu0 %3028
    %3030 = vrot.lane.b32.xlu0 %v2718, 96
    %v3031 = vpop.permute.xlu0 %3030
    %3032 = vrot.lane.b32.xlu0 %v2723, 96
    %v3033 = vpop.permute.xlu0 %3032
    %v3037 = vmul.f32 %v3012, %v3029
    %v3038 = vmul.f32 %v3017, %v3031
    %v3039 = vmul.f32 %v3022, %v3033
    %v3041 = vrot.slane %v3037, 2
    %v3043 = vadd.f32 %v3037, %v3041
    %v3044 = vrot.slane %v3037, 4
    %v3046 = vadd.f32 %v3043, %v3044
    %v3047 = vrot.slane %v3037, 6
    %v3049 = vadd.f32 %v3046, %v3047
    %v3050 = vadd.f32 %v3049, %v3038
    %v3052 = vrot.slane %v3038, 2
    %v3054 = vadd.f32 %v3050, %v3052
    %v3055 = vrot.slane %v3038, 4
    %v3057 = vadd.f32 %v3054, %v3055
    %v3058 = vrot.slane %v3038, 6
    %v3060 = vadd.f32 %v3057, %v3058
    %v3061 = vadd.f32 %v3060, %v3039
    %v3063 = vsel %vm298, %v3061, 0
    %3065 = vmatprep.subr.mxu0 0.0
    %3066 = vmatpush1.msra.mxu0 0.0
    %3067 = vmatprep.subr.mxu0 0.0
    %3068 = vmatpush1.msra.mxu0 0.0
    %3069 = vmatprep.subr.mxu0 0.0
    %3070 = vmatpush1.msra.mxu0 0.0
    %3071 = vmatprep.subr.mxu0 0.0
    %3072 = vmatpush1.msra.mxu0 0.0
    %3073 = vmatprep.subr.mxu0 0.0
    %3074 = vmatpush1.msra.mxu0 0.0
    %3075 = vmatprep.subr.mxu0 0.0
    %3076 = vmatpush1.msra.mxu0 0.0
    %3077 = vmatprep.subr.mxu0 0.0
    %3078 = vmatpush1.msra.mxu0 0.0
    %3079 = vmatprep.subr.mxu0 0.0
    %3080 = vmatpush1.msra.mxu0 0.0
    %3081 = vmatprep.subr.mxu0 0.0
    %3082 = vmatpush1.msra.mxu0 0.0
    %3083 = vmatprep.subr.mxu0 0.0
    %3084 = vmatpush1.msra.mxu0 0.0
    %3085 = vmatprep.subr.mxu0 0.0
    %3086 = vmatpush1.msra.mxu0 0.0
    %3087 = vmatprep.subr.mxu0 0.0
    %3088 = vmatpush1.msra.mxu0 0.0
    %3089 = vmatprep.subr.mxu0 0.0
    %3090 = vmatpush1.msra.mxu0 %v216
    %3091 = vmatprep.subr.mxu0 0.0
    %3092 = vmatpush1.msra.mxu0 %v215
    %3093 = vmatprep.subr.mxu0 0.0
    %3094 = vmatpush1.msra.mxu0 %v214
    %3095 = vmatprep.subr.mxu0 0.0
    %3096 = vmatpush1.msra.mxu0 %v213
    %3097 = vmatprep.subr.mxu0 0.0
    %3098 = vmatpush2.msra.mxu0 0.0
    %3099 = vmatprep.subr.mxu0 0.0
    %3100 = vmatpush2.msra.mxu0 0.0
    %3101 = vmatprep.subr.mxu0 0.0
    %3102 = vmatpush2.msra.mxu0 0.0
    %3103 = vmatprep.subr.mxu0 0.0
    %3104 = vmatpush2.msra.mxu0 0.0
    %3105 = vmatprep.subr.mxu0 0.0
    %3106 = vmatpush2.msra.mxu0 0.0
    %3107 = vmatprep.subr.mxu0 0.0
    %3108 = vmatpush2.msra.mxu0 0.0
    %3109 = vmatprep.subr.mxu0 0.0
    %3110 = vmatpush2.msra.mxu0 0.0
    %3111 = vmatprep.subr.mxu0 0.0
    %3112 = vmatpush2.msra.mxu0 0.0
    %3113 = vmatprep.subr.mxu0 0.0
    %3114 = vmatpush2.msra.mxu0 0.0
    %3115 = vmatprep.subr.mxu0 0.0
    %3116 = vmatpush2.msra.mxu0 0.0
    %3117 = vmatprep.subr.mxu0 0.0
    %3118 = vmatpush2.msra.mxu0 0.0
    %3119 = vmatprep.subr.mxu0 0.0
    %3120 = vmatpush2.msra.mxu0 0.0
    %3121 = vmatprep.subr.mxu0 0.0
    %3122 = vmatpush2.msra.mxu0 0.0
    %3123 = vmatprep.subr.mxu0 0.0
    %3124 = vmatpush2.msra.mxu0 0.0
    %3125 = vmatprep.subr.mxu0 0.0
    %3126 = vmatpush2.msra.mxu0 0.0
    %3127 = vmatprep.subr.mxu0 0.0
    %3128 = vmatpush2.msra.mxu0 0.0
    %3129 = vmatprep.mubr.f32.mxu0 0.0
    %3130 = vmatmul.mubr.f32.gmra.mxu0 %v3063
    %v3131 = vpop.f32.mrf.mxu0
    %v3132 = vadd.f32 %v1644, %v3131
    %v3133 = vpop.f32.mrf.mxu0
    %3134 = vdwg.mxu0
    %v3135 = vadd.f32 %v3132, %v1748
    %v3136 = vmax.f32 %v3135, 0.0
    %v3137 = vsel %vm1721, %v3136, 0.0
    %3138 = vadd.xlane.f32.xlu0 %v3137
    %v3139 = vpop.xlane.xlu0 %3138
    %v3140 = vmul.f32 %v3139, %v1045
    %v3141 = vsub.f32 %v3136, %v3140
    %v3142 = vmul.f32 %v3141, %v3141
    %v3143 = vsel %vm1721, %v3142, 0.0
    %3144 = vadd.xlane.f32.xlu0 %v3143
    %v3145 = vpop.xlane.xlu0 %3144
    %v3146 = vmul.f32 %v3145, %v1045
    %v3147 = vadd.f32 %v3146, 1e-12
    %v3148 = vrsqrt.pop %v3147
    %v3149 = vmul.f32 %v3141, %v3148
    %v3150 = vmul.f32 %v1739, %v3149
    %v3151 = vadd.f32 %v3150, %v1746
    %3152 = vst.msk [vmem:[#allocation14] sm:$0xff] %vm298, %v2518
    %3153 = vst.msk [vmem:[#allocation14 + $0x8] sm:$0xff] %vm298, %v2519
    %3154 = vst.msk [vmem:[#allocation15] sm:$0x3] %vm1721, %v3151
    // Predicated region
    $region98: #{star_transformer_layer.1} parent=1 // pred_check
      _
    $region99: #{star_transformer_layer.1} parent=1 // pred_check_branch
      %3156 = sbr.rel (0) target = $region101
    $region100: #{star_transformer_layer.1} parent=1 // pred_region
      %s3158 = ssub.s32 256, 256
      %3159 = vsyncadd [#allocation4], %s3158
      %s3160 = sshll.u32 [#allocation14], 4
      %s3161 = int_to_ptr.vmem [resolvable:$true] %s3160
      %3166 = dma.vmem_to_hbm [thread:$0]  %s3161, 256, %s17, [#allocation4], 128, 128, 8
    $region101: #{star_transformer_layer.1} parent=1 // pred_fallthru
      _
    // Predicated region
    $region102: #{star_transformer_layer.1} parent=1 // pred_check
      _
    $region103: #{star_transformer_layer.1} parent=1 // pred_check_branch
      %3168 = sbr.rel (0) target = $region105
    $region104: #{star_transformer_layer.1} parent=1 // pred_region
      %s3170 = ssub.s32 32, 32
      %3171 = vsyncadd [#allocation16], %s3170
      %s3173 = sshll.u32 [#allocation15], 4
      %s3174 = int_to_ptr.vmem [resolvable:$true] %s3173
      %3176 = dma.vmem_to_hbm [thread:$0]  %s3174, 32, %s18, [#allocation16]
    $region105: #{star_transformer_layer.1} parent=1 // pred_fallthru
      _
    // Predicated region
    $region106: #{star_transformer_layer.1} parent=1 // pred_check
      _
    $region107: #{star_transformer_layer.1} parent=1 // pred_check_branch
      %3178 = sbr.rel (0) target = $region109
    $region108: #{star_transformer_layer.1} parent=1 // pred_region
      %3179 = dma.done [#allocation4], 256
    $region109: #{star_transformer_layer.1} parent=1 // pred_fallthru
      _
    // Predicated region
    $region110: #{star_transformer_layer.1} parent=1 // pred_check
      _
    $region111: #{star_transformer_layer.1} parent=1 // pred_check_branch
      %3181 = sbr.rel (0) target = $region113
    $region112: #{star_transformer_layer.1} parent=1 // pred_region
      %3182 = dma.done [#allocation16], 32
    $region113: #{star_transformer_layer.1} parent=1 // pred_fallthru
      _
    %3183 = vsyncpa [#allocation3], 1
    %3184 = vsyncpa [#allocation6], 1
    %3185 = vsyncpa [#allocation9], 1
    %3186 = vsyncpa [#allocation12], 1
    %3187 = vsyncpa [#allocation4], 1
    %3188 = vsyncpa [#allocation16], 1

</llo_original>
